<compile_context>
chip_gen: v7x
topology: tpu7x:2x2x1
jax: 0.10.0
libtpu: 0.0.40
codegen_flags: <defaults>
</compile_context>

<pallas_src>
import math
import jax
import jax.numpy as jnp
from jax.experimental import pallas as pl
from jax.experimental.pallas import tpu as pltpu

CLS_NUM = 10
OUT_PAD = 128          # lane-dense padded classifier width (sliced to CLS_NUM in the wrapper)
DIM_IN = 128
DIM_K = 128
DIM_V = 128
N_HEADS = 8
FEAT_DIM = 2048
BN_EPS = 1e-5
TK = 512               # K-tile of the 2048->512 projection (pipelined over the grid)


def tc_kernel(emb_ref, wg1_ref, bg1_ref, wg2_ref, bg2_ref,
              wq_ref, wk_ref, wv_ref,
              w1_ref, b1_ref, w2_ref, b2_ref, w3_ref, b3_ref, w4_ref, b4_ref,
              attn_out_ref, out_ref, acc_ref):
    kstep = pl.program_id(0)

    @pl.when(kstep == 0)
    def _():
        acc_ref[...] = jnp.zeros_like(acc_ref)

    # ---- pipelined K-slice of self.g[0]: Linear(2048, 512, bias=False) (BN folded in) ----
    acc_ref[...] += jnp.dot(emb_ref[...], wg1_ref[...],
                            preferred_element_type=jnp.float32)

    @pl.when(kstep == pl.num_programs(0) - 1)
    def _():
        # Fused BN bias + ReLU.
        h = jnp.maximum(acc_ref[...] + bg1_ref[...], 0.0)                   # (N, 512)
        # self.g[3]: Linear(512, 128)
        e = jnp.dot(h.astype(jnp.bfloat16), wg2_ref[...],
                    preferred_element_type=jnp.float32) + bg2_ref[...]      # (N, 128)
        e16 = e.astype(jnp.bfloat16)

        # ---- MultiHeadSelfAttention on the (1, N, 128) "sequence" (batch dim squeezed) ----
        # 1/sqrt(dk) is folded into wq in the wrapper.
        q = jnp.dot(e16, wq_ref[...], preferred_element_type=jnp.float32)   # (N, dim_k)
        k = jnp.dot(e16, wk_ref[...], preferred_element_type=jnp.float32)   # (N, dim_k)
        v = jnp.dot(e16, wv_ref[...], preferred_element_type=jnp.float32)   # (N, dim_v)

        n = q.shape[0]
        dk = DIM_K // N_HEADS
        dv = DIM_V // N_HEADS
        qh = jnp.transpose(q.reshape(n, N_HEADS, dk), (1, 0, 2))            # (H, N, dk)
        kh = jnp.transpose(k.reshape(n, N_HEADS, dk), (1, 0, 2))            # (H, N, dk)
        vh = jnp.transpose(v.reshape(n, N_HEADS, dv), (1, 0, 2))            # (H, N, dv)

        s = jnp.einsum('hnd,hmd->hnm', qh, kh,
                       preferred_element_type=jnp.float32)                  # (H, N, N)
        s = s - jnp.max(s, axis=-1, keepdims=True)
        p = jnp.exp(s)
        p = p * pl.reciprocal(jnp.sum(p, axis=-1, keepdims=True), approx=True)
        ah = jnp.einsum('hnm,hmd->hnd', p, vh,
                        preferred_element_type=jnp.float32)                 # (H, N, dv)
        att = jnp.transpose(ah, (1, 0, 2)).reshape(n, DIM_V)                # (N, 128)

        # ---- row-wise L2 normalization: attn = attn / ||attn||_2 (eps for safety) ----
        attn = att * jax.lax.rsqrt(jnp.sum(att * att, axis=-1, keepdims=True) + 1e-12)
        attn_out_ref[...] = attn

        # ---- self.linear head: 128 -> 128 -> 64 -> 32 -> cls_num (lane-padded to 128) ----
        o = jnp.dot(attn.astype(jnp.bfloat16), w1_ref[...],
                    preferred_element_type=jnp.float32) + b1_ref[...]
        o = jnp.dot(o.astype(jnp.bfloat16), w2_ref[...],
                    preferred_element_type=jnp.float32) + b2_ref[...]
        o = jnp.dot(o.astype(jnp.bfloat16), w3_ref[...],
                    preferred_element_type=jnp.float32) + b3_ref[...]
        o = jnp.dot(o.astype(jnp.bfloat16), w4_ref[...],
                    preferred_element_type=jnp.float32) + b4_ref[...]
        out_ref[...] = o


def transformer_contrastive(x, params):
    N = x.shape[0]

    # ---- backbone stub computed in XLA (not on the kernel's critical data path) ----
    # TODO(synk): real module uses a ResNet50/101/152 backbone; its class is not provided.
    pooled = jnp.mean(x.reshape(N, x.shape[1], -1), axis=-1)                 # (N, C)
    emb = (pooled @ params['wstub'] + params['bstub']).astype(jnp.bfloat16)  # (N, 2048)

    # Fold BatchNorm1d (eval mode, running stats) into wg1 + fused bias.
    scale = params['gamma'] * jax.lax.rsqrt(params['var'] + BN_EPS)          # (1, 512)
    wg1 = (params['wg1'] * scale).astype(jnp.bfloat16)                       # (2048, 512)
    bg1 = params['beta'] - params['mean'] * scale                            # (1, 512)

    # Fold attention scale 1/sqrt(dk) into wq.
    wq = (params['wq'] * (1.0 / math.sqrt(DIM_K // N_HEADS))).astype(jnp.bfloat16)

    # Pad the final classifier to a lane-dense 128-wide output (sliced after the call).
    w4p = jnp.zeros((32, OUT_PAD), jnp.float32).at[:, :CLS_NUM].set(params['w4'])
    b4p = jnp.zeros((1, OUT_PAD), jnp.float32).at[:, :CLS_NUM].set(params['b4'])

    bf16 = lambda a: a.astype(jnp.bfloat16)
    args = (
        emb, wg1, bg1,
        bf16(params['wg2']), params['bg2'],
        wq, bf16(params['wk']), bf16(params['wv']),
        bf16(params['w1']), params['b1'],
        bf16(params['w2']), params['b2'],
        bf16(params['w3']), params['b3'],
        bf16(w4p), b4p,
    )

    full = lambda shape: pl.BlockSpec(shape, lambda k: (0, 0))
    grid_spec = pltpu.PrefetchScalarGridSpec(
        num_scalar_prefetch=0,
        grid=(FEAT_DIM // TK,),
        in_specs=[
            pl.BlockSpec((N, TK), lambda k: (0, k)),        # emb, K-sliced
            pl.BlockSpec((TK, 512), lambda k: (k, 0)),      # wg1, K-sliced
            full((1, 512)),                                 # fused BN bias
            full((512, DIM_IN)), full((1, DIM_IN)),         # wg2, bg2
            full((DIM_IN, DIM_K)), full((DIM_IN, DIM_K)), full((DIM_IN, DIM_V)),  # wq, wk, wv
            full((DIM_V, DIM_V)), full((1, DIM_V)),         # w1, b1
            full((DIM_V, 64)), full((1, 64)),               # w2, b2
            full((64, 32)), full((1, 32)),                  # w3, b3
            full((32, OUT_PAD)), full((1, OUT_PAD)),        # w4 (padded), b4 (padded)
        ],
        out_specs=(pl.BlockSpec((N, DIM_V), lambda k: (0, 0)),
                   pl.BlockSpec((N, OUT_PAD), lambda k: (0, 0))),
        scratch_shapes=[pltpu.VMEM((N, 512), jnp.float32)],
    )

    attn, out_pad = pl.pallas_call(
        tc_kernel,
        out_shape=(jax.ShapeDtypeStruct((N, DIM_V), jnp.float32),
                   jax.ShapeDtypeStruct((N, OUT_PAD), jnp.float32)),
        grid_spec=grid_spec,
        compiler_params=pltpu.CompilerParams(
            dimension_semantics=("arbitrary",),
            vmem_limit_bytes=32 * 1024 * 1024),
    )(*args)
    return attn, out_pad[:, :CLS_NUM]


if __name__ == "__main__":
    key = jax.random.PRNGKey(0)
    keys = jax.random.split(key, 20)
    N, C, H, W = 8, 4, 16, 16
    x = jax.random.normal(keys[0], (N, C, H, W), jnp.float32)

    def w(k, shape, scale=0.02):
        return jax.random.normal(k, shape, jnp.float32) * scale

    params = dict(
        wstub=w(keys[1], (C, FEAT_DIM)),
        bstub=w(keys[2], (1, FEAT_DIM), 0.01),
        wg1=w(keys[3], (FEAT_DIM, 512)),
        gamma=jnp.ones((1, 512), jnp.float32),
        beta=jnp.zeros((1, 512), jnp.float32),
        mean=jnp.zeros((1, 512), jnp.float32),
        var=jnp.ones((1, 512), jnp.float32),
        wg2=w(keys[4], (512, DIM_IN)),
        bg2=w(keys[5], (1, DIM_IN), 0.01),
        wq=w(keys[6], (DIM_IN, DIM_K)),
        wk=w(keys[7], (DIM_IN, DIM_K)),
        wv=w(keys[8], (DIM_IN, DIM_V)),
        w1=w(keys[9], (DIM_V, DIM_V)), b1=w(keys[10], (1, DIM_V), 0.01),
        w2=w(keys[11], (DIM_V, 64)),   b2=w(keys[12], (1, 64), 0.01),
        w3=w(keys[13], (64, 32)),      b3=w(keys[14], (1, 32), 0.01),
        w4=w(keys[15], (32, CLS_NUM)), b4=w(keys[16], (1, CLS_NUM), 0.01),
    )

    attn, out = transformer_contrastive(x, params)
    jax.block_until_ready((attn, out))
    assert attn.shape == (N, DIM_V) and out.shape == (N, CLS_NUM)
    assert bool(jnp.all(jnp.isfinite(attn))) and bool(jnp.all(jnp.isfinite(out)))
    print("KERNEL_OK")
</pallas_src>

<mosaic_0001>
module attributes {stable_mosaic.version = 11 : i64} {
  func.func @tc_kernel(%arg0: i32, %arg1: memref<8x512xbf16, #tpu.memory_space<vmem>>, %arg2: memref<512x512xbf16, #tpu.memory_space<vmem>>, %arg3: memref<1x512xf32, #tpu.memory_space<vmem>>, %arg4: memref<512x128xbf16, #tpu.memory_space<vmem>>, %arg5: memref<1x128xf32, #tpu.memory_space<vmem>>, %arg6: memref<128x128xbf16, #tpu.memory_space<vmem>>, %arg7: memref<128x128xbf16, #tpu.memory_space<vmem>>, %arg8: memref<128x128xbf16, #tpu.memory_space<vmem>>, %arg9: memref<128x128xbf16, #tpu.memory_space<vmem>>, %arg10: memref<1x128xf32, #tpu.memory_space<vmem>>, %arg11: memref<128x64xbf16, #tpu.memory_space<vmem>>, %arg12: memref<1x64xf32, #tpu.memory_space<vmem>>, %arg13: memref<64x32xbf16, #tpu.memory_space<vmem>>, %arg14: memref<1x32xf32, #tpu.memory_space<vmem>>, %arg15: memref<32x128xbf16, #tpu.memory_space<vmem>>, %arg16: memref<1x128xf32, #tpu.memory_space<vmem>>, %arg17: memref<8x128xf32, #tpu.memory_space<vmem>>, %arg18: memref<8x128xf32, #tpu.memory_space<vmem>>, %arg19: memref<8x512xf32, #tpu.memory_space<vmem>>) attributes {dimension_semantics = [#tpu.dimension_semantics<arbitrary>], iteration_bounds = array<i64: 4>, scalar_prefetch = 0 : i64, scratch_operands = 1 : i64, tpu.core_type = #tpu.core_type<tc>, window_params = [{transform_indices = @transform_0, window_bounds = array<i64: 8, 512>}, {transform_indices = @transform_1, window_bounds = array<i64: 512, 512>}, {pipeline_mode = #tpu.pipeline_mode<synchronous>, transform_indices = @transform_2, window_bounds = array<i64: 1, 512>}, {pipeline_mode = #tpu.pipeline_mode<synchronous>, transform_indices = @transform_3, window_bounds = array<i64: 512, 128>}, {pipeline_mode = #tpu.pipeline_mode<synchronous>, transform_indices = @transform_4, window_bounds = array<i64: 1, 128>}, {pipeline_mode = #tpu.pipeline_mode<synchronous>, transform_indices = @transform_5, window_bounds = array<i64: 128, 128>}, {pipeline_mode = #tpu.pipeline_mode<synchronous>, transform_indices = @transform_6, window_bounds = array<i64: 128, 128>}, {pipeline_mode = #tpu.pipeline_mode<synchronous>, transform_indices = @transform_7, window_bounds = array<i64: 128, 128>}, {pipeline_mode = #tpu.pipeline_mode<synchronous>, transform_indices = @transform_8, window_bounds = array<i64: 128, 128>}, {pipeline_mode = #tpu.pipeline_mode<synchronous>, transform_indices = @transform_9, window_bounds = array<i64: 1, 128>}, {pipeline_mode = #tpu.pipeline_mode<synchronous>, transform_indices = @transform_10, window_bounds = array<i64: 128, 64>}, {pipeline_mode = #tpu.pipeline_mode<synchronous>, transform_indices = @transform_11, window_bounds = array<i64: 1, 64>}, {pipeline_mode = #tpu.pipeline_mode<synchronous>, transform_indices = @transform_12, window_bounds = array<i64: 64, 32>}, {pipeline_mode = #tpu.pipeline_mode<synchronous>, transform_indices = @transform_13, window_bounds = array<i64: 1, 32>}, {pipeline_mode = #tpu.pipeline_mode<synchronous>, transform_indices = @transform_14, window_bounds = array<i64: 32, 128>}, {pipeline_mode = #tpu.pipeline_mode<synchronous>, transform_indices = @transform_15, window_bounds = array<i64: 1, 128>}, {pipeline_mode = #tpu.pipeline_mode<synchronous>, transform_indices = @transform_16, window_bounds = array<i64: 8, 128>}, {pipeline_mode = #tpu.pipeline_mode<synchronous>, transform_indices = @transform_17, window_bounds = array<i64: 8, 128>}]} {
    %c0_i32 = arith.constant 0 : i32
    %0 = arith.cmpi eq, %arg0, %c0_i32 : i32
    %1 = arith.extui %0 : i1 to i32
    %c0_i32_0 = arith.constant 0 : i32
    %2 = arith.cmpi ne, %1, %c0_i32_0 : i32
    scf.if %2 {
      %cst_9 = arith.constant 0.000000e+00 : f32
      %12 = vector.broadcast %cst_9 : f32 to vector<8x512xf32>
      %c0_10 = arith.constant 0 : index
      %c0_11 = arith.constant 0 : index
      %13 = vector.load %arg19[%c0_10, %c0_11] : memref<8x512xf32, #tpu.memory_space<vmem>>, vector<8x512xf32>
      tpu.vector_store %arg19[%c0_10, %c0_11], %12 {strides = array<i32>} : memref<8x512xf32, #tpu.memory_space<vmem>>, vector<8x512xf32>,
    } else {
    }
    %c0 = arith.constant 0 : index
    %c0_1 = arith.constant 0 : index
    %3 = vector.load %arg19[%c0, %c0_1] : memref<8x512xf32, #tpu.memory_space<vmem>>, vector<8x512xf32>
    %c0_2 = arith.constant 0 : index
    %c0_3 = arith.constant 0 : index
    %4 = vector.load %arg1[%c0_2, %c0_3] : memref<8x512xbf16, #tpu.memory_space<vmem>>, vector<8x512xbf16>
    %c0_4 = arith.constant 0 : index
    %c0_5 = arith.constant 0 : index
    %5 = vector.load %arg2[%c0_4, %c0_5] : memref<512x512xbf16, #tpu.memory_space<vmem>>, vector<512x512xbf16>
    %cst = arith.constant dense<0.000000e+00> : vector<8x512xf32>
    %6 = tpu.matmul %4, %5, %cst {dimension_numbers = #tpu.dot_dimension_numbers<[1], [0], [0], [1], [0, 0, 1, 1], [], []>} : vector<8x512xbf16>, vector<512x512xbf16>, vector<8x512xf32> -> vector<8x512xf32>
    %7 = arith.addf %3, %6 : vector<8x512xf32>
    %c0_6 = arith.constant 0 : index
    %c0_7 = arith.constant 0 : index
    %8 = vector.load %arg19[%c0_6, %c0_7] : memref<8x512xf32, #tpu.memory_space<vmem>>, vector<8x512xf32>
    tpu.vector_store %arg19[%c0_6, %c0_7], %7 {strides = array<i32>} : memref<8x512xf32, #tpu.memory_space<vmem>>, vector<8x512xf32>,
    %c3_i32 = arith.constant 3 : i32
    %9 = arith.cmpi eq, %arg0, %c3_i32 : i32
    %10 = arith.extui %9 : i1 to i32
    %c0_i32_8 = arith.constant 0 : i32
    %11 = arith.cmpi ne, %10, %c0_i32_8 : i32
    scf.if %11 {
      %c0_9 = arith.constant 0 : index
      %c0_10 = arith.constant 0 : index
      %12 = vector.load %arg19[%c0_9, %c0_10] : memref<8x512xf32, #tpu.memory_space<vmem>>, vector<8x512xf32>
      %c0_11 = arith.constant 0 : index
      %c0_12 = arith.constant 0 : index
      %13 = vector.load %arg3[%c0_11, %c0_12] : memref<1x512xf32, #tpu.memory_space<vmem>>, vector<1x512xf32>
      %14 = vector.broadcast %13 : vector<1x512xf32> to vector<8x512xf32>
      %15 = arith.addf %12, %14 : vector<8x512xf32>
      %cst_13 = arith.constant 0.000000e+00 : f32
      %16 = vector.broadcast %cst_13 : f32 to vector<8x512xf32>
      %17 = arith.maximumf %15, %16 : vector<8x512xf32>
      %18 = arith.truncf %17 : vector<8x512xf32> to vector<8x512xbf16>
      %c0_14 = arith.constant 0 : index
      %c0_15 = arith.constant 0 : index
      %19 = vector.load %arg4[%c0_14, %c0_15] : memref<512x128xbf16, #tpu.memory_space<vmem>>, vector<512x128xbf16>
      %cst_16 = arith.constant dense<0.000000e+00> : vector<8x128xf32>
      %20 = tpu.matmul %18, %19, %cst_16 {dimension_numbers = #tpu.dot_dimension_numbers<[1], [0], [0], [1], [0, 0, 1, 1], [], []>} : vector<8x512xbf16>, vector<512x128xbf16>, vector<8x128xf32> -> vector<8x128xf32>
      %c0_17 = arith.constant 0 : index
      %c0_18 = arith.constant 0 : index
      %21 = vector.load %arg5[%c0_17, %c0_18] : memref<1x128xf32, #tpu.memory_space<vmem>>, vector<1x128xf32>
      %22 = vector.broadcast %21 : vector<1x128xf32> to vector<8x128xf32>
      %23 = arith.addf %20, %22 : vector<8x128xf32>
      %24 = arith.truncf %23 : vector<8x128xf32> to vector<8x128xbf16>
      %c0_19 = arith.constant 0 : index
      %c0_20 = arith.constant 0 : index
      %25 = vector.load %arg6[%c0_19, %c0_20] : memref<128x128xbf16, #tpu.memory_space<vmem>>, vector<128x128xbf16>
      %cst_21 = arith.constant dense<0.000000e+00> : vector<8x128xf32>
      %26 = tpu.matmul %24, %25, %cst_21 {dimension_numbers = #tpu.dot_dimension_numbers<[1], [0], [0], [1], [0, 0, 1, 1], [], []>} : vector<8x128xbf16>, vector<128x128xbf16>, vector<8x128xf32> -> vector<8x128xf32>
      %c0_22 = arith.constant 0 : index
      %c0_23 = arith.constant 0 : index
      %27 = vector.load %arg7[%c0_22, %c0_23] : memref<128x128xbf16, #tpu.memory_space<vmem>>, vector<128x128xbf16>
      %cst_24 = arith.constant dense<0.000000e+00> : vector<8x128xf32>
      %28 = tpu.matmul %24, %27, %cst_24 {dimension_numbers = #tpu.dot_dimension_numbers<[1], [0], [0], [1], [0, 0, 1, 1], [], []>} : vector<8x128xbf16>, vector<128x128xbf16>, vector<8x128xf32> -> vector<8x128xf32>
      %c0_25 = arith.constant 0 : index
      %c0_26 = arith.constant 0 : index
      %29 = vector.load %arg8[%c0_25, %c0_26] : memref<128x128xbf16, #tpu.memory_space<vmem>>, vector<128x128xbf16>
      %cst_27 = arith.constant dense<0.000000e+00> : vector<8x128xf32>
      %30 = tpu.matmul %24, %29, %cst_27 {dimension_numbers = #tpu.dot_dimension_numbers<[1], [0], [0], [1], [0, 0, 1, 1], [], []>} : vector<8x128xbf16>, vector<128x128xbf16>, vector<8x128xf32> -> vector<8x128xf32>
      %31 = vector.shape_cast %26 : vector<8x128xf32> to vector<8x8x16xf32>
      %32 = tpu.transpose %31, [1, 0, 2] : vector<8x8x16xf32> -> vector<8x8x16xf32>
      %33 = vector.shape_cast %28 : vector<8x128xf32> to vector<8x8x16xf32>
      %34 = tpu.transpose %33, [1, 0, 2] : vector<8x8x16xf32> -> vector<8x8x16xf32>
      %35 = vector.shape_cast %30 : vector<8x128xf32> to vector<8x8x16xf32>
      %36 = tpu.transpose %35, [1, 0, 2] : vector<8x8x16xf32> -> vector<8x8x16xf32>
      "tpu.trace_start"() <{level = 10 : i32, message = "hnd,hmd->hnm"}> : () -> ()
      %cst_28 = arith.constant dense<0.000000e+00> : vector<8x8x8xf32>
      %37 = tpu.matmul %32, %34, %cst_28 {dimension_numbers = #tpu.dot_dimension_numbers<[2], [2], [1], [1], [0, 0, 0, 1, 1, 1], [0], [0]>} : vector<8x8x16xf32>, vector<8x8x16xf32>, vector<8x8x8xf32> -> vector<8x8x8xf32>
      "tpu.trace_stop"() : () -> ()
      %cst_29 = arith.constant dense<0xFF800000> : vector<8x8xf32>
      %38 = vector.multi_reduction <maximumf>, %37, %cst_29 [2] : vector<8x8x8xf32> to vector<8x8xf32>
      %39 = vector.shape_cast %38 : vector<8x8xf32> to vector<8x8x1xf32>
      %40 = vector.broadcast %39 : vector<8x8x1xf32> to vector<8x8x8xf32>
      %41 = arith.subf %37, %40 : vector<8x8x8xf32>
      %42 = math.exp %41 : vector<8x8x8xf32>
      %cst_30 = arith.constant dense<0.000000e+00> : vector<8x8xf32>
      %43 = vector.multi_reduction <add>, %42, %cst_30 [2] : vector<8x8x8xf32> to vector<8x8xf32>
      %44 = vector.shape_cast %43 : vector<8x8xf32> to vector<8x8x1xf32>
      %45 = tpu.reciprocal %44 {approx = true} : vector<8x8x1xf32> -> vector<8x8x1xf32>
      %46 = vector.broadcast %45 : vector<8x8x1xf32> to vector<8x8x8xf32>
      %47 = arith.mulf %42, %46 : vector<8x8x8xf32>
      "tpu.trace_start"() <{level = 10 : i32, message = "hnm,hmd->hnd"}> : () -> ()
      %cst_31 = arith.constant dense<0.000000e+00> : vector<8x8x16xf32>
      %48 = tpu.matmul %47, %36, %cst_31 {dimension_numbers = #tpu.dot_dimension_numbers<[2], [1], [1], [2], [0, 0, 0, 1, 1, 2], [0], [0]>} : vector<8x8x8xf32>, vector<8x8x16xf32>, vector<8x8x16xf32> -> vector<8x8x16xf32>
      "tpu.trace_stop"() : () -> ()
      %49 = tpu.transpose %48, [1, 0, 2] : vector<8x8x16xf32> -> vector<8x8x16xf32>
      %50 = vector.shape_cast %49 : vector<8x8x16xf32> to vector<8x128xf32>
      %51 = arith.mulf %50, %50 : vector<8x128xf32>
      %cst_32 = arith.constant dense<0.000000e+00> : vector<8xf32>
      %52 = vector.multi_reduction <add>, %51, %cst_32 [1] : vector<8x128xf32> to vector<8xf32>
      %53 = vector.shape_cast %52 : vector<8xf32> to vector<8x1xf32>
      %cst_33 = arith.constant 9.99999996E-13 : f32
      %54 = vector.broadcast %cst_33 : f32 to vector<8x1xf32>
      %55 = arith.addf %53, %54 : vector<8x1xf32>
      %56 = math.rsqrt %55 : vector<8x1xf32>
      %57 = vector.broadcast %56 : vector<8x1xf32> to vector<8x128xf32>
      %58 = arith.mulf %50, %57 : vector<8x128xf32>
      %c0_34 = arith.constant 0 : index
      %c0_35 = arith.constant 0 : index
      %59 = vector.load %arg17[%c0_34, %c0_35] : memref<8x128xf32, #tpu.memory_space<vmem>>, vector<8x128xf32>
      tpu.vector_store %arg17[%c0_34, %c0_35], %58 {strides = array<i32>} : memref<8x128xf32, #tpu.memory_space<vmem>>, vector<8x128xf32>,
      %60 = arith.truncf %58 : vector<8x128xf32> to vector<8x128xbf16>
      %c0_36 = arith.constant 0 : index
      %c0_37 = arith.constant 0 : index
      %61 = vector.load %arg9[%c0_36, %c0_37] : memref<128x128xbf16, #tpu.memory_space<vmem>>, vector<128x128xbf16>
      %cst_38 = arith.constant dense<0.000000e+00> : vector<8x128xf32>
      %62 = tpu.matmul %60, %61, %cst_38 {dimension_numbers = #tpu.dot_dimension_numbers<[1], [0], [0], [1], [0, 0, 1, 1], [], []>} : vector<8x128xbf16>, vector<128x128xbf16>, vector<8x128xf32> -> vector<8x128xf32>
      %c0_39 = arith.constant 0 : index
      %c0_40 = arith.constant 0 : index
      %63 = vector.load %arg10[%c0_39, %c0_40] : memref<1x128xf32, #tpu.memory_space<vmem>>, vector<1x128xf32>
      %64 = vector.broadcast %63 : vector<1x128xf32> to vector<8x128xf32>
      %65 = arith.addf %62, %64 : vector<8x128xf32>
      %66 = arith.truncf %65 : vector<8x128xf32> to vector<8x128xbf16>
      %c0_41 = arith.constant 0 : index
      %c0_42 = arith.constant 0 : index
      %67 = vector.load %arg11[%c0_41, %c0_42] : memref<128x64xbf16, #tpu.memory_space<vmem>>, vector<128x64xbf16>
      %cst_43 = arith.constant dense<0.000000e+00> : vector<8x64xf32>
      %68 = tpu.matmul %66, %67, %cst_43 {dimension_numbers = #tpu.dot_dimension_numbers<[1], [0], [0], [1], [0, 0, 1, 1], [], []>} : vector<8x128xbf16>, vector<128x64xbf16>, vector<8x64xf32> -> vector<8x64xf32>
      %c0_44 = arith.constant 0 : index
      %c0_45 = arith.constant 0 : index
      %69 = vector.load %arg12[%c0_44, %c0_45] : memref<1x64xf32, #tpu.memory_space<vmem>>, vector<1x64xf32>
      %70 = vector.broadcast %69 : vector<1x64xf32> to vector<8x64xf32>
      %71 = arith.addf %68, %70 : vector<8x64xf32>
      %72 = arith.truncf %71 : vector<8x64xf32> to vector<8x64xbf16>
      %c0_46 = arith.constant 0 : index
      %c0_47 = arith.constant 0 : index
      %73 = vector.load %arg13[%c0_46, %c0_47] : memref<64x32xbf16, #tpu.memory_space<vmem>>, vector<64x32xbf16>
      %cst_48 = arith.constant dense<0.000000e+00> : vector<8x32xf32>
      %74 = tpu.matmul %72, %73, %cst_48 {dimension_numbers = #tpu.dot_dimension_numbers<[1], [0], [0], [1], [0, 0, 1, 1], [], []>} : vector<8x64xbf16>, vector<64x32xbf16>, vector<8x32xf32> -> vector<8x32xf32>
      %c0_49 = arith.constant 0 : index
      %c0_50 = arith.constant 0 : index
      %75 = vector.load %arg14[%c0_49, %c0_50] : memref<1x32xf32, #tpu.memory_space<vmem>>, vector<1x32xf32>
      %76 = vector.broadcast %75 : vector<1x32xf32> to vector<8x32xf32>
      %77 = arith.addf %74, %76 : vector<8x32xf32>
      %78 = arith.truncf %77 : vector<8x32xf32> to vector<8x32xbf16>
      %c0_51 = arith.constant 0 : index
      %c0_52 = arith.constant 0 : index
      %79 = vector.load %arg15[%c0_51, %c0_52] : memref<32x128xbf16, #tpu.memory_space<vmem>>, vector<32x128xbf16>
      %cst_53 = arith.constant dense<0.000000e+00> : vector<8x128xf32>
      %80 = tpu.matmul %78, %79, %cst_53 {dimension_numbers = #tpu.dot_dimension_numbers<[1], [0], [0], [1], [0, 0, 1, 1], [], []>} : vector<8x32xbf16>, vector<32x128xbf16>, vector<8x128xf32> -> vector<8x128xf32>
      %c0_54 = arith.constant 0 : index
      %c0_55 = arith.constant 0 : index
      %81 = vector.load %arg16[%c0_54, %c0_55] : memref<1x128xf32, #tpu.memory_space<vmem>>, vector<1x128xf32>
      %82 = vector.broadcast %81 : vector<1x128xf32> to vector<8x128xf32>
      %83 = arith.addf %80, %82 : vector<8x128xf32>
      %c0_56 = arith.constant 0 : index
      %c0_57 = arith.constant 0 : index
      %84 = vector.load %arg18[%c0_56, %c0_57] : memref<8x128xf32, #tpu.memory_space<vmem>>, vector<8x128xf32>
      tpu.vector_store %arg18[%c0_56, %c0_57], %83 {strides = array<i32>} : memref<8x128xf32, #tpu.memory_space<vmem>>, vector<8x128xf32>,
    } else {
    }
    return
  }
  func.func @transform_0(%arg0: i32) -> (i32, i32) {
    %c0_i32 = arith.constant 0 : i32
    %c0_i32_0 = arith.constant 0 : i32
    return %c0_i32, %arg0 : i32, i32
  }
  func.func @transform_1(%arg0: i32) -> (i32, i32) {
    %c0_i32 = arith.constant 0 : i32
    %c0_i32_0 = arith.constant 0 : i32
    return %arg0, %c0_i32 : i32, i32
  }
  func.func @transform_2(%arg0: i32) -> (i32, i32) {
    %c0_i32 = arith.constant 0 : i32
    %c0_i32_0 = arith.constant 0 : i32
    %c0_i32_1 = arith.constant 0 : i32
    return %c0_i32, %c0_i32_0 : i32, i32
  }
  func.func @transform_3(%arg0: i32) -> (i32, i32) {
    %c0_i32 = arith.constant 0 : i32
    %c0_i32_0 = arith.constant 0 : i32
    %c0_i32_1 = arith.constant 0 : i32
    return %c0_i32, %c0_i32_0 : i32, i32
  }
  func.func @transform_4(%arg0: i32) -> (i32, i32) {
    %c0_i32 = arith.constant 0 : i32
    %c0_i32_0 = arith.constant 0 : i32
    %c0_i32_1 = arith.constant 0 : i32
    return %c0_i32, %c0_i32_0 : i32, i32
  }
  func.func @transform_5(%arg0: i32) -> (i32, i32) {
    %c0_i32 = arith.constant 0 : i32
    %c0_i32_0 = arith.constant 0 : i32
    %c0_i32_1 = arith.constant 0 : i32
    return %c0_i32, %c0_i32_0 : i32, i32
  }
  func.func @transform_6(%arg0: i32) -> (i32, i32) {
    %c0_i32 = arith.constant 0 : i32
    %c0_i32_0 = arith.constant 0 : i32
    %c0_i32_1 = arith.constant 0 : i32
    return %c0_i32, %c0_i32_0 : i32, i32
  }
  func.func @transform_7(%arg0: i32) -> (i32, i32) {
    %c0_i32 = arith.constant 0 : i32
    %c0_i32_0 = arith.constant 0 : i32
    %c0_i32_1 = arith.constant 0 : i32
    return %c0_i32, %c0_i32_0 : i32, i32
  }
  func.func @transform_8(%arg0: i32) -> (i32, i32) {
    %c0_i32 = arith.constant 0 : i32
    %c0_i32_0 = arith.constant 0 : i32
    %c0_i32_1 = arith.constant 0 : i32
    return %c0_i32, %c0_i32_0 : i32, i32
  }
  func.func @transform_9(%arg0: i32) -> (i32, i32) {
    %c0_i32 = arith.constant 0 : i32
    %c0_i32_0 = arith.constant 0 : i32
    %c0_i32_1 = arith.constant 0 : i32
    return %c0_i32, %c0_i32_0 : i32, i32
  }
  func.func @transform_10(%arg0: i32) -> (i32, i32) {
    %c0_i32 = arith.constant 0 : i32
    %c0_i32_0 = arith.constant 0 : i32
    %c0_i32_1 = arith.constant 0 : i32
    return %c0_i32, %c0_i32_0 : i32, i32
  }
  func.func @transform_11(%arg0: i32) -> (i32, i32) {
    %c0_i32 = arith.constant 0 : i32
    %c0_i32_0 = arith.constant 0 : i32
    %c0_i32_1 = arith.constant 0 : i32
    return %c0_i32, %c0_i32_0 : i32, i32
  }
  func.func @transform_12(%arg0: i32) -> (i32, i32) {
    %c0_i32 = arith.constant 0 : i32
    %c0_i32_0 = arith.constant 0 : i32
    %c0_i32_1 = arith.constant 0 : i32
    return %c0_i32, %c0_i32_0 : i32, i32
  }
  func.func @transform_13(%arg0: i32) -> (i32, i32) {
    %c0_i32 = arith.constant 0 : i32
    %c0_i32_0 = arith.constant 0 : i32
    %c0_i32_1 = arith.constant 0 : i32
    return %c0_i32, %c0_i32_0 : i32, i32
  }
  func.func @transform_14(%arg0: i32) -> (i32, i32) {
    %c0_i32 = arith.constant 0 : i32
    %c0_i32_0 = arith.constant 0 : i32
    %c0_i32_1 = arith.constant 0 : i32
    return %c0_i32, %c0_i32_0 : i32, i32
  }
  func.func @transform_15(%arg0: i32) -> (i32, i32) {
    %c0_i32 = arith.constant 0 : i32
    %c0_i32_0 = arith.constant 0 : i32
    %c0_i32_1 = arith.constant 0 : i32
    return %c0_i32, %c0_i32_0 : i32, i32
  }
  func.func @transform_16(%arg0: i32) -> (i32, i32) {
    %c0_i32 = arith.constant 0 : i32
    %c0_i32_0 = arith.constant 0 : i32
    %c0_i32_1 = arith.constant 0 : i32
    return %c0_i32, %c0_i32_0 : i32, i32
  }
  func.func @transform_17(%arg0: i32) -> (i32, i32) {
    %c0_i32 = arith.constant 0 : i32
    %c0_i32_0 = arith.constant 0 : i32
    %c0_i32_1 = arith.constant 0 : i32
    return %c0_i32, %c0_i32_0 : i32, i32
  }
}

</mosaic_0001>

<llo_original>
// kernel: tpu_custom_call.1
$region0: #{tpu_custom_call.1}
  #allocation0 [shape = 'u32[]', space=smem, size = 0x4, offset = 0x4, fixed_abs, tag = 'smem constant byte address 0x4 - core index']
  #allocation1 [shape = 'u32[144,128]{1,0:T(1,128)}', space=vmem, size = 0x12000, scoped, tag = 'internal scratch']
  #allocation2 [shape = 'f32[8,512]{1,0:T(8,128)}', space=vmem, size = 0x4000, scoped, tag = 'scratch operand']
  %s0 = inlined_call_operand.hbm [shape: bf16[8,2048], index: 0, kind: input, shape index: {}]
  %s1 = inlined_call_operand.hbm [shape: bf16[2048,512], index: 1, kind: input, shape index: {}]
  %s2 = inlined_call_operand.hbm [shape: f32[1,512], index: 2, kind: input, shape index: {}]
  %s3 = inlined_call_operand.hbm [shape: bf16[512,128], index: 3, kind: input, shape index: {}]
  %s4 = inlined_call_operand.hbm [shape: f32[1,128], index: 4, kind: input, shape index: {}]
  %s5 = inlined_call_operand.hbm [shape: bf16[128,128], index: 5, kind: input, shape index: {}]
  %s6 = inlined_call_operand.hbm [shape: bf16[128,128], index: 6, kind: input, shape index: {}]
  %s7 = inlined_call_operand.hbm [shape: bf16[128,128], index: 7, kind: input, shape index: {}]
  %s8 = inlined_call_operand.hbm [shape: bf16[128,128], index: 8, kind: input, shape index: {}]
  %s9 = inlined_call_operand.hbm [shape: f32[1,128], index: 9, kind: input, shape index: {}]
  %s10 = inlined_call_operand.vmem [shape: bf16[128,64], index: 10, kind: input, shape index: {}]
  %s11 = inlined_call_operand.hbm [shape: f32[1,64], index: 11, kind: input, shape index: {}]
  %s12 = inlined_call_operand.vmem [shape: bf16[64,32], index: 12, kind: input, shape index: {}]
  %s13 = inlined_call_operand.hbm [shape: f32[1,32], index: 13, kind: input, shape index: {}]
  %s14 = inlined_call_operand.hbm [shape: bf16[32,128], index: 14, kind: input, shape index: {}]
  %s15 = inlined_call_operand.hbm [shape: f32[1,128], index: 15, kind: input, shape index: {}]
  %s16 = inlined_call_operand.hbm [shape: f32[8,128], index: 16, kind: output, shape index: {0}]
  %s17 = inlined_call_operand.hbm [shape: f32[8,128], index: 17, kind: output, shape index: {1}]
  %18 = xla_tuple %s16, %s17
  %s19 = sld [smem:[#allocation0]]
  $region169: #{tpu_custom_call.1} parent=0
    _
  %s21 = ssub.s32 1, %s19
  %s22 = scalar_select 0, %s21, %s19
  $region1: #{tpu_custom_call.1} parent=0
    #allocation3 [shape = 'u8[16384]{0}', space=vmem, size = 0x4000, scoped, tag = 'input window, operand 0']
    #allocation4 [shape = 's32[2]{0}', space=sflag, size = 0x8, scoped, tag = 'scoped memory for tpu_custom_call.1']
    #allocation5 [shape = 's32[2]{0}', space=sflag, size = 0x8, scoped, tag = 'scoped memory for tpu_custom_call.1']
    #allocation6 [shape = 'u8[1048576]{0}', space=vmem, size = 0x100000, scoped, tag = 'input window, operand 1']
    #allocation7 [shape = 's32[2]{0}', space=sflag, size = 0x8, scoped, tag = 'scoped memory for tpu_custom_call.1']
    #allocation8 [shape = 'u8[2048]{0}', space=vmem, size = 0x800, scoped, tag = 'input window, operand 2, single buffered']
    #allocation9 [shape = 'u8[131072]{0}', space=vmem, size = 0x20000, scoped, tag = 'input window, operand 3, single buffered']
    #allocation10 [shape = 's32[1]{0}', space=sflag, size = 0x4, scoped, tag = 'scoped memory for tpu_custom_call.1']
    #allocation11 [shape = 'u8[512]{0}', space=vmem, size = 0x400, scoped, tag = 'input window, operand 4, single buffered']
    #allocation12 [shape = 'u8[32768]{0}', space=vmem, size = 0x8000, scoped, tag = 'input window, operand 5, single buffered']
    #allocation13 [shape = 's32[1]{0}', space=sflag, size = 0x4, scoped, tag = 'scoped memory for tpu_custom_call.1']
    #allocation14 [shape = 'u8[32768]{0}', space=vmem, size = 0x8000, scoped, tag = 'input window, operand 6, single buffered']
    #allocation15 [shape = 'u8[32768]{0}', space=vmem, size = 0x8000, scoped, tag = 'input window, operand 7, single buffered']
    #allocation16 [shape = 's32[1]{0}', space=sflag, size = 0x4, scoped, tag = 'scoped memory for tpu_custom_call.1']
    #allocation17 [shape = 'u8[32768]{0}', space=vmem, size = 0x8000, scoped, tag = 'input window, operand 8, single buffered']
    #allocation18 [shape = 'u8[512]{0}', space=vmem, size = 0x400, scoped, tag = 'input window, operand 9, single buffered']
    #allocation19 [shape = 's32[1]{0}', space=sflag, size = 0x4, scoped, tag = 'scoped memory for tpu_custom_call.1']
    #allocation20 [shape = 'u8[512]{0}', space=vmem, size = 0x400, scoped, tag = 'input window, operand 11, single buffered']
    #allocation21 [shape = 'u8[512]{0}', space=vmem, size = 0x400, scoped, tag = 'input window, operand 13, single buffered']
    #allocation22 [shape = 's32[1]{0}', space=sflag, size = 0x4, scoped, tag = 'scoped memory for tpu_custom_call.1']
    #allocation23 [shape = 'u8[8192]{0}', space=vmem, size = 0x2000, scoped, tag = 'input window, operand 14, single buffered']
    #allocation24 [shape = 'u8[512]{0}', space=vmem, size = 0x400, scoped, tag = 'input window, operand 15, single buffered']
    #allocation25 [shape = 's32[1]{0}', space=sflag, size = 0x4, scoped, tag = 'scoped memory for tpu_custom_call.1']
    #allocation26 [shape = 'u8[4096]{0}', space=vmem, size = 0x1000, scoped, tag = 'output window, operand 0, single buffered']
    #allocation27 [shape = 'u8[4096]{0}', space=vmem, size = 0x1000, scoped, tag = 'output window, operand 1, single buffered']
    #allocation28 [shape = 's32[1]{0}', space=sflag, size = 0x4, scoped, tag = 'scoped memory for tpu_custom_call.1']
    %23 = vsyncpa [#allocation4], 0
    %s24 = scalar_lea.sflag [#allocation4], 1
    %25 = vsyncpa %s24, 0
    %26 = vsyncpa [#allocation7], 0
    %s27 = scalar_lea.sflag [#allocation7], 1
    %28 = vsyncpa %s27, 0
    %29 = vsyncpa [#allocation10], 0
    %30 = vsyncpa [#allocation13], 0
    %31 = vsyncpa [#allocation16], 0
    %32 = vsyncpa [#allocation19], 0
    %33 = vsyncpa [#allocation22], 0
    %34 = vsyncpa [#allocation25], 0
    %35 = vsyncpa [#allocation5], 0
    %36 = vsyncpa [#allocation28], 0
    loop: start=0, step=1, limit=6
    $region2: #{tpu_custom_call.1} parent=1 // loop_pre_header
      _
    $region3: #{tpu_custom_call.1} parent=1 // loop_header
      %s38 = sphi 0, %s42
      %p39 = scmp.ge.s32.totalorder %s38, 6
      %s48 = sphi 0, %s50
      %s51 = sphi 0, %s48
      %s52 = sphi 0, %s51
      %s68 = sphi 0, %s52
      %s74 = sphi 0, %s76
      %s77 = sphi 0, %s74
      %s78 = sphi 0, %s77
      %s94 = sphi 0, %s78
      %s98 = sphi 0, %s98
      %s100 = sphi 0, %s98
      %s101 = sphi 0, %s100
      %s115 = sphi 0, %s101
      %s119 = sphi 0, %s119
      %s121 = sphi 0, %s119
      %s122 = sphi 0, %s121
      %s136 = sphi 0, %s122
      %s140 = sphi 0, %s140
      %s142 = sphi 0, %s140
      %s143 = sphi 0, %s142
      %s157 = sphi 0, %s143
      %s161 = sphi 0, %s161
      %s163 = sphi 0, %s161
      %s164 = sphi 0, %s163
      %s178 = sphi 0, %s164
      %s182 = sphi 0, %s182
      %s184 = sphi 0, %s182
      %s185 = sphi 0, %s184
      %s199 = sphi 0, %s185
      %s203 = sphi 0, %s203
      %s205 = sphi 0, %s203
      %s206 = sphi 0, %s205
      %s220 = sphi 0, %s206
      %s224 = sphi 0, %s224
      %s226 = sphi 0, %s224
      %s227 = sphi 0, %s226
      %s241 = sphi 0, %s227
      %s245 = sphi 0, %s245
      %s247 = sphi 0, %s245
      %s248 = sphi 0, %s247
      %s262 = sphi 0, %s248
      %s266 = sphi 0, %s266
      %s268 = sphi 0, %s266
      %s269 = sphi 0, %s268
      %s283 = sphi 0, %s269
      %s287 = sphi 0, %s287
      %s289 = sphi 0, %s287
      %s290 = sphi 0, %s289
      %s304 = sphi 0, %s290
      %s308 = sphi 0, %s308
      %s310 = sphi 0, %s308
      %s311 = sphi 0, %s310
      %s325 = sphi 0, %s311
      %s329 = sphi 0, %s329
      %s331 = sphi 0, %s329
      %s332 = sphi 0, %s331
      %s346 = sphi 0, %s332
      %s350 = sphi 0, %s350
      %s352 = sphi 0, %s350
      %s353 = sphi 0, %s352
      %s367 = sphi 0, %s353
      %s371 = sphi 0, %s371
      %s373 = sphi 0, %s371
      %s374 = sphi 0, %s373
      %s388 = sphi 0, %s374
      %s392 = sphi 0, %s392
      %s394 = sphi 0, %s392
      %s395 = sphi 0, %s394
      %s409 = sphi 0, %s395
      %s413 = sphi 0, %s413
      %s415 = sphi 0, %s413
      %s416 = sphi 0, %s415
      %s430 = sphi 0, %s416
    $region4: #{tpu_custom_call.1} parent=1 // loop_header_branch
      %41 = sbr.rel (%p39) target = $region8
    $region5: #{tpu_custom_call.1} parent=1 // loop_body
      %s43 = ssub.s32 %s38, 1
      %s44 = ssub.s32 %s38, 2
      %s45 = sadd.s32 %s38, 1
      %s46 = ssub.s32 %s38, %s45
      %p47 = scmp.eq.s32.totalorder %s46, 0
      %s49 = sadd.s32 %s48, 1
      %s50 = scalar_select %p47, %s48, %s49
      %p53 = pneg %p47
      %p54 = scmp.eq.s32.totalorder %s38, 3
      %p55 = por %p53, %p54
      %p56 = scmp.ne.s32.totalorder %s48, %s51
      %p57 = scmp.eq.s32.totalorder %s38, 0
      %p58 = por %p56, %p57
      %p59 = scmp.ne.s32.totalorder %s48, %s51
      %p60 = scmp.eq.s32.totalorder %s43, 3
      %p61 = por %p59, %p60
      %p62 = scmp.ne.s32.totalorder %s51, %s52
      %p63 = scmp.eq.s32.totalorder %s43, 0
      %p64 = por %p62, %p63
      %p65 = scmp.ne.s32.totalorder %s51, %s52
      %p66 = scmp.eq.s32.totalorder %s44, 3
      %p67 = por %p65, %p66
      %p69 = scmp.ne.s32.totalorder %s52, %s68
      %p70 = scmp.eq.s32.totalorder %s44, 0
      %p71 = por %p69, %p70
      %s72 = ssub.s32 %s38, %s45
      %p73 = scmp.eq.s32.totalorder %s72, 0
      %s75 = sadd.s32 %s74, 1
      %s76 = scalar_select %p73, %s74, %s75
      %p79 = pneg %p73
      %p80 = scmp.eq.s32.totalorder %s38, 3
      %p81 = por %p79, %p80
      %p82 = scmp.ne.s32.totalorder %s74, %s77
      %p83 = scmp.eq.s32.totalorder %s38, 0
      %p84 = por %p82, %p83
      %p85 = scmp.ne.s32.totalorder %s74, %s77
      %p86 = scmp.eq.s32.totalorder %s43, 3
      %p87 = por %p85, %p86
      %p88 = scmp.ne.s32.totalorder %s77, %s78
      %p89 = scmp.eq.s32.totalorder %s43, 0
      %p90 = por %p88, %p89
      %p91 = scmp.ne.s32.totalorder %s77, %s78
      %p92 = scmp.eq.s32.totalorder %s44, 3
      %p93 = por %p91, %p92
      %p95 = scmp.ne.s32.totalorder %s78, %s94
      %p96 = scmp.eq.s32.totalorder %s44, 0
      %p97 = por %p95, %p96
      %s99 = sadd.s32 %s98, 1
      %p102 = scmp.eq.s32.totalorder %s38, 3
      %p103 = scmp.ne.s32.totalorder %s98, %s100
      %p104 = scmp.eq.s32.totalorder %s38, 0
      %p105 = por %p103, %p104
      %p106 = scmp.ne.s32.totalorder %s98, %s100
      %p107 = scmp.eq.s32.totalorder %s43, 3
      %p108 = por %p106, %p107
      %p109 = scmp.ne.s32.totalorder %s100, %s101
      %p110 = scmp.eq.s32.totalorder %s43, 0
      %p111 = por %p109, %p110
      %p112 = scmp.ne.s32.totalorder %s100, %s101
      %p113 = scmp.eq.s32.totalorder %s44, 3
      %p114 = por %p112, %p113
      %p116 = scmp.ne.s32.totalorder %s101, %s115
      %p117 = scmp.eq.s32.totalorder %s44, 0
      %p118 = por %p116, %p117
      %s120 = sadd.s32 %s119, 1
      %p123 = scmp.eq.s32.totalorder %s38, 3
      %p124 = scmp.ne.s32.totalorder %s119, %s121
      %p125 = scmp.eq.s32.totalorder %s38, 0
      %p126 = por %p124, %p125
      %p127 = scmp.ne.s32.totalorder %s119, %s121
      %p128 = scmp.eq.s32.totalorder %s43, 3
      %p129 = por %p127, %p128
      %p130 = scmp.ne.s32.totalorder %s121, %s122
      %p131 = scmp.eq.s32.totalorder %s43, 0
      %p132 = por %p130, %p131
      %p133 = scmp.ne.s32.totalorder %s121, %s122
      %p134 = scmp.eq.s32.totalorder %s44, 3
      %p135 = por %p133, %p134
      %p137 = scmp.ne.s32.totalorder %s122, %s136
      %p138 = scmp.eq.s32.totalorder %s44, 0
      %p139 = por %p137, %p138
      %s141 = sadd.s32 %s140, 1
      %p144 = scmp.eq.s32.totalorder %s38, 3
      %p145 = scmp.ne.s32.totalorder %s140, %s142
      %p146 = scmp.eq.s32.totalorder %s38, 0
      %p147 = por %p145, %p146
      %p148 = scmp.ne.s32.totalorder %s140, %s142
      %p149 = scmp.eq.s32.totalorder %s43, 3
      %p150 = por %p148, %p149
      %p151 = scmp.ne.s32.totalorder %s142, %s143
      %p152 = scmp.eq.s32.totalorder %s43, 0
      %p153 = por %p151, %p152
      %p154 = scmp.ne.s32.totalorder %s142, %s143
      %p155 = scmp.eq.s32.totalorder %s44, 3
      %p156 = por %p154, %p155
      %p158 = scmp.ne.s32.totalorder %s143, %s157
      %p159 = scmp.eq.s32.totalorder %s44, 0
      %p160 = por %p158, %p159
      %s162 = sadd.s32 %s161, 1
      %p165 = scmp.eq.s32.totalorder %s38, 3
      %p166 = scmp.ne.s32.totalorder %s161, %s163
      %p167 = scmp.eq.s32.totalorder %s38, 0
      %p168 = por %p166, %p167
      %p169 = scmp.ne.s32.totalorder %s161, %s163
      %p170 = scmp.eq.s32.totalorder %s43, 3
      %p171 = por %p169, %p170
      %p172 = scmp.ne.s32.totalorder %s163, %s164
      %p173 = scmp.eq.s32.totalorder %s43, 0
      %p174 = por %p172, %p173
      %p175 = scmp.ne.s32.totalorder %s163, %s164
      %p176 = scmp.eq.s32.totalorder %s44, 3
      %p177 = por %p175, %p176
      %p179 = scmp.ne.s32.totalorder %s164, %s178
      %p180 = scmp.eq.s32.totalorder %s44, 0
      %p181 = por %p179, %p180
      %s183 = sadd.s32 %s182, 1
      %p186 = scmp.eq.s32.totalorder %s38, 3
      %p187 = scmp.ne.s32.totalorder %s182, %s184
      %p188 = scmp.eq.s32.totalorder %s38, 0
      %p189 = por %p187, %p188
      %p190 = scmp.ne.s32.totalorder %s182, %s184
      %p191 = scmp.eq.s32.totalorder %s43, 3
      %p192 = por %p190, %p191
      %p193 = scmp.ne.s32.totalorder %s184, %s185
      %p194 = scmp.eq.s32.totalorder %s43, 0
      %p195 = por %p193, %p194
      %p196 = scmp.ne.s32.totalorder %s184, %s185
      %p197 = scmp.eq.s32.totalorder %s44, 3
      %p198 = por %p196, %p197
      %p200 = scmp.ne.s32.totalorder %s185, %s199
      %p201 = scmp.eq.s32.totalorder %s44, 0
      %p202 = por %p200, %p201
      %s204 = sadd.s32 %s203, 1
      %p207 = scmp.eq.s32.totalorder %s38, 3
      %p208 = scmp.ne.s32.totalorder %s203, %s205
      %p209 = scmp.eq.s32.totalorder %s38, 0
      %p210 = por %p208, %p209
      %p211 = scmp.ne.s32.totalorder %s203, %s205
      %p212 = scmp.eq.s32.totalorder %s43, 3
      %p213 = por %p211, %p212
      %p214 = scmp.ne.s32.totalorder %s205, %s206
      %p215 = scmp.eq.s32.totalorder %s43, 0
      %p216 = por %p214, %p215
      %p217 = scmp.ne.s32.totalorder %s205, %s206
      %p218 = scmp.eq.s32.totalorder %s44, 3
      %p219 = por %p217, %p218
      %p221 = scmp.ne.s32.totalorder %s206, %s220
      %p222 = scmp.eq.s32.totalorder %s44, 0
      %p223 = por %p221, %p222
      %s225 = sadd.s32 %s224, 1
      %p228 = scmp.eq.s32.totalorder %s38, 3
      %p229 = scmp.ne.s32.totalorder %s224, %s226
      %p230 = scmp.eq.s32.totalorder %s38, 0
      %p231 = por %p229, %p230
      %p232 = scmp.ne.s32.totalorder %s224, %s226
      %p233 = scmp.eq.s32.totalorder %s43, 3
      %p234 = por %p232, %p233
      %p235 = scmp.ne.s32.totalorder %s226, %s227
      %p236 = scmp.eq.s32.totalorder %s43, 0
      %p237 = por %p235, %p236
      %p238 = scmp.ne.s32.totalorder %s226, %s227
      %p239 = scmp.eq.s32.totalorder %s44, 3
      %p240 = por %p238, %p239
      %p242 = scmp.ne.s32.totalorder %s227, %s241
      %p243 = scmp.eq.s32.totalorder %s44, 0
      %p244 = por %p242, %p243
      %s246 = sadd.s32 %s245, 1
      %p249 = scmp.eq.s32.totalorder %s38, 3
      %p250 = scmp.ne.s32.totalorder %s245, %s247
      %p251 = scmp.eq.s32.totalorder %s38, 0
      %p252 = por %p250, %p251
      %p253 = scmp.ne.s32.totalorder %s245, %s247
      %p254 = scmp.eq.s32.totalorder %s43, 3
      %p255 = por %p253, %p254
      %p256 = scmp.ne.s32.totalorder %s247, %s248
      %p257 = scmp.eq.s32.totalorder %s43, 0
      %p258 = por %p256, %p257
      %p259 = scmp.ne.s32.totalorder %s247, %s248
      %p260 = scmp.eq.s32.totalorder %s44, 3
      %p261 = por %p259, %p260
      %p263 = scmp.ne.s32.totalorder %s248, %s262
      %p264 = scmp.eq.s32.totalorder %s44, 0
      %p265 = por %p263, %p264
      %s267 = sadd.s32 %s266, 1
      %p270 = scmp.eq.s32.totalorder %s38, 3
      %p271 = scmp.ne.s32.totalorder %s266, %s268
      %p272 = scmp.eq.s32.totalorder %s38, 0
      %p273 = por %p271, %p272
      %p274 = scmp.ne.s32.totalorder %s266, %s268
      %p275 = scmp.eq.s32.totalorder %s43, 3
      %p276 = por %p274, %p275
      %p277 = scmp.ne.s32.totalorder %s268, %s269
      %p278 = scmp.eq.s32.totalorder %s43, 0
      %p279 = por %p277, %p278
      %p280 = scmp.ne.s32.totalorder %s268, %s269
      %p281 = scmp.eq.s32.totalorder %s44, 3
      %p282 = por %p280, %p281
      %p284 = scmp.ne.s32.totalorder %s269, %s283
      %p285 = scmp.eq.s32.totalorder %s44, 0
      %p286 = por %p284, %p285
      %s288 = sadd.s32 %s287, 1
      %p291 = scmp.eq.s32.totalorder %s38, 3
      %p292 = scmp.ne.s32.totalorder %s287, %s289
      %p293 = scmp.eq.s32.totalorder %s38, 0
      %p294 = por %p292, %p293
      %p295 = scmp.ne.s32.totalorder %s287, %s289
      %p296 = scmp.eq.s32.totalorder %s43, 3
      %p297 = por %p295, %p296
      %p298 = scmp.ne.s32.totalorder %s289, %s290
      %p299 = scmp.eq.s32.totalorder %s43, 0
      %p300 = por %p298, %p299
      %p301 = scmp.ne.s32.totalorder %s289, %s290
      %p302 = scmp.eq.s32.totalorder %s44, 3
      %p303 = por %p301, %p302
      %p305 = scmp.ne.s32.totalorder %s290, %s304
      %p306 = scmp.eq.s32.totalorder %s44, 0
      %p307 = por %p305, %p306
      %s309 = sadd.s32 %s308, 1
      %p312 = scmp.eq.s32.totalorder %s38, 3
      %p313 = scmp.ne.s32.totalorder %s308, %s310
      %p314 = scmp.eq.s32.totalorder %s38, 0
      %p315 = por %p313, %p314
      %p316 = scmp.ne.s32.totalorder %s308, %s310
      %p317 = scmp.eq.s32.totalorder %s43, 3
      %p318 = por %p316, %p317
      %p319 = scmp.ne.s32.totalorder %s310, %s311
      %p320 = scmp.eq.s32.totalorder %s43, 0
      %p321 = por %p319, %p320
      %p322 = scmp.ne.s32.totalorder %s310, %s311
      %p323 = scmp.eq.s32.totalorder %s44, 3
      %p324 = por %p322, %p323
      %p326 = scmp.ne.s32.totalorder %s311, %s325
      %p327 = scmp.eq.s32.totalorder %s44, 0
      %p328 = por %p326, %p327
      %s330 = sadd.s32 %s329, 1
      %p333 = scmp.eq.s32.totalorder %s38, 3
      %p334 = scmp.ne.s32.totalorder %s329, %s331
      %p335 = scmp.eq.s32.totalorder %s38, 0
      %p336 = por %p334, %p335
      %p337 = scmp.ne.s32.totalorder %s329, %s331
      %p338 = scmp.eq.s32.totalorder %s43, 3
      %p339 = por %p337, %p338
      %p340 = scmp.ne.s32.totalorder %s331, %s332
      %p341 = scmp.eq.s32.totalorder %s43, 0
      %p342 = por %p340, %p341
      %p343 = scmp.ne.s32.totalorder %s331, %s332
      %p344 = scmp.eq.s32.totalorder %s44, 3
      %p345 = por %p343, %p344
      %p347 = scmp.ne.s32.totalorder %s332, %s346
      %p348 = scmp.eq.s32.totalorder %s44, 0
      %p349 = por %p347, %p348
      %s351 = sadd.s32 %s350, 1
      %p354 = scmp.eq.s32.totalorder %s38, 3
      %p355 = scmp.ne.s32.totalorder %s350, %s352
      %p356 = scmp.eq.s32.totalorder %s38, 0
      %p357 = por %p355, %p356
      %p358 = scmp.ne.s32.totalorder %s350, %s352
      %p359 = scmp.eq.s32.totalorder %s43, 3
      %p360 = por %p358, %p359
      %p361 = scmp.ne.s32.totalorder %s352, %s353
      %p362 = scmp.eq.s32.totalorder %s43, 0
      %p363 = por %p361, %p362
      %p364 = scmp.ne.s32.totalorder %s352, %s353
      %p365 = scmp.eq.s32.totalorder %s44, 3
      %p366 = por %p364, %p365
      %p368 = scmp.ne.s32.totalorder %s353, %s367
      %p369 = scmp.eq.s32.totalorder %s44, 0
      %p370 = por %p368, %p369
      %s372 = sadd.s32 %s371, 1
      %p375 = scmp.eq.s32.totalorder %s38, 3
      %p376 = scmp.ne.s32.totalorder %s371, %s373
      %p377 = scmp.eq.s32.totalorder %s38, 0
      %p378 = por %p376, %p377
      %p379 = scmp.ne.s32.totalorder %s371, %s373
      %p380 = scmp.eq.s32.totalorder %s43, 3
      %p381 = por %p379, %p380
      %p382 = scmp.ne.s32.totalorder %s373, %s374
      %p383 = scmp.eq.s32.totalorder %s43, 0
      %p384 = por %p382, %p383
      %p385 = scmp.ne.s32.totalorder %s373, %s374
      %p386 = scmp.eq.s32.totalorder %s44, 3
      %p387 = por %p385, %p386
      %p389 = scmp.ne.s32.totalorder %s374, %s388
      %p390 = scmp.eq.s32.totalorder %s44, 0
      %p391 = por %p389, %p390
      %s393 = sadd.s32 %s392, 1
      %p396 = scmp.eq.s32.totalorder %s38, 3
      %p397 = scmp.ne.s32.totalorder %s392, %s394
      %p398 = scmp.eq.s32.totalorder %s38, 0
      %p399 = por %p397, %p398
      %p400 = scmp.ne.s32.totalorder %s392, %s394
      %p401 = scmp.eq.s32.totalorder %s43, 3
      %p402 = por %p400, %p401
      %p403 = scmp.ne.s32.totalorder %s394, %s395
      %p404 = scmp.eq.s32.totalorder %s43, 0
      %p405 = por %p403, %p404
      %p406 = scmp.ne.s32.totalorder %s394, %s395
      %p407 = scmp.eq.s32.totalorder %s44, 3
      %p408 = por %p406, %p407
      %p410 = scmp.ne.s32.totalorder %s395, %s409
      %p411 = scmp.eq.s32.totalorder %s44, 0
      %p412 = por %p410, %p411
      %s414 = sadd.s32 %s413, 1
      %p417 = scmp.eq.s32.totalorder %s38, 3
      %p418 = scmp.ne.s32.totalorder %s413, %s415
      %p419 = scmp.eq.s32.totalorder %s38, 0
      %p420 = por %p418, %p419
      %p421 = scmp.ne.s32.totalorder %s413, %s415
      %p422 = scmp.eq.s32.totalorder %s43, 3
      %p423 = por %p421, %p422
      %p424 = scmp.ne.s32.totalorder %s415, %s416
      %p425 = scmp.eq.s32.totalorder %s43, 0
      %p426 = por %p424, %p425
      %p427 = scmp.ne.s32.totalorder %s415, %s416
      %p428 = scmp.eq.s32.totalorder %s44, 3
      %p429 = por %p427, %p428
      %p431 = scmp.ne.s32.totalorder %s416, %s430
      %p432 = scmp.eq.s32.totalorder %s44, 0
      %p433 = por %p431, %p432
      %p434 = scmp.le.s32.totalorder 1, %s38
      %p435 = scmp.lt.s32.totalorder %s38, 5
      %p436 = pnand %p434, %p435
      %p437 = pneg %p436
      // Predicated region
      $region9: #{tpu_custom_call.1} parent=5 // pred_check
        _
      $region10: #{tpu_custom_call.1} parent=5 // pred_check_branch
        %439 = sbr.rel (%p436) target = $region12
      $region11: #{tpu_custom_call.1} parent=5 // pred_region
        %s440 = ssub.s32 %s38, 1
        // Predicated region
        $region13: #{tpu_custom_call.1} parent=11 // pred_check
          %p441 = pneg %p111
        $region14: #{tpu_custom_call.1} parent=11 // pred_check_branch
          %443 = sbr.rel (%p441) target = $region16
        $region15: #{tpu_custom_call.1} parent=11 // pred_region
          %s445 = ssub.s32 64, 64
          %446 = vsyncadd [#allocation7], %s445
          %s448 = sshll.u32 [#allocation8], 4
          %s449 = int_to_ptr.vmem [resolvable:$true] %s448
          %451 = dma.hbm_to_vmem [thread:$0]  %s2, 64, %s449, [#allocation7]
        $region16: #{tpu_custom_call.1} parent=11 // pred_fallthru
          _
        // Predicated region
        $region17: #{tpu_custom_call.1} parent=11 // pred_check
          %p452 = pneg %p132
        $region18: #{tpu_custom_call.1} parent=11 // pred_check_branch
          %454 = sbr.rel (%p452) target = $region20
        $region19: #{tpu_custom_call.1} parent=11 // pred_region
          %s456 = ssub.s32 4096, 4096
          %457 = vsyncadd [#allocation10], %s456
          %s458 = sshll.u32 [#allocation9], 4
          %s459 = int_to_ptr.vmem [resolvable:$true] %s458
          %464 = dma.hbm_to_vmem [thread:$0]  %s3, 4096, %s459, [#allocation10], 64, 64, 4
        $region20: #{tpu_custom_call.1} parent=11 // pred_fallthru
          _
        // Predicated region
        $region21: #{tpu_custom_call.1} parent=11 // pred_check
          %p465 = pneg %p153
        $region22: #{tpu_custom_call.1} parent=11 // pred_check_branch
          %467 = sbr.rel (%p465) target = $region24
        $region23: #{tpu_custom_call.1} parent=11 // pred_region
          %s469 = ssub.s32 16, 16
          %470 = vsyncadd [#allocation10], %s469
          %s472 = sshll.u32 [#allocation11], 4
          %s473 = int_to_ptr.vmem [resolvable:$true] %s472
          %475 = dma.hbm_to_vmem [thread:$0]  %s4, 16, %s473, [#allocation10]
        $region24: #{tpu_custom_call.1} parent=11 // pred_fallthru
          _
        // Predicated region
        $region25: #{tpu_custom_call.1} parent=11 // pred_check
          %p476 = pneg %p174
        $region26: #{tpu_custom_call.1} parent=11 // pred_check_branch
          %478 = sbr.rel (%p476) target = $region28
        $region27: #{tpu_custom_call.1} parent=11 // pred_region
          %s480 = ssub.s32 1024, 1024
          %481 = vsyncadd [#allocation13], %s480
          %s482 = sshll.u32 [#allocation12], 4
          %s483 = int_to_ptr.vmem [resolvable:$true] %s482
          %488 = dma.hbm_to_vmem [thread:$0]  %s5, 1024, %s483, [#allocation13], 64, 64, 4
        $region28: #{tpu_custom_call.1} parent=11 // pred_fallthru
          _
        // Predicated region
        $region29: #{tpu_custom_call.1} parent=11 // pred_check
          %p489 = pneg %p195
        $region30: #{tpu_custom_call.1} parent=11 // pred_check_branch
          %491 = sbr.rel (%p489) target = $region32
        $region31: #{tpu_custom_call.1} parent=11 // pred_region
          %s493 = ssub.s32 1024, 1024
          %494 = vsyncadd [#allocation13], %s493
          %s495 = sshll.u32 [#allocation14], 4
          %s496 = int_to_ptr.vmem [resolvable:$true] %s495
          %501 = dma.hbm_to_vmem [thread:$0]  %s6, 1024, %s496, [#allocation13], 64, 64, 4
        $region32: #{tpu_custom_call.1} parent=11 // pred_fallthru
          _
        // Predicated region
        $region33: #{tpu_custom_call.1} parent=11 // pred_check
          %p502 = pneg %p216
        $region34: #{tpu_custom_call.1} parent=11 // pred_check_branch
          %504 = sbr.rel (%p502) target = $region36
        $region35: #{tpu_custom_call.1} parent=11 // pred_region
          %s506 = ssub.s32 1024, 1024
          %507 = vsyncadd [#allocation16], %s506
          %s508 = sshll.u32 [#allocation15], 4
          %s509 = int_to_ptr.vmem [resolvable:$true] %s508
          %514 = dma.hbm_to_vmem [thread:$0]  %s7, 1024, %s509, [#allocation16], 64, 64, 4
        $region36: #{tpu_custom_call.1} parent=11 // pred_fallthru
          _
        // Predicated region
        $region37: #{tpu_custom_call.1} parent=11 // pred_check
          %p515 = pneg %p237
        $region38: #{tpu_custom_call.1} parent=11 // pred_check_branch
          %517 = sbr.rel (%p515) target = $region40
        $region39: #{tpu_custom_call.1} parent=11 // pred_region
          %s519 = ssub.s32 1024, 1024
          %520 = vsyncadd [#allocation16], %s519
          %s521 = sshll.u32 [#allocation17], 4
          %s522 = int_to_ptr.vmem [resolvable:$true] %s521
          %527 = dma.hbm_to_vmem [thread:$0]  %s8, 1024, %s522, [#allocation16], 64, 64, 4
        $region40: #{tpu_custom_call.1} parent=11 // pred_fallthru
          _
        // Predicated region
        $region41: #{tpu_custom_call.1} parent=11 // pred_check
          %p528 = pneg %p258
        $region42: #{tpu_custom_call.1} parent=11 // pred_check_branch
          %530 = sbr.rel (%p528) target = $region44
        $region43: #{tpu_custom_call.1} parent=11 // pred_region
          %s532 = ssub.s32 16, 16
          %533 = vsyncadd [#allocation19], %s532
          %s535 = sshll.u32 [#allocation18], 4
          %s536 = int_to_ptr.vmem [resolvable:$true] %s535
          %538 = dma.hbm_to_vmem [thread:$0]  %s9, 16, %s536, [#allocation19]
        $region44: #{tpu_custom_call.1} parent=11 // pred_fallthru
          _
        // Predicated region
        $region45: #{tpu_custom_call.1} parent=11 // pred_check
          %p539 = pneg %p279
        $region46: #{tpu_custom_call.1} parent=11 // pred_check_branch
          %541 = sbr.rel (%p539) target = $region48
        $region47: #{tpu_custom_call.1} parent=11 // pred_region
          _
        $region48: #{tpu_custom_call.1} parent=11 // pred_fallthru
          _
        // Predicated region
        $region49: #{tpu_custom_call.1} parent=11 // pred_check
          %p542 = pneg %p300
        $region50: #{tpu_custom_call.1} parent=11 // pred_check_branch
          %544 = sbr.rel (%p542) target = $region52
        $region51: #{tpu_custom_call.1} parent=11 // pred_region
          %s546 = ssub.s32 16, 16
          %547 = vsyncadd [#allocation19], %s546
          %s549 = sshll.u32 [#allocation20], 4
          %s550 = int_to_ptr.vmem [resolvable:$true] %s549
          %552 = dma.hbm_to_vmem [thread:$0]  %s11, 16, %s550, [#allocation19]
        $region52: #{tpu_custom_call.1} parent=11 // pred_fallthru
          _
        // Predicated region
        $region53: #{tpu_custom_call.1} parent=11 // pred_check
          %p553 = pneg %p321
        $region54: #{tpu_custom_call.1} parent=11 // pred_check_branch
          %555 = sbr.rel (%p553) target = $region56
        $region55: #{tpu_custom_call.1} parent=11 // pred_region
          _
        $region56: #{tpu_custom_call.1} parent=11 // pred_fallthru
          _
        // Predicated region
        $region57: #{tpu_custom_call.1} parent=11 // pred_check
          %p556 = pneg %p342
        $region58: #{tpu_custom_call.1} parent=11 // pred_check_branch
          %558 = sbr.rel (%p556) target = $region60
        $region59: #{tpu_custom_call.1} parent=11 // pred_region
          %s560 = ssub.s32 16, 16
          %561 = vsyncadd [#allocation22], %s560
          %s563 = sshll.u32 [#allocation21], 4
          %s564 = int_to_ptr.vmem [resolvable:$true] %s563
          %566 = dma.hbm_to_vmem [thread:$0]  %s13, 16, %s564, [#allocation22]
        $region60: #{tpu_custom_call.1} parent=11 // pred_fallthru
          _
        // Predicated region
        $region61: #{tpu_custom_call.1} parent=11 // pred_check
          %p567 = pneg %p363
        $region62: #{tpu_custom_call.1} parent=11 // pred_check_branch
          %569 = sbr.rel (%p567) target = $region64
        $region63: #{tpu_custom_call.1} parent=11 // pred_region
          %s571 = ssub.s32 256, 256
          %572 = vsyncadd [#allocation22], %s571
          %s573 = sshll.u32 [#allocation23], 4
          %s574 = int_to_ptr.vmem [resolvable:$true] %s573
          %579 = dma.hbm_to_vmem [thread:$0]  %s14, 256, %s574, [#allocation22], 64, 64, 4
        $region64: #{tpu_custom_call.1} parent=11 // pred_fallthru
          _
        // Predicated region
        $region65: #{tpu_custom_call.1} parent=11 // pred_check
          %p580 = pneg %p384
        $region66: #{tpu_custom_call.1} parent=11 // pred_check_branch
          %582 = sbr.rel (%p580) target = $region68
        $region67: #{tpu_custom_call.1} parent=11 // pred_region
          %s584 = ssub.s32 16, 16
          %585 = vsyncadd [#allocation25], %s584
          %s587 = sshll.u32 [#allocation24], 4
          %s588 = int_to_ptr.vmem [resolvable:$true] %s587
          %590 = dma.hbm_to_vmem [thread:$0]  %s15, 16, %s588, [#allocation25]
        $region68: #{tpu_custom_call.1} parent=11 // pred_fallthru
          _
      $region12: #{tpu_custom_call.1} parent=5 // pred_fallthru
        _
      %p591 = scmp.lt.s32.totalorder %s38, 4
      // Predicated region
      $region69: #{tpu_custom_call.1} parent=5 // pred_check
        %p592 = pneg %p591
      $region70: #{tpu_custom_call.1} parent=5 // pred_check_branch
        %594 = sbr.rel (%p592) target = $region72
      $region71: #{tpu_custom_call.1} parent=5 // pred_region
        // Predicated region
        $region73: #{tpu_custom_call.1} parent=71 // pred_check
          %p595 = pneg %p58
        $region74: #{tpu_custom_call.1} parent=71 // pred_check_branch
          %597 = sbr.rel (%p595) target = $region76
        $region75: #{tpu_custom_call.1} parent=71 // pred_region
          %s598 = sand.u32 %s48, 1
          %s599 = scalar_lea.sflag [#allocation4], %s598
          %s600 = sand.u32 %s48, 1
          %s601 = smul.addr %s600, 16
          %s602 = scalar_lea.vmem [#allocation3], %s601
          %s603 = smul.u32 4, %s38
          %s605 = ssub.s32 256, 256
          %606 = vsyncadd %s599, %s605
          %s607 = smul.addr %s603, 64
          %s608 = scalar_lea.hbm %s0, %s607
          %s610 = sshll.u32 %s602, 4
          %s611 = int_to_ptr.vmem [resolvable:$true] %s610
          %613 = dma.hbm_to_vmem [thread:$0]  %s608, 256, %s611, %s599
        $region76: #{tpu_custom_call.1} parent=71 // pred_fallthru
          _
        // Predicated region
        $region77: #{tpu_custom_call.1} parent=71 // pred_check
          %p614 = pneg %p84
        $region78: #{tpu_custom_call.1} parent=71 // pred_check_branch
          %616 = sbr.rel (%p614) target = $region80
        $region79: #{tpu_custom_call.1} parent=71 // pred_region
          %s617 = sand.u32 %s38, 1
          %s618 = scalar_lea.sflag [#allocation7], %s617
          %s619 = sand.u32 %s74, 1
          %s620 = smul.addr %s619, 1024
          %s621 = scalar_lea.vmem [#allocation6], %s620
          %s622 = smul.u32 64, %s38
          %s624 = ssub.s32 16384, 16384
          %625 = vsyncadd %s618, %s624
          %s626 = smul.addr %s622, 4
          %s627 = smul.addr %s626, 64
          %s628 = scalar_lea.hbm %s1, %s627
          %s629 = sshll.u32 %s621, 4
          %s630 = int_to_ptr.vmem [resolvable:$true] %s629
          %635 = dma.hbm_to_vmem [thread:$0]  %s628, 16384, %s630, %s618, 256, 256, 16
        $region80: #{tpu_custom_call.1} parent=71 // pred_fallthru
          _
      $region72: #{tpu_custom_call.1} parent=5 // pred_fallthru
        _
      %p636 = scmp.le.s32.totalorder 1, %s38
      %p637 = scmp.lt.s32.totalorder %s38, 5
      %p638 = pnand %p636, %p637
      %p639 = pneg %p638
      // Predicated region
      $region81: #{tpu_custom_call.1} parent=5 // pred_check
        _
      $region82: #{tpu_custom_call.1} parent=5 // pred_check_branch
        %641 = sbr.rel (%p638) target = $region84
      $region83: #{tpu_custom_call.1} parent=5 // pred_region
        %s642 = ssub.s32 %s38, 1
        %s643 = sand.u32 %s51, 1
        %s644 = scalar_lea.sflag [#allocation4], %s643
        %s645 = sand.u32 %s51, 1
        %s646 = smul.addr %s645, 16
        %s647 = scalar_lea.vmem [#allocation3], %s646
        // Predicated region
        $region85: #{tpu_custom_call.1} parent=83 // pred_check
          %p648 = pneg %p64
        $region86: #{tpu_custom_call.1} parent=83 // pred_check_branch
          %650 = sbr.rel (%p648) target = $region88
        $region87: #{tpu_custom_call.1} parent=83 // pred_region
          %651 = dma.done %s644, 256
        $region88: #{tpu_custom_call.1} parent=83 // pred_fallthru
          _
        %s652 = sand.u32 %s43, 1
        %s653 = scalar_lea.sflag [#allocation7], %s652
        %s654 = sand.u32 %s77, 1
        %s655 = smul.addr %s654, 1024
        %s656 = scalar_lea.vmem [#allocation6], %s655
        // Predicated region
        $region89: #{tpu_custom_call.1} parent=83 // pred_check
          %p657 = pneg %p90
        $region90: #{tpu_custom_call.1} parent=83 // pred_check_branch
          %659 = sbr.rel (%p657) target = $region92
        $region91: #{tpu_custom_call.1} parent=83 // pred_region
          %660 = dma.done %s653, 16384
        $region92: #{tpu_custom_call.1} parent=83 // pred_fallthru
          _
        // Predicated region
        $region93: #{tpu_custom_call.1} parent=83 // pred_check
          %p661 = pneg %p111
        $region94: #{tpu_custom_call.1} parent=83 // pred_check_branch
          %663 = sbr.rel (%p661) target = $region96
        $region95: #{tpu_custom_call.1} parent=83 // pred_region
          %664 = dma.done [#allocation7], 64
        $region96: #{tpu_custom_call.1} parent=83 // pred_fallthru
          _
        // Predicated region
        $region97: #{tpu_custom_call.1} parent=83 // pred_check
          %p665 = pneg %p132
        $region98: #{tpu_custom_call.1} parent=83 // pred_check_branch
          %667 = sbr.rel (%p665) target = $region100
        $region99: #{tpu_custom_call.1} parent=83 // pred_region
          %668 = dma.done [#allocation10], 4096
        $region100: #{tpu_custom_call.1} parent=83 // pred_fallthru
          _
        // Predicated region
        $region101: #{tpu_custom_call.1} parent=83 // pred_check
          %p669 = pneg %p153
        $region102: #{tpu_custom_call.1} parent=83 // pred_check_branch
          %671 = sbr.rel (%p669) target = $region104
        $region103: #{tpu_custom_call.1} parent=83 // pred_region
          %672 = dma.done [#allocation10], 16
        $region104: #{tpu_custom_call.1} parent=83 // pred_fallthru
          _
        // Predicated region
        $region105: #{tpu_custom_call.1} parent=83 // pred_check
          %p673 = pneg %p174
        $region106: #{tpu_custom_call.1} parent=83 // pred_check_branch
          %675 = sbr.rel (%p673) target = $region108
        $region107: #{tpu_custom_call.1} parent=83 // pred_region
          %676 = dma.done [#allocation13], 1024
        $region108: #{tpu_custom_call.1} parent=83 // pred_fallthru
          _
        // Predicated region
        $region109: #{tpu_custom_call.1} parent=83 // pred_check
          %p677 = pneg %p195
        $region110: #{tpu_custom_call.1} parent=83 // pred_check_branch
          %679 = sbr.rel (%p677) target = $region112
        $region111: #{tpu_custom_call.1} parent=83 // pred_region
          %680 = dma.done [#allocation13], 1024
        $region112: #{tpu_custom_call.1} parent=83 // pred_fallthru
          _
        // Predicated region
        $region113: #{tpu_custom_call.1} parent=83 // pred_check
          %p681 = pneg %p216
        $region114: #{tpu_custom_call.1} parent=83 // pred_check_branch
          %683 = sbr.rel (%p681) target = $region116
        $region115: #{tpu_custom_call.1} parent=83 // pred_region
          %684 = dma.done [#allocation16], 1024
        $region116: #{tpu_custom_call.1} parent=83 // pred_fallthru
          _
        // Predicated region
        $region117: #{tpu_custom_call.1} parent=83 // pred_check
          %p685 = pneg %p237
        $region118: #{tpu_custom_call.1} parent=83 // pred_check_branch
          %687 = sbr.rel (%p685) target = $region120
        $region119: #{tpu_custom_call.1} parent=83 // pred_region
          %688 = dma.done [#allocation16], 1024
        $region120: #{tpu_custom_call.1} parent=83 // pred_fallthru
          _
        // Predicated region
        $region121: #{tpu_custom_call.1} parent=83 // pred_check
          %p689 = pneg %p258
        $region122: #{tpu_custom_call.1} parent=83 // pred_check_branch
          %691 = sbr.rel (%p689) target = $region124
        $region123: #{tpu_custom_call.1} parent=83 // pred_region
          %692 = dma.done [#allocation19], 16
        $region124: #{tpu_custom_call.1} parent=83 // pred_fallthru
          _
        // Predicated region
        $region125: #{tpu_custom_call.1} parent=83 // pred_check
          %p693 = pneg %p300
        $region126: #{tpu_custom_call.1} parent=83 // pred_check_branch
          %695 = sbr.rel (%p693) target = $region128
        $region127: #{tpu_custom_call.1} parent=83 // pred_region
          %696 = dma.done [#allocation19], 16
        $region128: #{tpu_custom_call.1} parent=83 // pred_fallthru
          _
        // Predicated region
        $region129: #{tpu_custom_call.1} parent=83 // pred_check
          %p697 = pneg %p342
        $region130: #{tpu_custom_call.1} parent=83 // pred_check_branch
          %699 = sbr.rel (%p697) target = $region132
        $region131: #{tpu_custom_call.1} parent=83 // pred_region
          %700 = dma.done [#allocation22], 16
        $region132: #{tpu_custom_call.1} parent=83 // pred_fallthru
          _
        // Predicated region
        $region133: #{tpu_custom_call.1} parent=83 // pred_check
          %p701 = pneg %p363
        $region134: #{tpu_custom_call.1} parent=83 // pred_check_branch
          %703 = sbr.rel (%p701) target = $region136
        $region135: #{tpu_custom_call.1} parent=83 // pred_region
          %704 = dma.done [#allocation22], 256
        $region136: #{tpu_custom_call.1} parent=83 // pred_fallthru
          _
        // Predicated region
        $region137: #{tpu_custom_call.1} parent=83 // pred_check
          %p705 = pneg %p384
        $region138: #{tpu_custom_call.1} parent=83 // pred_check_branch
          %707 = sbr.rel (%p705) target = $region140
        $region139: #{tpu_custom_call.1} parent=83 // pred_region
          %708 = dma.done [#allocation25], 16
        $region140: #{tpu_custom_call.1} parent=83 // pred_fallthru
          _
        %s709 = sand.u32 %s51, 1
        %s710 = scalar_lea.sflag [#allocation4], %s709
        %s711 = sand.u32 %s51, 1
        %s712 = smul.addr %s711, 16
        %s713 = scalar_lea.vmem [#allocation3], %s712
        %p714 = pneg %p64
        %p715 = pneg %p61
        %s716 = sand.u32 %s43, 1
        %s717 = scalar_lea.sflag [#allocation7], %s716
        %s718 = sand.u32 %s77, 1
        %s719 = smul.addr %s718, 1024
        %s720 = scalar_lea.vmem [#allocation6], %s719
        %p721 = pneg %p90
        %p722 = pneg %p87
        %p723 = pneg %p111
        %p724 = pneg %p108
        %p725 = pneg %p132
        %p726 = pneg %p129
        %p727 = pneg %p153
        %p728 = pneg %p150
        %p729 = pneg %p174
        %p730 = pneg %p171
        %p731 = pneg %p195
        %p732 = pneg %p192
        %p733 = pneg %p216
        %p734 = pneg %p213
        %p735 = pneg %p237
        %p736 = pneg %p234
        %p737 = pneg %p258
        %p738 = pneg %p255
        %p739 = pneg %p279
        %p740 = pneg %p276
        %p741 = pneg %p300
        %p742 = pneg %p297
        %p743 = pneg %p321
        %p744 = pneg %p318
        %p745 = pneg %p342
        %p746 = pneg %p339
        %p747 = pneg %p363
        %p748 = pneg %p360
        %p749 = pneg %p384
        %p750 = pneg %p381
        %p751 = pneg %p405
        %p752 = pneg %p402
        %p753 = pneg %p426
        %p754 = pneg %p423
        %s755 = smul.u32 4, %s43
        %s756 = smul.u32 64, %s43
        %p758 = scmp.eq.s32.totalorder %s43, 0
        // Predicated region
        $region141: #{tpu_custom_call.1} parent=83 // pred_check
          %p759 = pneg %p758
        $region142: #{tpu_custom_call.1} parent=83 // pred_check_branch
          %761 = sbr.rel (%p759) target = $region144
        $region143: #{tpu_custom_call.1} parent=83 // pred_region
          %762 = vst [vmem:[#allocation2] sm:$0xff] 0.0
          %763 = vst [vmem:[#allocation2 + $0x8] sm:$0xff] 0.0
          %764 = vst [vmem:[#allocation2 + $0x10] sm:$0xff] 0.0
          %765 = vst [vmem:[#allocation2 + $0x18] sm:$0xff] 0.0
        $region144: #{tpu_custom_call.1} parent=83 // pred_fallthru
          _
        %v766 = vld [vmem:[#allocation2] sm:$0xff]
        %v767 = vld [vmem:[#allocation2 + $0x8] sm:$0xff]
        %v768 = vld [vmem:[#allocation2 + $0x10] sm:$0xff]
        %v769 = vld [vmem:[#allocation2 + $0x18] sm:$0xff]
        %v770 = vld [vmem:[%s647] sm:$0xff]
        %v771 = vld [vmem:[%s647 + $0x8] sm:$0xff]
        %v772 = vld [vmem:[%s656] sm:$0xff]
        %v773 = vld [vmem:[%s656 + $0x8] sm:$0xff]
        %v774 = vld [vmem:[%s656 + $0x10] sm:$0xff]
        %v775 = vld [vmem:[%s656 + $0x18] sm:$0xff]
        %v776 = vld [vmem:[%s656 + $0x20] sm:$0xff]
        %v777 = vld [vmem:[%s656 + $0x28] sm:$0xff]
        %v778 = vld [vmem:[%s656 + $0x30] sm:$0xff]
        %v779 = vld [vmem:[%s656 + $0x38] sm:$0xff]
        %v780 = vld [vmem:[%s656 + $0x40] sm:$0xff]
        %v781 = vld [vmem:[%s656 + $0x48] sm:$0xff]
        %v782 = vld [vmem:[%s656 + $0x50] sm:$0xff]
        %v783 = vld [vmem:[%s656 + $0x58] sm:$0xff]
        %v784 = vld [vmem:[%s656 + $0x60] sm:$0xff]
        %v785 = vld [vmem:[%s656 + $0x68] sm:$0xff]
        %v786 = vld [vmem:[%s656 + $0x70] sm:$0xff]
        %v787 = vld [vmem:[%s656 + $0x78] sm:$0xff]
        %v788 = vld [vmem:[%s656 + $0x80] sm:$0xff]
        %v789 = vld [vmem:[%s656 + $0x88] sm:$0xff]
        %v790 = vld [vmem:[%s656 + $0x90] sm:$0xff]
        %v791 = vld [vmem:[%s656 + $0x98] sm:$0xff]
        %v792 = vld [vmem:[%s656 + $0xa0] sm:$0xff]
        %v793 = vld [vmem:[%s656 + $0xa8] sm:$0xff]
        %v794 = vld [vmem:[%s656 + $0xb0] sm:$0xff]
        %v795 = vld [vmem:[%s656 + $0xb8] sm:$0xff]
        %v796 = vld [vmem:[%s656 + $0xc0] sm:$0xff]
        %v797 = vld [vmem:[%s656 + $0xc8] sm:$0xff]
        %v798 = vld [vmem:[%s656 + $0xd0] sm:$0xff]
        %v799 = vld [vmem:[%s656 + $0xd8] sm:$0xff]
        %v800 = vld [vmem:[%s656 + $0xe0] sm:$0xff]
        %v801 = vld [vmem:[%s656 + $0xe8] sm:$0xff]
        %v802 = vld [vmem:[%s656 + $0xf0] sm:$0xff]
        %v803 = vld [vmem:[%s656 + $0xf8] sm:$0xff]
        %v804 = vld [vmem:[%s656 + $0x100] sm:$0xff]
        %v805 = vld [vmem:[%s656 + $0x108] sm:$0xff]
        %v806 = vld [vmem:[%s656 + $0x110] sm:$0xff]
        %v807 = vld [vmem:[%s656 + $0x118] sm:$0xff]
        %v808 = vld [vmem:[%s656 + $0x120] sm:$0xff]
        %v809 = vld [vmem:[%s656 + $0x128] sm:$0xff]
        %v810 = vld [vmem:[%s656 + $0x130] sm:$0xff]
        %v811 = vld [vmem:[%s656 + $0x138] sm:$0xff]
        %v812 = vld [vmem:[%s656 + $0x140] sm:$0xff]
        %v813 = vld [vmem:[%s656 + $0x148] sm:$0xff]
        %v814 = vld [vmem:[%s656 + $0x150] sm:$0xff]
        %v815 = vld [vmem:[%s656 + $0x158] sm:$0xff]
        %v816 = vld [vmem:[%s656 + $0x160] sm:$0xff]
        %v817 = vld [vmem:[%s656 + $0x168] sm:$0xff]
        %v818 = vld [vmem:[%s656 + $0x170] sm:$0xff]
        %v819 = vld [vmem:[%s656 + $0x178] sm:$0xff]
        %v820 = vld [vmem:[%s656 + $0x180] sm:$0xff]
        %v821 = vld [vmem:[%s656 + $0x188] sm:$0xff]
        %v822 = vld [vmem:[%s656 + $0x190] sm:$0xff]
        %v823 = vld [vmem:[%s656 + $0x198] sm:$0xff]
        %v824 = vld [vmem:[%s656 + $0x1a0] sm:$0xff]
        %v825 = vld [vmem:[%s656 + $0x1a8] sm:$0xff]
        %v826 = vld [vmem:[%s656 + $0x1b0] sm:$0xff]
        %v827 = vld [vmem:[%s656 + $0x1b8] sm:$0xff]
        %v828 = vld [vmem:[%s656 + $0x1c0] sm:$0xff]
        %v829 = vld [vmem:[%s656 + $0x1c8] sm:$0xff]
        %v830 = vld [vmem:[%s656 + $0x1d0] sm:$0xff]
        %v831 = vld [vmem:[%s656 + $0x1d8] sm:$0xff]
        %v832 = vld [vmem:[%s656 + $0x1e0] sm:$0xff]
        %v833 = vld [vmem:[%s656 + $0x1e8] sm:$0xff]
        %v834 = vld [vmem:[%s656 + $0x1f0] sm:$0xff]
        %v835 = vld [vmem:[%s656 + $0x1f8] sm:$0xff]
        %v836 = vld [vmem:[%s656 + $0x200] sm:$0xff]
        %v837 = vld [vmem:[%s656 + $0x208] sm:$0xff]
        %v838 = vld [vmem:[%s656 + $0x210] sm:$0xff]
        %v839 = vld [vmem:[%s656 + $0x218] sm:$0xff]
        %v840 = vld [vmem:[%s656 + $0x220] sm:$0xff]
        %v841 = vld [vmem:[%s656 + $0x228] sm:$0xff]
        %v842 = vld [vmem:[%s656 + $0x230] sm:$0xff]
        %v843 = vld [vmem:[%s656 + $0x238] sm:$0xff]
        %v844 = vld [vmem:[%s656 + $0x240] sm:$0xff]
        %v845 = vld [vmem:[%s656 + $0x248] sm:$0xff]
        %v846 = vld [vmem:[%s656 + $0x250] sm:$0xff]
        %v847 = vld [vmem:[%s656 + $0x258] sm:$0xff]
        %v848 = vld [vmem:[%s656 + $0x260] sm:$0xff]
        %v849 = vld [vmem:[%s656 + $0x268] sm:$0xff]
        %v850 = vld [vmem:[%s656 + $0x270] sm:$0xff]
        %v851 = vld [vmem:[%s656 + $0x278] sm:$0xff]
        %v852 = vld [vmem:[%s656 + $0x280] sm:$0xff]
        %v853 = vld [vmem:[%s656 + $0x288] sm:$0xff]
        %v854 = vld [vmem:[%s656 + $0x290] sm:$0xff]
        %v855 = vld [vmem:[%s656 + $0x298] sm:$0xff]
        %v856 = vld [vmem:[%s656 + $0x2a0] sm:$0xff]
        %v857 = vld [vmem:[%s656 + $0x2a8] sm:$0xff]
        %v858 = vld [vmem:[%s656 + $0x2b0] sm:$0xff]
        %v859 = vld [vmem:[%s656 + $0x2b8] sm:$0xff]
        %v860 = vld [vmem:[%s656 + $0x2c0] sm:$0xff]
        %v861 = vld [vmem:[%s656 + $0x2c8] sm:$0xff]
        %v862 = vld [vmem:[%s656 + $0x2d0] sm:$0xff]
        %v863 = vld [vmem:[%s656 + $0x2d8] sm:$0xff]
        %v864 = vld [vmem:[%s656 + $0x2e0] sm:$0xff]
        %v865 = vld [vmem:[%s656 + $0x2e8] sm:$0xff]
        %v866 = vld [vmem:[%s656 + $0x2f0] sm:$0xff]
        %v867 = vld [vmem:[%s656 + $0x2f8] sm:$0xff]
        %v868 = vld [vmem:[%s656 + $0x300] sm:$0xff]
        %v869 = vld [vmem:[%s656 + $0x308] sm:$0xff]
        %v870 = vld [vmem:[%s656 + $0x310] sm:$0xff]
        %v871 = vld [vmem:[%s656 + $0x318] sm:$0xff]
        %v872 = vld [vmem:[%s656 + $0x320] sm:$0xff]
        %v873 = vld [vmem:[%s656 + $0x328] sm:$0xff]
        %v874 = vld [vmem:[%s656 + $0x330] sm:$0xff]
        %v875 = vld [vmem:[%s656 + $0x338] sm:$0xff]
        %v876 = vld [vmem:[%s656 + $0x340] sm:$0xff]
        %v877 = vld [vmem:[%s656 + $0x348] sm:$0xff]
        %v878 = vld [vmem:[%s656 + $0x350] sm:$0xff]
        %v879 = vld [vmem:[%s656 + $0x358] sm:$0xff]
        %v880 = vld [vmem:[%s656 + $0x360] sm:$0xff]
        %v881 = vld [vmem:[%s656 + $0x368] sm:$0xff]
        %v882 = vld [vmem:[%s656 + $0x370] sm:$0xff]
        %v883 = vld [vmem:[%s656 + $0x378] sm:$0xff]
        %v884 = vld [vmem:[%s656 + $0x380] sm:$0xff]
        %v885 = vld [vmem:[%s656 + $0x388] sm:$0xff]
        %v886 = vld [vmem:[%s656 + $0x390] sm:$0xff]
        %v887 = vld [vmem:[%s656 + $0x398] sm:$0xff]
        %v888 = vld [vmem:[%s656 + $0x3a0] sm:$0xff]
        %v889 = vld [vmem:[%s656 + $0x3a8] sm:$0xff]
        %v890 = vld [vmem:[%s656 + $0x3b0] sm:$0xff]
        %v891 = vld [vmem:[%s656 + $0x3b8] sm:$0xff]
        %v892 = vld [vmem:[%s656 + $0x3c0] sm:$0xff]
        %v893 = vld [vmem:[%s656 + $0x3c8] sm:$0xff]
        %v894 = vld [vmem:[%s656 + $0x3d0] sm:$0xff]
        %v895 = vld [vmem:[%s656 + $0x3d8] sm:$0xff]
        %v896 = vld [vmem:[%s656 + $0x3e0] sm:$0xff]
        %v897 = vld [vmem:[%s656 + $0x3e8] sm:$0xff]
        %v898 = vld [vmem:[%s656 + $0x3f0] sm:$0xff]
        %v899 = vld [vmem:[%s656 + $0x3f8] sm:$0xff]
        %v902 = vunpack.c.l.b16 %v770
        %v903 = vunpack.c.h.b16 %v770
        %v904 = vunpack.c.l.b16 %v771
        %v905 = vunpack.c.h.b16 %v771
        %v906 = vpack.c.b16 %v902, %v902
        %v907 = vpack.c.b16 %v903, %v903
        %v908 = vpack.c.b16 %v904, %v904
        %v909 = vpack.c.b16 %v905, %v905
        %v1042 = vunpack.c.l.b16 %v772
        %v1043 = vunpack.c.h.b16 %v772
        %v1044 = vunpack.c.l.b16 %v773
        %v1045 = vunpack.c.h.b16 %v773
        %v1046 = vunpack.c.l.b16 %v774
        %v1047 = vunpack.c.h.b16 %v774
        %v1048 = vunpack.c.l.b16 %v775
        %v1049 = vunpack.c.h.b16 %v775
        %v1050 = vunpack.c.l.b16 %v776
        %v1051 = vunpack.c.h.b16 %v776
        %v1052 = vunpack.c.l.b16 %v777
        %v1053 = vunpack.c.h.b16 %v777
        %v1054 = vunpack.c.l.b16 %v778
        %v1055 = vunpack.c.h.b16 %v778
        %v1056 = vunpack.c.l.b16 %v779
        %v1057 = vunpack.c.h.b16 %v779
        %v1058 = vunpack.c.l.b16 %v780
        %v1059 = vunpack.c.h.b16 %v780
        %v1060 = vunpack.c.l.b16 %v781
        %v1061 = vunpack.c.h.b16 %v781
        %v1062 = vunpack.c.l.b16 %v782
        %v1063 = vunpack.c.h.b16 %v782
        %v1064 = vunpack.c.l.b16 %v783
        %v1065 = vunpack.c.h.b16 %v783
        %v1066 = vunpack.c.l.b16 %v784
        %v1067 = vunpack.c.h.b16 %v784
        %v1068 = vunpack.c.l.b16 %v785
        %v1069 = vunpack.c.h.b16 %v785
        %v1070 = vunpack.c.l.b16 %v786
        %v1071 = vunpack.c.h.b16 %v786
        %v1072 = vunpack.c.l.b16 %v787
        %v1073 = vunpack.c.h.b16 %v787
        %v1074 = vunpack.c.l.b16 %v788
        %v1075 = vunpack.c.h.b16 %v788
        %v1076 = vunpack.c.l.b16 %v789
        %v1077 = vunpack.c.h.b16 %v789
        %v1078 = vunpack.c.l.b16 %v790
        %v1079 = vunpack.c.h.b16 %v790
        %v1080 = vunpack.c.l.b16 %v791
        %v1081 = vunpack.c.h.b16 %v791
        %v1082 = vunpack.c.l.b16 %v792
        %v1083 = vunpack.c.h.b16 %v792
        %v1084 = vunpack.c.l.b16 %v793
        %v1085 = vunpack.c.h.b16 %v793
        %v1086 = vunpack.c.l.b16 %v794
        %v1087 = vunpack.c.h.b16 %v794
        %v1088 = vunpack.c.l.b16 %v795
        %v1089 = vunpack.c.h.b16 %v795
        %v1090 = vunpack.c.l.b16 %v796
        %v1091 = vunpack.c.h.b16 %v796
        %v1092 = vunpack.c.l.b16 %v797
        %v1093 = vunpack.c.h.b16 %v797
        %v1094 = vunpack.c.l.b16 %v798
        %v1095 = vunpack.c.h.b16 %v798
        %v1096 = vunpack.c.l.b16 %v799
        %v1097 = vunpack.c.h.b16 %v799
        %v1098 = vunpack.c.l.b16 %v800
        %v1099 = vunpack.c.h.b16 %v800
        %v1100 = vunpack.c.l.b16 %v801
        %v1101 = vunpack.c.h.b16 %v801
        %v1102 = vunpack.c.l.b16 %v802
        %v1103 = vunpack.c.h.b16 %v802
        %v1104 = vunpack.c.l.b16 %v803
        %v1105 = vunpack.c.h.b16 %v803
        %v1106 = vunpack.c.l.b16 %v804
        %v1107 = vunpack.c.h.b16 %v804
        %v1108 = vunpack.c.l.b16 %v805
        %v1109 = vunpack.c.h.b16 %v805
        %v1110 = vunpack.c.l.b16 %v806
        %v1111 = vunpack.c.h.b16 %v806
        %v1112 = vunpack.c.l.b16 %v807
        %v1113 = vunpack.c.h.b16 %v807
        %v1114 = vunpack.c.l.b16 %v808
        %v1115 = vunpack.c.h.b16 %v808
        %v1116 = vunpack.c.l.b16 %v809
        %v1117 = vunpack.c.h.b16 %v809
        %v1118 = vunpack.c.l.b16 %v810
        %v1119 = vunpack.c.h.b16 %v810
        %v1120 = vunpack.c.l.b16 %v811
        %v1121 = vunpack.c.h.b16 %v811
        %v1122 = vunpack.c.l.b16 %v812
        %v1123 = vunpack.c.h.b16 %v812
        %v1124 = vunpack.c.l.b16 %v813
        %v1125 = vunpack.c.h.b16 %v813
        %v1126 = vunpack.c.l.b16 %v814
        %v1127 = vunpack.c.h.b16 %v814
        %v1128 = vunpack.c.l.b16 %v815
        %v1129 = vunpack.c.h.b16 %v815
        %v1130 = vunpack.c.l.b16 %v816
        %v1131 = vunpack.c.h.b16 %v816
        %v1132 = vunpack.c.l.b16 %v817
        %v1133 = vunpack.c.h.b16 %v817
        %v1134 = vunpack.c.l.b16 %v818
        %v1135 = vunpack.c.h.b16 %v818
        %v1136 = vunpack.c.l.b16 %v819
        %v1137 = vunpack.c.h.b16 %v819
        %v1138 = vunpack.c.l.b16 %v820
        %v1139 = vunpack.c.h.b16 %v820
        %v1140 = vunpack.c.l.b16 %v821
        %v1141 = vunpack.c.h.b16 %v821
        %v1142 = vunpack.c.l.b16 %v822
        %v1143 = vunpack.c.h.b16 %v822
        %v1144 = vunpack.c.l.b16 %v823
        %v1145 = vunpack.c.h.b16 %v823
        %v1146 = vunpack.c.l.b16 %v824
        %v1147 = vunpack.c.h.b16 %v824
        %v1148 = vunpack.c.l.b16 %v825
        %v1149 = vunpack.c.h.b16 %v825
        %v1150 = vunpack.c.l.b16 %v826
        %v1151 = vunpack.c.h.b16 %v826
        %v1152 = vunpack.c.l.b16 %v827
        %v1153 = vunpack.c.h.b16 %v827
        %v1154 = vunpack.c.l.b16 %v828
        %v1155 = vunpack.c.h.b16 %v828
        %v1156 = vunpack.c.l.b16 %v829
        %v1157 = vunpack.c.h.b16 %v829
        %v1158 = vunpack.c.l.b16 %v830
        %v1159 = vunpack.c.h.b16 %v830
        %v1160 = vunpack.c.l.b16 %v831
        %v1161 = vunpack.c.h.b16 %v831
        %v1162 = vunpack.c.l.b16 %v832
        %v1163 = vunpack.c.h.b16 %v832
        %v1164 = vunpack.c.l.b16 %v833
        %v1165 = vunpack.c.h.b16 %v833
        %v1166 = vunpack.c.l.b16 %v834
        %v1167 = vunpack.c.h.b16 %v834
        %v1168 = vunpack.c.l.b16 %v835
        %v1169 = vunpack.c.h.b16 %v835
        %v1170 = vunpack.c.l.b16 %v836
        %v1171 = vunpack.c.h.b16 %v836
        %v1172 = vunpack.c.l.b16 %v837
        %v1173 = vunpack.c.h.b16 %v837
        %v1174 = vunpack.c.l.b16 %v838
        %v1175 = vunpack.c.h.b16 %v838
        %v1176 = vunpack.c.l.b16 %v839
        %v1177 = vunpack.c.h.b16 %v839
        %v1178 = vunpack.c.l.b16 %v840
        %v1179 = vunpack.c.h.b16 %v840
        %v1180 = vunpack.c.l.b16 %v841
        %v1181 = vunpack.c.h.b16 %v841
        %v1182 = vunpack.c.l.b16 %v842
        %v1183 = vunpack.c.h.b16 %v842
        %v1184 = vunpack.c.l.b16 %v843
        %v1185 = vunpack.c.h.b16 %v843
        %v1186 = vunpack.c.l.b16 %v844
        %v1187 = vunpack.c.h.b16 %v844
        %v1188 = vunpack.c.l.b16 %v845
        %v1189 = vunpack.c.h.b16 %v845
        %v1190 = vunpack.c.l.b16 %v846
        %v1191 = vunpack.c.h.b16 %v846
        %v1192 = vunpack.c.l.b16 %v847
        %v1193 = vunpack.c.h.b16 %v847
        %v1194 = vunpack.c.l.b16 %v848
        %v1195 = vunpack.c.h.b16 %v848
        %v1196 = vunpack.c.l.b16 %v849
        %v1197 = vunpack.c.h.b16 %v849
        %v1198 = vunpack.c.l.b16 %v850
        %v1199 = vunpack.c.h.b16 %v850
        %v1200 = vunpack.c.l.b16 %v851
        %v1201 = vunpack.c.h.b16 %v851
        %v1202 = vunpack.c.l.b16 %v852
        %v1203 = vunpack.c.h.b16 %v852
        %v1204 = vunpack.c.l.b16 %v853
        %v1205 = vunpack.c.h.b16 %v853
        %v1206 = vunpack.c.l.b16 %v854
        %v1207 = vunpack.c.h.b16 %v854
        %v1208 = vunpack.c.l.b16 %v855
        %v1209 = vunpack.c.h.b16 %v855
        %v1210 = vunpack.c.l.b16 %v856
        %v1211 = vunpack.c.h.b16 %v856
        %v1212 = vunpack.c.l.b16 %v857
        %v1213 = vunpack.c.h.b16 %v857
        %v1214 = vunpack.c.l.b16 %v858
        %v1215 = vunpack.c.h.b16 %v858
        %v1216 = vunpack.c.l.b16 %v859
        %v1217 = vunpack.c.h.b16 %v859
        %v1218 = vunpack.c.l.b16 %v860
        %v1219 = vunpack.c.h.b16 %v860
        %v1220 = vunpack.c.l.b16 %v861
        %v1221 = vunpack.c.h.b16 %v861
        %v1222 = vunpack.c.l.b16 %v862
        %v1223 = vunpack.c.h.b16 %v862
        %v1224 = vunpack.c.l.b16 %v863
        %v1225 = vunpack.c.h.b16 %v863
        %v1226 = vunpack.c.l.b16 %v864
        %v1227 = vunpack.c.h.b16 %v864
        %v1228 = vunpack.c.l.b16 %v865
        %v1229 = vunpack.c.h.b16 %v865
        %v1230 = vunpack.c.l.b16 %v866
        %v1231 = vunpack.c.h.b16 %v866
        %v1232 = vunpack.c.l.b16 %v867
        %v1233 = vunpack.c.h.b16 %v867
        %v1234 = vunpack.c.l.b16 %v868
        %v1235 = vunpack.c.h.b16 %v868
        %v1236 = vunpack.c.l.b16 %v869
        %v1237 = vunpack.c.h.b16 %v869
        %v1238 = vunpack.c.l.b16 %v870
        %v1239 = vunpack.c.h.b16 %v870
        %v1240 = vunpack.c.l.b16 %v871
        %v1241 = vunpack.c.h.b16 %v871
        %v1242 = vunpack.c.l.b16 %v872
        %v1243 = vunpack.c.h.b16 %v872
        %v1244 = vunpack.c.l.b16 %v873
        %v1245 = vunpack.c.h.b16 %v873
        %v1246 = vunpack.c.l.b16 %v874
        %v1247 = vunpack.c.h.b16 %v874
        %v1248 = vunpack.c.l.b16 %v875
        %v1249 = vunpack.c.h.b16 %v875
        %v1250 = vunpack.c.l.b16 %v876
        %v1251 = vunpack.c.h.b16 %v876
        %v1252 = vunpack.c.l.b16 %v877
        %v1253 = vunpack.c.h.b16 %v877
        %v1254 = vunpack.c.l.b16 %v878
        %v1255 = vunpack.c.h.b16 %v878
        %v1256 = vunpack.c.l.b16 %v879
        %v1257 = vunpack.c.h.b16 %v879
        %v1258 = vunpack.c.l.b16 %v880
        %v1259 = vunpack.c.h.b16 %v880
        %v1260 = vunpack.c.l.b16 %v881
        %v1261 = vunpack.c.h.b16 %v881
        %v1262 = vunpack.c.l.b16 %v882
        %v1263 = vunpack.c.h.b16 %v882
        %v1264 = vunpack.c.l.b16 %v883
        %v1265 = vunpack.c.h.b16 %v883
        %v1266 = vunpack.c.l.b16 %v884
        %v1267 = vunpack.c.h.b16 %v884
        %v1268 = vunpack.c.l.b16 %v885
        %v1269 = vunpack.c.h.b16 %v885
        %v1270 = vunpack.c.l.b16 %v886
        %v1271 = vunpack.c.h.b16 %v886
        %v1272 = vunpack.c.l.b16 %v887
        %v1273 = vunpack.c.h.b16 %v887
        %v1274 = vunpack.c.l.b16 %v888
        %v1275 = vunpack.c.h.b16 %v888
        %v1276 = vunpack.c.l.b16 %v889
        %v1277 = vunpack.c.h.b16 %v889
        %v1278 = vunpack.c.l.b16 %v890
        %v1279 = vunpack.c.h.b16 %v890
        %v1280 = vunpack.c.l.b16 %v891
        %v1281 = vunpack.c.h.b16 %v891
        %v1282 = vunpack.c.l.b16 %v892
        %v1283 = vunpack.c.h.b16 %v892
        %v1284 = vunpack.c.l.b16 %v893
        %v1285 = vunpack.c.h.b16 %v893
        %v1286 = vunpack.c.l.b16 %v894
        %v1287 = vunpack.c.h.b16 %v894
        %v1288 = vunpack.c.l.b16 %v895
        %v1289 = vunpack.c.h.b16 %v895
        %v1290 = vunpack.c.l.b16 %v896
        %v1291 = vunpack.c.h.b16 %v896
        %v1292 = vunpack.c.l.b16 %v897
        %v1293 = vunpack.c.h.b16 %v897
        %v1294 = vunpack.c.l.b16 %v898
        %v1295 = vunpack.c.h.b16 %v898
        %v1296 = vunpack.c.l.b16 %v899
        %v1297 = vunpack.c.h.b16 %v899
        %v1298 = vpack.c.b16 %v1046, %v1042
        %v1299 = vpack.c.b16 %v1047, %v1043
        %v1300 = vpack.c.b16 %v1048, %v1044
        %v1301 = vpack.c.b16 %v1049, %v1045
        %v1302 = vpack.c.b16 %v1054, %v1050
        %v1303 = vpack.c.b16 %v1055, %v1051
        %v1304 = vpack.c.b16 %v1056, %v1052
        %v1305 = vpack.c.b16 %v1057, %v1053
        %v1306 = vpack.c.b16 %v1062, %v1058
        %v1307 = vpack.c.b16 %v1063, %v1059
        %v1308 = vpack.c.b16 %v1064, %v1060
        %v1309 = vpack.c.b16 %v1065, %v1061
        %v1310 = vpack.c.b16 %v1070, %v1066
        %v1311 = vpack.c.b16 %v1071, %v1067
        %v1312 = vpack.c.b16 %v1072, %v1068
        %v1313 = vpack.c.b16 %v1073, %v1069
        %v1314 = vpack.c.b16 %v1078, %v1074
        %v1315 = vpack.c.b16 %v1079, %v1075
        %v1316 = vpack.c.b16 %v1080, %v1076
        %v1317 = vpack.c.b16 %v1081, %v1077
        %v1318 = vpack.c.b16 %v1086, %v1082
        %v1319 = vpack.c.b16 %v1087, %v1083
        %v1320 = vpack.c.b16 %v1088, %v1084
        %v1321 = vpack.c.b16 %v1089, %v1085
        %v1322 = vpack.c.b16 %v1094, %v1090
        %v1323 = vpack.c.b16 %v1095, %v1091
        %v1324 = vpack.c.b16 %v1096, %v1092
        %v1325 = vpack.c.b16 %v1097, %v1093
        %v1326 = vpack.c.b16 %v1102, %v1098
        %v1327 = vpack.c.b16 %v1103, %v1099
        %v1328 = vpack.c.b16 %v1104, %v1100
        %v1329 = vpack.c.b16 %v1105, %v1101
        %v1330 = vpack.c.b16 %v1110, %v1106
        %v1331 = vpack.c.b16 %v1111, %v1107
        %v1332 = vpack.c.b16 %v1112, %v1108
        %v1333 = vpack.c.b16 %v1113, %v1109
        %v1334 = vpack.c.b16 %v1118, %v1114
        %v1335 = vpack.c.b16 %v1119, %v1115
        %v1336 = vpack.c.b16 %v1120, %v1116
        %v1337 = vpack.c.b16 %v1121, %v1117
        %v1338 = vpack.c.b16 %v1126, %v1122
        %v1339 = vpack.c.b16 %v1127, %v1123
        %v1340 = vpack.c.b16 %v1128, %v1124
        %v1341 = vpack.c.b16 %v1129, %v1125
        %v1342 = vpack.c.b16 %v1134, %v1130
        %v1343 = vpack.c.b16 %v1135, %v1131
        %v1344 = vpack.c.b16 %v1136, %v1132
        %v1345 = vpack.c.b16 %v1137, %v1133
        %v1346 = vpack.c.b16 %v1142, %v1138
        %v1347 = vpack.c.b16 %v1143, %v1139
        %v1348 = vpack.c.b16 %v1144, %v1140
        %v1349 = vpack.c.b16 %v1145, %v1141
        %v1350 = vpack.c.b16 %v1150, %v1146
        %v1351 = vpack.c.b16 %v1151, %v1147
        %v1352 = vpack.c.b16 %v1152, %v1148
        %v1353 = vpack.c.b16 %v1153, %v1149
        %v1354 = vpack.c.b16 %v1158, %v1154
        %v1355 = vpack.c.b16 %v1159, %v1155
        %v1356 = vpack.c.b16 %v1160, %v1156
        %v1357 = vpack.c.b16 %v1161, %v1157
        %v1358 = vpack.c.b16 %v1166, %v1162
        %v1359 = vpack.c.b16 %v1167, %v1163
        %v1360 = vpack.c.b16 %v1168, %v1164
        %v1361 = vpack.c.b16 %v1169, %v1165
        %v1362 = vpack.c.b16 %v1174, %v1170
        %v1363 = vpack.c.b16 %v1175, %v1171
        %v1364 = vpack.c.b16 %v1176, %v1172
        %v1365 = vpack.c.b16 %v1177, %v1173
        %v1366 = vpack.c.b16 %v1182, %v1178
        %v1367 = vpack.c.b16 %v1183, %v1179
        %v1368 = vpack.c.b16 %v1184, %v1180
        %v1369 = vpack.c.b16 %v1185, %v1181
        %v1370 = vpack.c.b16 %v1190, %v1186
        %v1371 = vpack.c.b16 %v1191, %v1187
        %v1372 = vpack.c.b16 %v1192, %v1188
        %v1373 = vpack.c.b16 %v1193, %v1189
        %v1374 = vpack.c.b16 %v1198, %v1194
        %v1375 = vpack.c.b16 %v1199, %v1195
        %v1376 = vpack.c.b16 %v1200, %v1196
        %v1377 = vpack.c.b16 %v1201, %v1197
        %v1378 = vpack.c.b16 %v1206, %v1202
        %v1379 = vpack.c.b16 %v1207, %v1203
        %v1380 = vpack.c.b16 %v1208, %v1204
        %v1381 = vpack.c.b16 %v1209, %v1205
        %v1382 = vpack.c.b16 %v1214, %v1210
        %v1383 = vpack.c.b16 %v1215, %v1211
        %v1384 = vpack.c.b16 %v1216, %v1212
        %v1385 = vpack.c.b16 %v1217, %v1213
        %v1386 = vpack.c.b16 %v1222, %v1218
        %v1387 = vpack.c.b16 %v1223, %v1219
        %v1388 = vpack.c.b16 %v1224, %v1220
        %v1389 = vpack.c.b16 %v1225, %v1221
        %v1390 = vpack.c.b16 %v1230, %v1226
        %v1391 = vpack.c.b16 %v1231, %v1227
        %v1392 = vpack.c.b16 %v1232, %v1228
        %v1393 = vpack.c.b16 %v1233, %v1229
        %v1394 = vpack.c.b16 %v1238, %v1234
        %v1395 = vpack.c.b16 %v1239, %v1235
        %v1396 = vpack.c.b16 %v1240, %v1236
        %v1397 = vpack.c.b16 %v1241, %v1237
        %v1398 = vpack.c.b16 %v1246, %v1242
        %v1399 = vpack.c.b16 %v1247, %v1243
        %v1400 = vpack.c.b16 %v1248, %v1244
        %v1401 = vpack.c.b16 %v1249, %v1245
        %v1402 = vpack.c.b16 %v1254, %v1250
        %v1403 = vpack.c.b16 %v1255, %v1251
        %v1404 = vpack.c.b16 %v1256, %v1252
        %v1405 = vpack.c.b16 %v1257, %v1253
        %v1406 = vpack.c.b16 %v1262, %v1258
        %v1407 = vpack.c.b16 %v1263, %v1259
        %v1408 = vpack.c.b16 %v1264, %v1260
        %v1409 = vpack.c.b16 %v1265, %v1261
        %v1410 = vpack.c.b16 %v1270, %v1266
        %v1411 = vpack.c.b16 %v1271, %v1267
        %v1412 = vpack.c.b16 %v1272, %v1268
        %v1413 = vpack.c.b16 %v1273, %v1269
        %v1414 = vpack.c.b16 %v1278, %v1274
        %v1415 = vpack.c.b16 %v1279, %v1275
        %v1416 = vpack.c.b16 %v1280, %v1276
        %v1417 = vpack.c.b16 %v1281, %v1277
        %v1418 = vpack.c.b16 %v1286, %v1282
        %v1419 = vpack.c.b16 %v1287, %v1283
        %v1420 = vpack.c.b16 %v1288, %v1284
        %v1421 = vpack.c.b16 %v1289, %v1285
        %v1422 = vpack.c.b16 %v1294, %v1290
        %v1423 = vpack.c.b16 %v1295, %v1291
        %v1424 = vpack.c.b16 %v1296, %v1292
        %v1425 = vpack.c.b16 %v1297, %v1293
        %1554 = vmatprep.subr.bf16.mxu0 %v1299
        %1555 = vmatpush1.bf16.msra.mxu0 %v1298
        %1556 = vmatprep.subr.bf16.mxu0 %v1303
        %1557 = vmatpush1.bf16.msra.mxu0 %v1302
        %1558 = vmatprep.subr.bf16.mxu0 %v1307
        %1559 = vmatpush1.bf16.msra.mxu0 %v1306
        %1560 = vmatprep.subr.bf16.mxu0 %v1311
        %1561 = vmatpush1.bf16.msra.mxu0 %v1310
        %1562 = vmatprep.subr.bf16.mxu0 %v1315
        %1563 = vmatpush1.bf16.msra.mxu0 %v1314
        %1564 = vmatprep.subr.bf16.mxu0 %v1319
        %1565 = vmatpush1.bf16.msra.mxu0 %v1318
        %1566 = vmatprep.subr.bf16.mxu0 %v1323
        %1567 = vmatpush1.bf16.msra.mxu0 %v1322
        %1568 = vmatprep.subr.bf16.mxu0 %v1327
        %1569 = vmatpush1.bf16.msra.mxu0 %v1326
        %1570 = vmatprep.subr.bf16.mxu0 %v1331
        %1571 = vmatpush1.bf16.msra.mxu0 %v1330
        %1572 = vmatprep.subr.bf16.mxu0 %v1335
        %1573 = vmatpush1.bf16.msra.mxu0 %v1334
        %1574 = vmatprep.subr.bf16.mxu0 %v1339
        %1575 = vmatpush1.bf16.msra.mxu0 %v1338
        %1576 = vmatprep.subr.bf16.mxu0 %v1343
        %1577 = vmatpush1.bf16.msra.mxu0 %v1342
        %1578 = vmatprep.subr.bf16.mxu0 %v1347
        %1579 = vmatpush1.bf16.msra.mxu0 %v1346
        %1580 = vmatprep.subr.bf16.mxu0 %v1351
        %1581 = vmatpush1.bf16.msra.mxu0 %v1350
        %1582 = vmatprep.subr.bf16.mxu0 %v1355
        %1583 = vmatpush1.bf16.msra.mxu0 %v1354
        %1584 = vmatprep.subr.bf16.mxu0 %v1359
        %1585 = vmatpush1.bf16.msra.mxu0 %v1358
        %1586 = vmatprep.mubr.bf16.mxu0 %v907
        %1587 = vmatmul.mubr.bf16.gmra.mrb[0].mxu0 %v906
        %v1588 = vpop.f32.mrb[0].mxu0
        %v1589 = vadd.f32 0.0, %v1588
        %v1590 = vpop.f32.mrb[0].mxu0
        %v1591 = vadd.f32 0.0, %v1590
        %v1592 = vpop.f32.mrb[0].mxu0
        %v1593 = vpop.f32.mrb[0].mxu0
        %1594 = vdwg.mxu0
        %1595 = vmatprep.subr.bf16.mxu0 %v1363
        %1596 = vmatpush1.bf16.msra.mxu0 %v1362
        %1597 = vmatprep.subr.bf16.mxu0 %v1367
        %1598 = vmatpush1.bf16.msra.mxu0 %v1366
        %1599 = vmatprep.subr.bf16.mxu0 %v1371
        %1600 = vmatpush1.bf16.msra.mxu0 %v1370
        %1601 = vmatprep.subr.bf16.mxu0 %v1375
        %1602 = vmatpush1.bf16.msra.mxu0 %v1374
        %1603 = vmatprep.subr.bf16.mxu0 %v1379
        %1604 = vmatpush1.bf16.msra.mxu0 %v1378
        %1605 = vmatprep.subr.bf16.mxu0 %v1383
        %1606 = vmatpush1.bf16.msra.mxu0 %v1382
        %1607 = vmatprep.subr.bf16.mxu0 %v1387
        %1608 = vmatpush1.bf16.msra.mxu0 %v1386
        %1609 = vmatprep.subr.bf16.mxu0 %v1391
        %1610 = vmatpush1.bf16.msra.mxu0 %v1390
        %1611 = vmatprep.subr.bf16.mxu0 %v1395
        %1612 = vmatpush1.bf16.msra.mxu0 %v1394
        %1613 = vmatprep.subr.bf16.mxu0 %v1399
        %1614 = vmatpush1.bf16.msra.mxu0 %v1398
        %1615 = vmatprep.subr.bf16.mxu0 %v1403
        %1616 = vmatpush1.bf16.msra.mxu0 %v1402
        %1617 = vmatprep.subr.bf16.mxu0 %v1407
        %1618 = vmatpush1.bf16.msra.mxu0 %v1406
        %1619 = vmatprep.subr.bf16.mxu0 %v1411
        %1620 = vmatpush1.bf16.msra.mxu0 %v1410
        %1621 = vmatprep.subr.bf16.mxu0 %v1415
        %1622 = vmatpush1.bf16.msra.mxu0 %v1414
        %1623 = vmatprep.subr.bf16.mxu0 %v1419
        %1624 = vmatpush1.bf16.msra.mxu0 %v1418
        %1625 = vmatprep.subr.bf16.mxu0 %v1423
        %1626 = vmatpush1.bf16.msra.mxu0 %v1422
        %1627 = vmatprep.mubr.bf16.mxu0 %v909
        %1628 = vmatmul.mubr.bf16.gmra.mrb[0].mxu0 %v908
        %v1629 = vpop.f32.mrb[0].mxu0
        %v1630 = vadd.f32 %v1589, %v1629
        %v1631 = vpop.f32.mrb[0].mxu0
        %v1632 = vadd.f32 %v1591, %v1631
        %v1633 = vpop.f32.mrb[0].mxu0
        %v1634 = vpop.f32.mrb[0].mxu0
        %1635 = vdwg.mxu0
        %1636 = vmatprep.subr.bf16.mxu0 %v1301
        %1637 = vmatpush1.bf16.msra.mxu0 %v1300
        %1638 = vmatprep.subr.bf16.mxu0 %v1305
        %1639 = vmatpush1.bf16.msra.mxu0 %v1304
        %1640 = vmatprep.subr.bf16.mxu0 %v1309
        %1641 = vmatpush1.bf16.msra.mxu0 %v1308
        %1642 = vmatprep.subr.bf16.mxu0 %v1313
        %1643 = vmatpush1.bf16.msra.mxu0 %v1312
        %1644 = vmatprep.subr.bf16.mxu0 %v1317
        %1645 = vmatpush1.bf16.msra.mxu0 %v1316
        %1646 = vmatprep.subr.bf16.mxu0 %v1321
        %1647 = vmatpush1.bf16.msra.mxu0 %v1320
        %1648 = vmatprep.subr.bf16.mxu0 %v1325
        %1649 = vmatpush1.bf16.msra.mxu0 %v1324
        %1650 = vmatprep.subr.bf16.mxu0 %v1329
        %1651 = vmatpush1.bf16.msra.mxu0 %v1328
        %1652 = vmatprep.subr.bf16.mxu0 %v1333
        %1653 = vmatpush1.bf16.msra.mxu0 %v1332
        %1654 = vmatprep.subr.bf16.mxu0 %v1337
        %1655 = vmatpush1.bf16.msra.mxu0 %v1336
        %1656 = vmatprep.subr.bf16.mxu0 %v1341
        %1657 = vmatpush1.bf16.msra.mxu0 %v1340
        %1658 = vmatprep.subr.bf16.mxu0 %v1345
        %1659 = vmatpush1.bf16.msra.mxu0 %v1344
        %1660 = vmatprep.subr.bf16.mxu0 %v1349
        %1661 = vmatpush1.bf16.msra.mxu0 %v1348
        %1662 = vmatprep.subr.bf16.mxu0 %v1353
        %1663 = vmatpush1.bf16.msra.mxu0 %v1352
        %1664 = vmatprep.subr.bf16.mxu0 %v1357
        %1665 = vmatpush1.bf16.msra.mxu0 %v1356
        %1666 = vmatprep.subr.bf16.mxu0 %v1361
        %1667 = vmatpush1.bf16.msra.mxu0 %v1360
        %1668 = vmatprep.mubr.bf16.mxu0 %v907
        %1669 = vmatmul.mubr.bf16.gmra.mrb[0].mxu0 %v906
        %v1670 = vpop.f32.mrb[0].mxu0
        %v1671 = vadd.f32 0.0, %v1670
        %v1672 = vpop.f32.mrb[0].mxu0
        %v1673 = vadd.f32 0.0, %v1672
        %v1674 = vpop.f32.mrb[0].mxu0
        %v1675 = vpop.f32.mrb[0].mxu0
        %1676 = vdwg.mxu0
        %1677 = vmatprep.subr.bf16.mxu0 %v1365
        %1678 = vmatpush1.bf16.msra.mxu0 %v1364
        %1679 = vmatprep.subr.bf16.mxu0 %v1369
        %1680 = vmatpush1.bf16.msra.mxu0 %v1368
        %1681 = vmatprep.subr.bf16.mxu0 %v1373
        %1682 = vmatpush1.bf16.msra.mxu0 %v1372
        %1683 = vmatprep.subr.bf16.mxu0 %v1377
        %1684 = vmatpush1.bf16.msra.mxu0 %v1376
        %1685 = vmatprep.subr.bf16.mxu0 %v1381
        %1686 = vmatpush1.bf16.msra.mxu0 %v1380
        %1687 = vmatprep.subr.bf16.mxu0 %v1385
        %1688 = vmatpush1.bf16.msra.mxu0 %v1384
        %1689 = vmatprep.subr.bf16.mxu0 %v1389
        %1690 = vmatpush1.bf16.msra.mxu0 %v1388
        %1691 = vmatprep.subr.bf16.mxu0 %v1393
        %1692 = vmatpush1.bf16.msra.mxu0 %v1392
        %1693 = vmatprep.subr.bf16.mxu0 %v1397
        %1694 = vmatpush1.bf16.msra.mxu0 %v1396
        %1695 = vmatprep.subr.bf16.mxu0 %v1401
        %1696 = vmatpush1.bf16.msra.mxu0 %v1400
        %1697 = vmatprep.subr.bf16.mxu0 %v1405
        %1698 = vmatpush1.bf16.msra.mxu0 %v1404
        %1699 = vmatprep.subr.bf16.mxu0 %v1409
        %1700 = vmatpush1.bf16.msra.mxu0 %v1408
        %1701 = vmatprep.subr.bf16.mxu0 %v1413
        %1702 = vmatpush1.bf16.msra.mxu0 %v1412
        %1703 = vmatprep.subr.bf16.mxu0 %v1417
        %1704 = vmatpush1.bf16.msra.mxu0 %v1416
        %1705 = vmatprep.subr.bf16.mxu0 %v1421
        %1706 = vmatpush1.bf16.msra.mxu0 %v1420
        %1707 = vmatprep.subr.bf16.mxu0 %v1425
        %1708 = vmatpush1.bf16.msra.mxu0 %v1424
        %1709 = vmatprep.mubr.bf16.mxu0 %v909
        %1710 = vmatmul.mubr.bf16.gmra.mrb[0].mxu0 %v908
        %v1711 = vpop.f32.mrb[0].mxu0
        %v1712 = vadd.f32 %v1671, %v1711
        %v1713 = vpop.f32.mrb[0].mxu0
        %v1714 = vadd.f32 %v1673, %v1713
        %v1715 = vpop.f32.mrb[0].mxu0
        %v1716 = vpop.f32.mrb[0].mxu0
        %1717 = vdwg.mxu0
        %v1718 = vadd.f32 %v766, %v1630
        %v1719 = vadd.f32 %v767, %v1632
        %v1720 = vadd.f32 %v768, %v1712
        %v1721 = vadd.f32 %v769, %v1714
        %1722 = vst [vmem:[#allocation2] sm:$0xff] %v1718
        %1723 = vst [vmem:[#allocation2 + $0x8] sm:$0xff] %v1719
        %1724 = vst [vmem:[#allocation2 + $0x10] sm:$0xff] %v1720
        %1725 = vst [vmem:[#allocation2 + $0x18] sm:$0xff] %v1721
        %p1726 = scmp.eq.s32.totalorder %s43, 3
        // Predicated region
        $region145: #{tpu_custom_call.1} parent=83 // pred_check
          %p1727 = pneg %p1726
        $region146: #{tpu_custom_call.1} parent=83 // pred_check_branch
          %1729 = sbr.rel (%p1727) target = $region148
        $region147: #{tpu_custom_call.1} parent=83 // pred_region
          %v1730 = vld [vmem:[#allocation2] sm:$0xff]
          %v1731 = vld [vmem:[#allocation2 + $0x8] sm:$0xff]
          %v1732 = vld [vmem:[#allocation2 + $0x10] sm:$0xff]
          %v1733 = vld [vmem:[#allocation2 + $0x18] sm:$0xff]
          %v1734 = vld [vmem:[#allocation8] sm:$0xf]
          %v1736 = vlaneseq
          %v1737 = vshrl.u32 %v1736, 7
          %v1738 = vsub.s32 0, %v1737
          %v1739 = vrot.slane %v1734, %v1738
          %v1740 = vlaneseq
          %v1741 = vshrl.u32 %v1740, 7
          %v1742 = vsub.s32 1, %v1741
          %v1743 = vrot.slane %v1734, %v1742
          %v1744 = vlaneseq
          %v1745 = vshrl.u32 %v1744, 7
          %v1746 = vsub.s32 2, %v1745
          %v1747 = vrot.slane %v1734, %v1746
          %v1748 = vlaneseq
          %v1749 = vshrl.u32 %v1748, 7
          %v1750 = vsub.s32 3, %v1749
          %v1751 = vrot.slane %v1734, %v1750
          %v1756 = vadd.f32 %v1730, %v1739
          %v1757 = vadd.f32 %v1731, %v1743
          %v1758 = vadd.f32 %v1732, %v1747
          %v1759 = vadd.f32 %v1733, %v1751
          %v1760 = vmax.f32 %v1756, 0.0
          %v1761 = vmax.f32 %v1757, 0.0
          %v1762 = vmax.f32 %v1758, 0.0
          %v1763 = vmax.f32 %v1759, 0.0
          %v1764 = vpack.c.bf16 %v1760, %v1760
          %v1765 = vpack.c.bf16 %v1761, %v1761
          %v1766 = vpack.c.bf16 %v1762, %v1762
          %v1767 = vpack.c.bf16 %v1763, %v1763
          %v1768 = vld [vmem:[#allocation9] sm:$0xf]
          %v1769 = vld [vmem:[#allocation9 + $0x4] sm:$0xf]
          %v1770 = vld [vmem:[#allocation9 + $0x8] sm:$0xf]
          %v1771 = vld [vmem:[#allocation9 + $0xc] sm:$0xf]
          %v1772 = vld [vmem:[#allocation9 + $0x10] sm:$0xf]
          %v1773 = vld [vmem:[#allocation9 + $0x14] sm:$0xf]
          %v1774 = vld [vmem:[#allocation9 + $0x18] sm:$0xf]
          %v1775 = vld [vmem:[#allocation9 + $0x1c] sm:$0xf]
          %v1776 = vld [vmem:[#allocation9 + $0x20] sm:$0xf]
          %v1777 = vld [vmem:[#allocation9 + $0x24] sm:$0xf]
          %v1778 = vld [vmem:[#allocation9 + $0x28] sm:$0xf]
          %v1779 = vld [vmem:[#allocation9 + $0x2c] sm:$0xf]
          %v1780 = vld [vmem:[#allocation9 + $0x30] sm:$0xf]
          %v1781 = vld [vmem:[#allocation9 + $0x34] sm:$0xf]
          %v1782 = vld [vmem:[#allocation9 + $0x38] sm:$0xf]
          %v1783 = vld [vmem:[#allocation9 + $0x3c] sm:$0xf]
          %v1784 = vld [vmem:[#allocation9 + $0x40] sm:$0xf]
          %v1785 = vld [vmem:[#allocation9 + $0x44] sm:$0xf]
          %v1786 = vld [vmem:[#allocation9 + $0x48] sm:$0xf]
          %v1787 = vld [vmem:[#allocation9 + $0x4c] sm:$0xf]
          %v1788 = vld [vmem:[#allocation9 + $0x50] sm:$0xf]
          %v1789 = vld [vmem:[#allocation9 + $0x54] sm:$0xf]
          %v1790 = vld [vmem:[#allocation9 + $0x58] sm:$0xf]
          %v1791 = vld [vmem:[#allocation9 + $0x5c] sm:$0xf]
          %v1792 = vld [vmem:[#allocation9 + $0x60] sm:$0xf]
          %v1793 = vld [vmem:[#allocation9 + $0x64] sm:$0xf]
          %v1794 = vld [vmem:[#allocation9 + $0x68] sm:$0xf]
          %v1795 = vld [vmem:[#allocation9 + $0x6c] sm:$0xf]
          %v1796 = vld [vmem:[#allocation9 + $0x70] sm:$0xf]
          %v1797 = vld [vmem:[#allocation9 + $0x74] sm:$0xf]
          %v1798 = vld [vmem:[#allocation9 + $0x78] sm:$0xf]
          %v1799 = vld [vmem:[#allocation9 + $0x7c] sm:$0xf]
          %v1800 = vld [vmem:[#allocation9 + $0x80] sm:$0xf]
          %v1801 = vld [vmem:[#allocation9 + $0x84] sm:$0xf]
          %v1802 = vld [vmem:[#allocation9 + $0x88] sm:$0xf]
          %v1803 = vld [vmem:[#allocation9 + $0x8c] sm:$0xf]
          %v1804 = vld [vmem:[#allocation9 + $0x90] sm:$0xf]
          %v1805 = vld [vmem:[#allocation9 + $0x94] sm:$0xf]
          %v1806 = vld [vmem:[#allocation9 + $0x98] sm:$0xf]
          %v1807 = vld [vmem:[#allocation9 + $0x9c] sm:$0xf]
          %v1808 = vld [vmem:[#allocation9 + $0xa0] sm:$0xf]
          %v1809 = vld [vmem:[#allocation9 + $0xa4] sm:$0xf]
          %v1810 = vld [vmem:[#allocation9 + $0xa8] sm:$0xf]
          %v1811 = vld [vmem:[#allocation9 + $0xac] sm:$0xf]
          %v1812 = vld [vmem:[#allocation9 + $0xb0] sm:$0xf]
          %v1813 = vld [vmem:[#allocation9 + $0xb4] sm:$0xf]
          %v1814 = vld [vmem:[#allocation9 + $0xb8] sm:$0xf]
          %v1815 = vld [vmem:[#allocation9 + $0xbc] sm:$0xf]
          %v1816 = vld [vmem:[#allocation9 + $0xc0] sm:$0xf]
          %v1817 = vld [vmem:[#allocation9 + $0xc4] sm:$0xf]
          %v1818 = vld [vmem:[#allocation9 + $0xc8] sm:$0xf]
          %v1819 = vld [vmem:[#allocation9 + $0xcc] sm:$0xf]
          %v1820 = vld [vmem:[#allocation9 + $0xd0] sm:$0xf]
          %v1821 = vld [vmem:[#allocation9 + $0xd4] sm:$0xf]
          %v1822 = vld [vmem:[#allocation9 + $0xd8] sm:$0xf]
          %v1823 = vld [vmem:[#allocation9 + $0xdc] sm:$0xf]
          %v1824 = vld [vmem:[#allocation9 + $0xe0] sm:$0xf]
          %v1825 = vld [vmem:[#allocation9 + $0xe4] sm:$0xf]
          %v1826 = vld [vmem:[#allocation9 + $0xe8] sm:$0xf]
          %v1827 = vld [vmem:[#allocation9 + $0xec] sm:$0xf]
          %v1828 = vld [vmem:[#allocation9 + $0xf0] sm:$0xf]
          %v1829 = vld [vmem:[#allocation9 + $0xf4] sm:$0xf]
          %v1830 = vld [vmem:[#allocation9 + $0xf8] sm:$0xf]
          %v1831 = vld [vmem:[#allocation9 + $0xfc] sm:$0xf]
          %v1832 = vld [vmem:[#allocation11] sm:$0x1]
          %v1834 = vlaneseq
          %v1835 = vshrl.u32 %v1834, 7
          %v1836 = vsub.s32 0, %v1835
          %v1837 = vrot.slane %v1832, %v1836
          %v1903 = vunpack.c.l.b16 %v1768
          %v1904 = vunpack.c.l.b16 %v1769
          %v1905 = vunpack.c.l.b16 %v1770
          %v1906 = vunpack.c.l.b16 %v1771
          %v1907 = vunpack.c.l.b16 %v1772
          %v1908 = vunpack.c.l.b16 %v1773
          %v1909 = vunpack.c.l.b16 %v1774
          %v1910 = vunpack.c.l.b16 %v1775
          %v1911 = vunpack.c.l.b16 %v1776
          %v1912 = vunpack.c.l.b16 %v1777
          %v1913 = vunpack.c.l.b16 %v1778
          %v1914 = vunpack.c.l.b16 %v1779
          %v1915 = vunpack.c.l.b16 %v1780
          %v1916 = vunpack.c.l.b16 %v1781
          %v1917 = vunpack.c.l.b16 %v1782
          %v1918 = vunpack.c.l.b16 %v1783
          %v1919 = vunpack.c.l.b16 %v1784
          %v1920 = vunpack.c.l.b16 %v1785
          %v1921 = vunpack.c.l.b16 %v1786
          %v1922 = vunpack.c.l.b16 %v1787
          %v1923 = vunpack.c.l.b16 %v1788
          %v1924 = vunpack.c.l.b16 %v1789
          %v1925 = vunpack.c.l.b16 %v1790
          %v1926 = vunpack.c.l.b16 %v1791
          %v1927 = vunpack.c.l.b16 %v1792
          %v1928 = vunpack.c.l.b16 %v1793
          %v1929 = vunpack.c.l.b16 %v1794
          %v1930 = vunpack.c.l.b16 %v1795
          %v1931 = vunpack.c.l.b16 %v1796
          %v1932 = vunpack.c.l.b16 %v1797
          %v1933 = vunpack.c.l.b16 %v1798
          %v1934 = vunpack.c.l.b16 %v1799
          %v1935 = vunpack.c.l.b16 %v1800
          %v1936 = vunpack.c.l.b16 %v1801
          %v1937 = vunpack.c.l.b16 %v1802
          %v1938 = vunpack.c.l.b16 %v1803
          %v1939 = vunpack.c.l.b16 %v1804
          %v1940 = vunpack.c.l.b16 %v1805
          %v1941 = vunpack.c.l.b16 %v1806
          %v1942 = vunpack.c.l.b16 %v1807
          %v1943 = vunpack.c.l.b16 %v1808
          %v1944 = vunpack.c.l.b16 %v1809
          %v1945 = vunpack.c.l.b16 %v1810
          %v1946 = vunpack.c.l.b16 %v1811
          %v1947 = vunpack.c.l.b16 %v1812
          %v1948 = vunpack.c.l.b16 %v1813
          %v1949 = vunpack.c.l.b16 %v1814
          %v1950 = vunpack.c.l.b16 %v1815
          %v1951 = vunpack.c.l.b16 %v1816
          %v1952 = vunpack.c.l.b16 %v1817
          %v1953 = vunpack.c.l.b16 %v1818
          %v1954 = vunpack.c.l.b16 %v1819
          %v1955 = vunpack.c.l.b16 %v1820
          %v1956 = vunpack.c.l.b16 %v1821
          %v1957 = vunpack.c.l.b16 %v1822
          %v1958 = vunpack.c.l.b16 %v1823
          %v1959 = vunpack.c.l.b16 %v1824
          %v1960 = vunpack.c.l.b16 %v1825
          %v1961 = vunpack.c.l.b16 %v1826
          %v1962 = vunpack.c.l.b16 %v1827
          %v1963 = vunpack.c.l.b16 %v1828
          %v1964 = vunpack.c.l.b16 %v1829
          %v1965 = vunpack.c.l.b16 %v1830
          %v1966 = vunpack.c.l.b16 %v1831
          %v1967 = vpack.c.b16 %v1904, %v1903
          %v1968 = vpack.c.b16 %v1906, %v1905
          %v1969 = vpack.c.b16 %v1908, %v1907
          %v1970 = vpack.c.b16 %v1910, %v1909
          %v1971 = vpack.c.b16 %v1912, %v1911
          %v1972 = vpack.c.b16 %v1914, %v1913
          %v1973 = vpack.c.b16 %v1916, %v1915
          %v1974 = vpack.c.b16 %v1918, %v1917
          %v1975 = vpack.c.b16 %v1920, %v1919
          %v1976 = vpack.c.b16 %v1922, %v1921
          %v1977 = vpack.c.b16 %v1924, %v1923
          %v1978 = vpack.c.b16 %v1926, %v1925
          %v1979 = vpack.c.b16 %v1928, %v1927
          %v1980 = vpack.c.b16 %v1930, %v1929
          %v1981 = vpack.c.b16 %v1932, %v1931
          %v1982 = vpack.c.b16 %v1934, %v1933
          %v1983 = vpack.c.b16 %v1936, %v1935
          %v1984 = vpack.c.b16 %v1938, %v1937
          %v1985 = vpack.c.b16 %v1940, %v1939
          %v1986 = vpack.c.b16 %v1942, %v1941
          %v1987 = vpack.c.b16 %v1944, %v1943
          %v1988 = vpack.c.b16 %v1946, %v1945
          %v1989 = vpack.c.b16 %v1948, %v1947
          %v1990 = vpack.c.b16 %v1950, %v1949
          %v1991 = vpack.c.b16 %v1952, %v1951
          %v1992 = vpack.c.b16 %v1954, %v1953
          %v1993 = vpack.c.b16 %v1956, %v1955
          %v1994 = vpack.c.b16 %v1958, %v1957
          %v1995 = vpack.c.b16 %v1960, %v1959
          %v1996 = vpack.c.b16 %v1962, %v1961
          %v1997 = vpack.c.b16 %v1964, %v1963
          %v1998 = vpack.c.b16 %v1966, %v1965
          %2031 = vmatprep.subr.bf16.mxu0 0
          %2032 = vmatpush1.bf16.msra.mxu0 %v1967
          %2033 = vmatprep.subr.bf16.mxu0 0
          %2034 = vmatpush1.bf16.msra.mxu0 %v1968
          %2035 = vmatprep.subr.bf16.mxu0 0
          %2036 = vmatpush1.bf16.msra.mxu0 %v1969
          %2037 = vmatprep.subr.bf16.mxu0 0
          %2038 = vmatpush1.bf16.msra.mxu0 %v1970
          %2039 = vmatprep.subr.bf16.mxu0 0
          %2040 = vmatpush1.bf16.msra.mxu0 %v1971
          %2041 = vmatprep.subr.bf16.mxu0 0
          %2042 = vmatpush1.bf16.msra.mxu0 %v1972
          %2043 = vmatprep.subr.bf16.mxu0 0
          %2044 = vmatpush1.bf16.msra.mxu0 %v1973
          %2045 = vmatprep.subr.bf16.mxu0 0
          %2046 = vmatpush1.bf16.msra.mxu0 %v1974
          %2047 = vmatprep.subr.bf16.mxu0 0
          %2048 = vmatpush1.bf16.msra.mxu0 %v1975
          %2049 = vmatprep.subr.bf16.mxu0 0
          %2050 = vmatpush1.bf16.msra.mxu0 %v1976
          %2051 = vmatprep.subr.bf16.mxu0 0
          %2052 = vmatpush1.bf16.msra.mxu0 %v1977
          %2053 = vmatprep.subr.bf16.mxu0 0
          %2054 = vmatpush1.bf16.msra.mxu0 %v1978
          %2055 = vmatprep.subr.bf16.mxu0 0
          %2056 = vmatpush1.bf16.msra.mxu0 %v1979
          %2057 = vmatprep.subr.bf16.mxu0 0
          %2058 = vmatpush1.bf16.msra.mxu0 %v1980
          %2059 = vmatprep.subr.bf16.mxu0 0
          %2060 = vmatpush1.bf16.msra.mxu0 %v1981
          %2061 = vmatprep.subr.bf16.mxu0 0
          %2062 = vmatpush1.bf16.msra.mxu0 %v1982
          %2063 = vmatprep.mubr.bf16.mxu0 %v1765
          %2064 = vmatmul.mubr.bf16.gmra.mrb[0].mxu0 %v1764
          %v2065 = vpop.f32.mrb[0].mxu0
          %v2066 = vadd.f32 %v1837, %v2065
          %v2067 = vpop.f32.mrb[0].mxu0
          %v2068 = vpop.f32.mrb[0].mxu0
          %v2069 = vpop.f32.mrb[0].mxu0
          %2070 = vdwg.mxu0
          %2071 = vmatprep.subr.bf16.mxu0 0
          %2072 = vmatpush1.bf16.msra.mxu0 %v1983
          %2073 = vmatprep.subr.bf16.mxu0 0
          %2074 = vmatpush1.bf16.msra.mxu0 %v1984
          %2075 = vmatprep.subr.bf16.mxu0 0
          %2076 = vmatpush1.bf16.msra.mxu0 %v1985
          %2077 = vmatprep.subr.bf16.mxu0 0
          %2078 = vmatpush1.bf16.msra.mxu0 %v1986
          %2079 = vmatprep.subr.bf16.mxu0 0
          %2080 = vmatpush1.bf16.msra.mxu0 %v1987
          %2081 = vmatprep.subr.bf16.mxu0 0
          %2082 = vmatpush1.bf16.msra.mxu0 %v1988
          %2083 = vmatprep.subr.bf16.mxu0 0
          %2084 = vmatpush1.bf16.msra.mxu0 %v1989
          %2085 = vmatprep.subr.bf16.mxu0 0
          %2086 = vmatpush1.bf16.msra.mxu0 %v1990
          %2087 = vmatprep.subr.bf16.mxu0 0
          %2088 = vmatpush1.bf16.msra.mxu0 %v1991
          %2089 = vmatprep.subr.bf16.mxu0 0
          %2090 = vmatpush1.bf16.msra.mxu0 %v1992
          %2091 = vmatprep.subr.bf16.mxu0 0
          %2092 = vmatpush1.bf16.msra.mxu0 %v1993
          %2093 = vmatprep.subr.bf16.mxu0 0
          %2094 = vmatpush1.bf16.msra.mxu0 %v1994
          %2095 = vmatprep.subr.bf16.mxu0 0
          %2096 = vmatpush1.bf16.msra.mxu0 %v1995
          %2097 = vmatprep.subr.bf16.mxu0 0
          %2098 = vmatpush1.bf16.msra.mxu0 %v1996
          %2099 = vmatprep.subr.bf16.mxu0 0
          %2100 = vmatpush1.bf16.msra.mxu0 %v1997
          %2101 = vmatprep.subr.bf16.mxu0 0
          %2102 = vmatpush1.bf16.msra.mxu0 %v1998
          %2103 = vmatprep.mubr.bf16.mxu0 %v1767
          %2104 = vmatmul.mubr.bf16.gmra.mrb[0].mxu0 %v1766
          %v2105 = vpop.f32.mrb[0].mxu0
          %v2106 = vadd.f32 %v2066, %v2105
          %v2107 = vpop.f32.mrb[0].mxu0
          %v2108 = vpop.f32.mrb[0].mxu0
          %v2109 = vpop.f32.mrb[0].mxu0
          %2110 = vdwg.mxu0
          %v2111 = vpack.c.bf16 %v2106, %v2106
          %v2112 = vld [vmem:[#allocation12] sm:$0xf]
          %v2113 = vld [vmem:[#allocation12 + $0x4] sm:$0xf]
          %v2114 = vld [vmem:[#allocation12 + $0x8] sm:$0xf]
          %v2115 = vld [vmem:[#allocation12 + $0xc] sm:$0xf]
          %v2116 = vld [vmem:[#allocation12 + $0x10] sm:$0xf]
          %v2117 = vld [vmem:[#allocation12 + $0x14] sm:$0xf]
          %v2118 = vld [vmem:[#allocation12 + $0x18] sm:$0xf]
          %v2119 = vld [vmem:[#allocation12 + $0x1c] sm:$0xf]
          %v2120 = vld [vmem:[#allocation12 + $0x20] sm:$0xf]
          %v2121 = vld [vmem:[#allocation12 + $0x24] sm:$0xf]
          %v2122 = vld [vmem:[#allocation12 + $0x28] sm:$0xf]
          %v2123 = vld [vmem:[#allocation12 + $0x2c] sm:$0xf]
          %v2124 = vld [vmem:[#allocation12 + $0x30] sm:$0xf]
          %v2125 = vld [vmem:[#allocation12 + $0x34] sm:$0xf]
          %v2126 = vld [vmem:[#allocation12 + $0x38] sm:$0xf]
          %v2127 = vld [vmem:[#allocation12 + $0x3c] sm:$0xf]
          %v2144 = vunpack.c.l.b16 %v2112
          %v2145 = vunpack.c.l.b16 %v2113
          %v2146 = vunpack.c.l.b16 %v2114
          %v2147 = vunpack.c.l.b16 %v2115
          %v2148 = vunpack.c.l.b16 %v2116
          %v2149 = vunpack.c.l.b16 %v2117
          %v2150 = vunpack.c.l.b16 %v2118
          %v2151 = vunpack.c.l.b16 %v2119
          %v2152 = vunpack.c.l.b16 %v2120
          %v2153 = vunpack.c.l.b16 %v2121
          %v2154 = vunpack.c.l.b16 %v2122
          %v2155 = vunpack.c.l.b16 %v2123
          %v2156 = vunpack.c.l.b16 %v2124
          %v2157 = vunpack.c.l.b16 %v2125
          %v2158 = vunpack.c.l.b16 %v2126
          %v2159 = vunpack.c.l.b16 %v2127
          %v2160 = vpack.c.b16 %v2145, %v2144
          %v2161 = vpack.c.b16 %v2147, %v2146
          %v2162 = vpack.c.b16 %v2149, %v2148
          %v2163 = vpack.c.b16 %v2151, %v2150
          %v2164 = vpack.c.b16 %v2153, %v2152
          %v2165 = vpack.c.b16 %v2155, %v2154
          %v2166 = vpack.c.b16 %v2157, %v2156
          %v2167 = vpack.c.b16 %v2159, %v2158
          %2176 = vmatprep.subr.bf16.mxu0 0
          %2177 = vmatpush1.bf16.msra.mxu0 %v2160
          %2178 = vmatprep.subr.bf16.mxu0 0
          %2179 = vmatpush1.bf16.msra.mxu0 %v2161
          %2180 = vmatprep.subr.bf16.mxu0 0
          %2181 = vmatpush1.bf16.msra.mxu0 %v2162
          %2182 = vmatprep.subr.bf16.mxu0 0
          %2183 = vmatpush1.bf16.msra.mxu0 %v2163
          %2184 = vmatprep.subr.bf16.mxu0 0
          %2185 = vmatpush1.bf16.msra.mxu0 %v2164
          %2186 = vmatprep.subr.bf16.mxu0 0
          %2187 = vmatpush1.bf16.msra.mxu0 %v2165
          %2188 = vmatprep.subr.bf16.mxu0 0
          %2189 = vmatpush1.bf16.msra.mxu0 %v2166
          %2190 = vmatprep.subr.bf16.mxu0 0
          %2191 = vmatpush1.bf16.msra.mxu0 %v2167
          %2192 = vmatprep.subr.bf16.mxu0 0
          %2193 = vmatpush1.bf16.msra.mxu0 0
          %2194 = vmatprep.subr.bf16.mxu0 0
          %2195 = vmatpush1.bf16.msra.mxu0 0
          %2196 = vmatprep.subr.bf16.mxu0 0
          %2197 = vmatpush1.bf16.msra.mxu0 0
          %2198 = vmatprep.subr.bf16.mxu0 0
          %2199 = vmatpush1.bf16.msra.mxu0 0
          %2200 = vmatprep.subr.bf16.mxu0 0
          %2201 = vmatpush1.bf16.msra.mxu0 0
          %2202 = vmatprep.subr.bf16.mxu0 0
          %2203 = vmatpush1.bf16.msra.mxu0 0
          %2204 = vmatprep.subr.bf16.mxu0 0
          %2205 = vmatpush1.bf16.msra.mxu0 0
          %2206 = vmatprep.subr.bf16.mxu0 0
          %2207 = vmatpush1.bf16.msra.mxu0 0
          %2208 = vmatprep.mubr.bf16.mxu0 0
          %2209 = vmatmul.mubr.bf16.gmra.mrb[0].mxu0 %v2111
          %v2210 = vpop.f32.mrb[0].mxu0
          %v2211 = vadd.f32 0.0, %v2210
          %v2212 = vpop.f32.mrb[0].mxu0
          %v2213 = vpop.f32.mrb[0].mxu0
          %v2214 = vpop.f32.mrb[0].mxu0
          %2215 = vdwg.mxu0
          %v2216 = vld [vmem:[#allocation14] sm:$0xf]
          %v2217 = vld [vmem:[#allocation14 + $0x4] sm:$0xf]
          %v2218 = vld [vmem:[#allocation14 + $0x8] sm:$0xf]
          %v2219 = vld [vmem:[#allocation14 + $0xc] sm:$0xf]
          %v2220 = vld [vmem:[#allocation14 + $0x10] sm:$0xf]
          %v2221 = vld [vmem:[#allocation14 + $0x14] sm:$0xf]
          %v2222 = vld [vmem:[#allocation14 + $0x18] sm:$0xf]
          %v2223 = vld [vmem:[#allocation14 + $0x1c] sm:$0xf]
          %v2224 = vld [vmem:[#allocation14 + $0x20] sm:$0xf]
          %v2225 = vld [vmem:[#allocation14 + $0x24] sm:$0xf]
          %v2226 = vld [vmem:[#allocation14 + $0x28] sm:$0xf]
          %v2227 = vld [vmem:[#allocation14 + $0x2c] sm:$0xf]
          %v2228 = vld [vmem:[#allocation14 + $0x30] sm:$0xf]
          %v2229 = vld [vmem:[#allocation14 + $0x34] sm:$0xf]
          %v2230 = vld [vmem:[#allocation14 + $0x38] sm:$0xf]
          %v2231 = vld [vmem:[#allocation14 + $0x3c] sm:$0xf]
          %v2248 = vunpack.c.l.b16 %v2216
          %v2249 = vunpack.c.l.b16 %v2217
          %v2250 = vunpack.c.l.b16 %v2218
          %v2251 = vunpack.c.l.b16 %v2219
          %v2252 = vunpack.c.l.b16 %v2220
          %v2253 = vunpack.c.l.b16 %v2221
          %v2254 = vunpack.c.l.b16 %v2222
          %v2255 = vunpack.c.l.b16 %v2223
          %v2256 = vunpack.c.l.b16 %v2224
          %v2257 = vunpack.c.l.b16 %v2225
          %v2258 = vunpack.c.l.b16 %v2226
          %v2259 = vunpack.c.l.b16 %v2227
          %v2260 = vunpack.c.l.b16 %v2228
          %v2261 = vunpack.c.l.b16 %v2229
          %v2262 = vunpack.c.l.b16 %v2230
          %v2263 = vunpack.c.l.b16 %v2231
          %v2264 = vpack.c.b16 %v2249, %v2248
          %v2265 = vpack.c.b16 %v2251, %v2250
          %v2266 = vpack.c.b16 %v2253, %v2252
          %v2267 = vpack.c.b16 %v2255, %v2254
          %v2268 = vpack.c.b16 %v2257, %v2256
          %v2269 = vpack.c.b16 %v2259, %v2258
          %v2270 = vpack.c.b16 %v2261, %v2260
          %v2271 = vpack.c.b16 %v2263, %v2262
          %2280 = vmatprep.subr.bf16.mxu0 0
          %2281 = vmatpush1.bf16.msra.mxu0 %v2264
          %2282 = vmatprep.subr.bf16.mxu0 0
          %2283 = vmatpush1.bf16.msra.mxu0 %v2265
          %2284 = vmatprep.subr.bf16.mxu0 0
          %2285 = vmatpush1.bf16.msra.mxu0 %v2266
          %2286 = vmatprep.subr.bf16.mxu0 0
          %2287 = vmatpush1.bf16.msra.mxu0 %v2267
          %2288 = vmatprep.subr.bf16.mxu0 0
          %2289 = vmatpush1.bf16.msra.mxu0 %v2268
          %2290 = vmatprep.subr.bf16.mxu0 0
          %2291 = vmatpush1.bf16.msra.mxu0 %v2269
          %2292 = vmatprep.subr.bf16.mxu0 0
          %2293 = vmatpush1.bf16.msra.mxu0 %v2270
          %2294 = vmatprep.subr.bf16.mxu0 0
          %2295 = vmatpush1.bf16.msra.mxu0 %v2271
          %2296 = vmatprep.subr.bf16.mxu0 0
          %2297 = vmatpush1.bf16.msra.mxu0 0
          %2298 = vmatprep.subr.bf16.mxu0 0
          %2299 = vmatpush1.bf16.msra.mxu0 0
          %2300 = vmatprep.subr.bf16.mxu0 0
          %2301 = vmatpush1.bf16.msra.mxu0 0
          %2302 = vmatprep.subr.bf16.mxu0 0
          %2303 = vmatpush1.bf16.msra.mxu0 0
          %2304 = vmatprep.subr.bf16.mxu0 0
          %2305 = vmatpush1.bf16.msra.mxu0 0
          %2306 = vmatprep.subr.bf16.mxu0 0
          %2307 = vmatpush1.bf16.msra.mxu0 0
          %2308 = vmatprep.subr.bf16.mxu0 0
          %2309 = vmatpush1.bf16.msra.mxu0 0
          %2310 = vmatprep.subr.bf16.mxu0 0
          %2311 = vmatpush1.bf16.msra.mxu0 0
          %2312 = vmatprep.mubr.bf16.mxu0 0
          %2313 = vmatmul.mubr.bf16.gmra.mrb[0].mxu0 %v2111
          %v2314 = vpop.f32.mrb[0].mxu0
          %v2315 = vadd.f32 0.0, %v2314
          %v2316 = vpop.f32.mrb[0].mxu0
          %v2317 = vpop.f32.mrb[0].mxu0
          %v2318 = vpop.f32.mrb[0].mxu0
          %2319 = vdwg.mxu0
          %v2320 = vld [vmem:[#allocation15] sm:$0xf]
          %v2321 = vld [vmem:[#allocation15 + $0x4] sm:$0xf]
          %v2322 = vld [vmem:[#allocation15 + $0x8] sm:$0xf]
          %v2323 = vld [vmem:[#allocation15 + $0xc] sm:$0xf]
          %v2324 = vld [vmem:[#allocation15 + $0x10] sm:$0xf]
          %v2325 = vld [vmem:[#allocation15 + $0x14] sm:$0xf]
          %v2326 = vld [vmem:[#allocation15 + $0x18] sm:$0xf]
          %v2327 = vld [vmem:[#allocation15 + $0x1c] sm:$0xf]
          %v2328 = vld [vmem:[#allocation15 + $0x20] sm:$0xf]
          %v2329 = vld [vmem:[#allocation15 + $0x24] sm:$0xf]
          %v2330 = vld [vmem:[#allocation15 + $0x28] sm:$0xf]
          %v2331 = vld [vmem:[#allocation15 + $0x2c] sm:$0xf]
          %v2332 = vld [vmem:[#allocation15 + $0x30] sm:$0xf]
          %v2333 = vld [vmem:[#allocation15 + $0x34] sm:$0xf]
          %v2334 = vld [vmem:[#allocation15 + $0x38] sm:$0xf]
          %v2335 = vld [vmem:[#allocation15 + $0x3c] sm:$0xf]
          %v2352 = vunpack.c.l.b16 %v2320
          %v2353 = vunpack.c.l.b16 %v2321
          %v2354 = vunpack.c.l.b16 %v2322
          %v2355 = vunpack.c.l.b16 %v2323
          %v2356 = vunpack.c.l.b16 %v2324
          %v2357 = vunpack.c.l.b16 %v2325
          %v2358 = vunpack.c.l.b16 %v2326
          %v2359 = vunpack.c.l.b16 %v2327
          %v2360 = vunpack.c.l.b16 %v2328
          %v2361 = vunpack.c.l.b16 %v2329
          %v2362 = vunpack.c.l.b16 %v2330
          %v2363 = vunpack.c.l.b16 %v2331
          %v2364 = vunpack.c.l.b16 %v2332
          %v2365 = vunpack.c.l.b16 %v2333
          %v2366 = vunpack.c.l.b16 %v2334
          %v2367 = vunpack.c.l.b16 %v2335
          %v2368 = vpack.c.b16 %v2353, %v2352
          %v2369 = vpack.c.b16 %v2355, %v2354
          %v2370 = vpack.c.b16 %v2357, %v2356
          %v2371 = vpack.c.b16 %v2359, %v2358
          %v2372 = vpack.c.b16 %v2361, %v2360
          %v2373 = vpack.c.b16 %v2363, %v2362
          %v2374 = vpack.c.b16 %v2365, %v2364
          %v2375 = vpack.c.b16 %v2367, %v2366
          %2384 = vmatprep.subr.bf16.mxu0 0
          %2385 = vmatpush1.bf16.msra.mxu0 %v2368
          %2386 = vmatprep.subr.bf16.mxu0 0
          %2387 = vmatpush1.bf16.msra.mxu0 %v2369
          %2388 = vmatprep.subr.bf16.mxu0 0
          %2389 = vmatpush1.bf16.msra.mxu0 %v2370
          %2390 = vmatprep.subr.bf16.mxu0 0
          %2391 = vmatpush1.bf16.msra.mxu0 %v2371
          %2392 = vmatprep.subr.bf16.mxu0 0
          %2393 = vmatpush1.bf16.msra.mxu0 %v2372
          %2394 = vmatprep.subr.bf16.mxu0 0
          %2395 = vmatpush1.bf16.msra.mxu0 %v2373
          %2396 = vmatprep.subr.bf16.mxu0 0
          %2397 = vmatpush1.bf16.msra.mxu0 %v2374
          %2398 = vmatprep.subr.bf16.mxu0 0
          %2399 = vmatpush1.bf16.msra.mxu0 %v2375
          %2400 = vmatprep.subr.bf16.mxu0 0
          %2401 = vmatpush1.bf16.msra.mxu0 0
          %2402 = vmatprep.subr.bf16.mxu0 0
          %2403 = vmatpush1.bf16.msra.mxu0 0
          %2404 = vmatprep.subr.bf16.mxu0 0
          %2405 = vmatpush1.bf16.msra.mxu0 0
          %2406 = vmatprep.subr.bf16.mxu0 0
          %2407 = vmatpush1.bf16.msra.mxu0 0
          %2408 = vmatprep.subr.bf16.mxu0 0
          %2409 = vmatpush1.bf16.msra.mxu0 0
          %2410 = vmatprep.subr.bf16.mxu0 0
          %2411 = vmatpush1.bf16.msra.mxu0 0
          %2412 = vmatprep.subr.bf16.mxu0 0
          %2413 = vmatpush1.bf16.msra.mxu0 0
          %2414 = vmatprep.subr.bf16.mxu0 0
          %2415 = vmatpush1.bf16.msra.mxu0 0
          %2416 = vmatprep.mubr.bf16.mxu0 0
          %2417 = vmatmul.mubr.bf16.gmra.mrb[0].mxu0 %v2111
          %v2418 = vpop.f32.mrb[0].mxu0
          %v2419 = vadd.f32 0.0, %v2418
          %v2420 = vpop.f32.mrb[0].mxu0
          %v2421 = vpop.f32.mrb[0].mxu0
          %v2422 = vpop.f32.mrb[0].mxu0
          %2423 = vdwg.mxu0
          %2425 = vrot.lane.b32.xlu0 %v2211, 112
          %v2426 = vpop.permute.xlu0 %2425
          %2428 = vrot.lane.b32.xlu0 %v2211, 96
          %v2429 = vpop.permute.xlu0 %2428
          %2431 = vrot.lane.b32.xlu0 %v2211, 80
          %v2432 = vpop.permute.xlu0 %2431
          %2434 = vrot.lane.b32.xlu0 %v2211, 64
          %v2435 = vpop.permute.xlu0 %2434
          %2437 = vrot.lane.b32.xlu0 %v2211, 48
          %v2438 = vpop.permute.xlu0 %2437
          %2440 = vrot.lane.b32.xlu0 %v2211, 32
          %v2441 = vpop.permute.xlu0 %2440
          %2443 = vrot.lane.b32.xlu0 %v2211, 16
          %v2444 = vpop.permute.xlu0 %2443
          %v2446 = vcombine.low %v2211, %v2429
          %v2447 = vcombine.high %v2211, %v2429
          %v2449 = vunpack.c.l.s4 1983009808
          %v2450 = vunpack.c.0.s8 %v2449
          %v2451 = vlaneseq
          %v2452 = vshrl.u32 %v2451, 7
          %v2453 = vsub.s32 %v2450, %v2452
          %v2454 = vrot.slane %v2446, %v2453
          %v2456 = vunpack.c.l.s4 1983009808
          %v2457 = vunpack.c.0.s8 %v2456
          %v2458 = vlaneseq
          %v2459 = vshrl.u32 %v2458, 7
          %v2460 = vsub.s32 %v2457, %v2459
          %v2461 = vrot.slane %v2447, %v2460
          %v2462 = vcombine.low %v2426, %v2432
          %v2463 = vcombine.high %v2426, %v2432
          %v2465 = vunpack.c.l.s4 1983009808
          %v2466 = vunpack.c.0.s8 %v2465
          %v2467 = vlaneseq
          %v2468 = vshrl.u32 %v2467, 7
          %v2469 = vsub.s32 %v2466, %v2468
          %v2470 = vrot.slane %v2462, %v2469
          %v2472 = vunpack.c.l.s4 1983009808
          %v2473 = vunpack.c.0.s8 %v2472
          %v2474 = vlaneseq
          %v2475 = vshrl.u32 %v2474, 7
          %v2476 = vsub.s32 %v2473, %v2475
          %v2477 = vrot.slane %v2463, %v2476
          %v2478 = vcombine.low %v2435, %v2441
          %v2479 = vcombine.high %v2435, %v2441
          %v2481 = vunpack.c.l.s4 1983009808
          %v2482 = vunpack.c.0.s8 %v2481
          %v2483 = vlaneseq
          %v2484 = vshrl.u32 %v2483, 7
          %v2485 = vsub.s32 %v2482, %v2484
          %v2486 = vrot.slane %v2478, %v2485
          %v2488 = vunpack.c.l.s4 1983009808
          %v2489 = vunpack.c.0.s8 %v2488
          %v2490 = vlaneseq
          %v2491 = vshrl.u32 %v2490, 7
          %v2492 = vsub.s32 %v2489, %v2491
          %v2493 = vrot.slane %v2479, %v2492
          %v2494 = vcombine.low %v2438, %v2444
          %v2495 = vcombine.high %v2438, %v2444
          %v2497 = vunpack.c.l.s4 1983009808
          %v2498 = vunpack.c.0.s8 %v2497
          %v2499 = vlaneseq
          %v2500 = vshrl.u32 %v2499, 7
          %v2501 = vsub.s32 %v2498, %v2500
          %v2502 = vrot.slane %v2494, %v2501
          %v2504 = vunpack.c.l.s4 1983009808
          %v2505 = vunpack.c.0.s8 %v2504
          %v2506 = vlaneseq
          %v2507 = vshrl.u32 %v2506, 7
          %v2508 = vsub.s32 %v2505, %v2507
          %v2509 = vrot.slane %v2495, %v2508
          %v2510 = vcombine.low %v2454, %v2470
          %v2511 = vcombine.high %v2454, %v2470
          %v2513 = vunpack.c.l.s4 1934713408
          %v2514 = vunpack.c.0.s8 %v2513
          %v2515 = vlaneseq
          %v2516 = vshrl.u32 %v2515, 7
          %v2517 = vsub.s32 %v2514, %v2516
          %v2518 = vrot.slane %v2510, %v2517
          %v2520 = vunpack.c.l.s4 1934713408
          %v2521 = vunpack.c.0.s8 %v2520
          %v2522 = vlaneseq
          %v2523 = vshrl.u32 %v2522, 7
          %v2524 = vsub.s32 %v2521, %v2523
          %v2525 = vrot.slane %v2511, %v2524
          %v2526 = vcombine.low %v2461, %v2477
          %v2527 = vcombine.high %v2461, %v2477
          %v2529 = vunpack.c.l.s4 1934713408
          %v2530 = vunpack.c.0.s8 %v2529
          %v2531 = vlaneseq
          %v2532 = vshrl.u32 %v2531, 7
          %v2533 = vsub.s32 %v2530, %v2532
          %v2534 = vrot.slane %v2526, %v2533
          %v2536 = vunpack.c.l.s4 1934713408
          %v2537 = vunpack.c.0.s8 %v2536
          %v2538 = vlaneseq
          %v2539 = vshrl.u32 %v2538, 7
          %v2540 = vsub.s32 %v2537, %v2539
          %v2541 = vrot.slane %v2527, %v2540
          %v2542 = vcombine.low %v2486, %v2502
          %v2543 = vcombine.high %v2486, %v2502
          %v2545 = vunpack.c.l.s4 1934713408
          %v2546 = vunpack.c.0.s8 %v2545
          %v2547 = vlaneseq
          %v2548 = vshrl.u32 %v2547, 7
          %v2549 = vsub.s32 %v2546, %v2548
          %v2550 = vrot.slane %v2542, %v2549
          %v2552 = vunpack.c.l.s4 1934713408
          %v2553 = vunpack.c.0.s8 %v2552
          %v2554 = vlaneseq
          %v2555 = vshrl.u32 %v2554, 7
          %v2556 = vsub.s32 %v2553, %v2555
          %v2557 = vrot.slane %v2543, %v2556
          %v2558 = vcombine.low %v2493, %v2509
          %v2559 = vcombine.high %v2493, %v2509
          %v2561 = vunpack.c.l.s4 1934713408
          %v2562 = vunpack.c.0.s8 %v2561
          %v2563 = vlaneseq
          %v2564 = vshrl.u32 %v2563, 7
          %v2565 = vsub.s32 %v2562, %v2564
          %v2566 = vrot.slane %v2558, %v2565
          %v2568 = vunpack.c.l.s4 1934713408
          %v2569 = vunpack.c.0.s8 %v2568
          %v2570 = vlaneseq
          %v2571 = vshrl.u32 %v2570, 7
          %v2572 = vsub.s32 %v2569, %v2571
          %v2573 = vrot.slane %v2559, %v2572
          %v2574 = vcombine.low %v2518, %v2550
          %v2575 = vcombine.high %v2518, %v2550
          %v2576 = vcombine.low %v2525, %v2557
          %v2577 = vcombine.high %v2525, %v2557
          %v2578 = vcombine.low %v2534, %v2566
          %v2579 = vcombine.high %v2534, %v2566
          %v2580 = vcombine.low %v2541, %v2573
          %v2581 = vcombine.high %v2541, %v2573
          %v2582 = vcombine.low %v2574, %v2576
          %v2583 = vcombine.high %v2574, %v2576
          %v2585 = vunpack.c.l.s4 1983009808
          %v2586 = vunpack.c.0.s8 %v2585
          %v2587 = vlaneseq
          %v2588 = vshrl.u32 %v2587, 7
          %v2589 = vsub.s32 %v2586, %v2588
          %v2590 = vrot.slane %v2582, %v2589
          %v2592 = vunpack.c.l.s4 1983009808
          %v2593 = vunpack.c.0.s8 %v2592
          %v2594 = vlaneseq
          %v2595 = vshrl.u32 %v2594, 7
          %v2596 = vsub.s32 %v2593, %v2595
          %v2597 = vrot.slane %v2583, %v2596
          %v2598 = vcombine.low %v2575, %v2577
          %v2599 = vcombine.high %v2575, %v2577
          %v2601 = vunpack.c.l.s4 1983009808
          %v2602 = vunpack.c.0.s8 %v2601
          %v2603 = vlaneseq
          %v2604 = vshrl.u32 %v2603, 7
          %v2605 = vsub.s32 %v2602, %v2604
          %v2606 = vrot.slane %v2598, %v2605
          %v2608 = vunpack.c.l.s4 1983009808
          %v2609 = vunpack.c.0.s8 %v2608
          %v2610 = vlaneseq
          %v2611 = vshrl.u32 %v2610, 7
          %v2612 = vsub.s32 %v2609, %v2611
          %v2613 = vrot.slane %v2599, %v2612
          %v2614 = vcombine.low %v2578, %v2580
          %v2615 = vcombine.high %v2578, %v2580
          %v2617 = vunpack.c.l.s4 1983009808
          %v2618 = vunpack.c.0.s8 %v2617
          %v2619 = vlaneseq
          %v2620 = vshrl.u32 %v2619, 7
          %v2621 = vsub.s32 %v2618, %v2620
          %v2622 = vrot.slane %v2614, %v2621
          %v2624 = vunpack.c.l.s4 1983009808
          %v2625 = vunpack.c.0.s8 %v2624
          %v2626 = vlaneseq
          %v2627 = vshrl.u32 %v2626, 7
          %v2628 = vsub.s32 %v2625, %v2627
          %v2629 = vrot.slane %v2615, %v2628
          %v2630 = vcombine.low %v2579, %v2581
          %v2631 = vcombine.high %v2579, %v2581
          %v2633 = vunpack.c.l.s4 1983009808
          %v2634 = vunpack.c.0.s8 %v2633
          %v2635 = vlaneseq
          %v2636 = vshrl.u32 %v2635, 7
          %v2637 = vsub.s32 %v2634, %v2636
          %v2638 = vrot.slane %v2630, %v2637
          %v2640 = vunpack.c.l.s4 1983009808
          %v2641 = vunpack.c.0.s8 %v2640
          %v2642 = vlaneseq
          %v2643 = vshrl.u32 %v2642, 7
          %v2644 = vsub.s32 %v2641, %v2643
          %v2645 = vrot.slane %v2631, %v2644
          %v2646 = vcombine.low %v2590, %v2606
          %v2647 = vcombine.high %v2590, %v2606
          %v2649 = vunpack.c.l.s4 1934713408
          %v2650 = vunpack.c.0.s8 %v2649
          %v2651 = vlaneseq
          %v2652 = vshrl.u32 %v2651, 7
          %v2653 = vsub.s32 %v2650, %v2652
          %v2654 = vrot.slane %v2646, %v2653
          %v2656 = vunpack.c.l.s4 1934713408
          %v2657 = vunpack.c.0.s8 %v2656
          %v2658 = vlaneseq
          %v2659 = vshrl.u32 %v2658, 7
          %v2660 = vsub.s32 %v2657, %v2659
          %v2661 = vrot.slane %v2647, %v2660
          %v2662 = vcombine.low %v2597, %v2613
          %v2663 = vcombine.high %v2597, %v2613
          %v2665 = vunpack.c.l.s4 1934713408
          %v2666 = vunpack.c.0.s8 %v2665
          %v2667 = vlaneseq
          %v2668 = vshrl.u32 %v2667, 7
          %v2669 = vsub.s32 %v2666, %v2668
          %v2670 = vrot.slane %v2662, %v2669
          %v2672 = vunpack.c.l.s4 1934713408
          %v2673 = vunpack.c.0.s8 %v2672
          %v2674 = vlaneseq
          %v2675 = vshrl.u32 %v2674, 7
          %v2676 = vsub.s32 %v2673, %v2675
          %v2677 = vrot.slane %v2663, %v2676
          %v2678 = vcombine.low %v2622, %v2638
          %v2679 = vcombine.high %v2622, %v2638
          %v2681 = vunpack.c.l.s4 1934713408
          %v2682 = vunpack.c.0.s8 %v2681
          %v2683 = vlaneseq
          %v2684 = vshrl.u32 %v2683, 7
          %v2685 = vsub.s32 %v2682, %v2684
          %v2686 = vrot.slane %v2678, %v2685
          %v2688 = vunpack.c.l.s4 1934713408
          %v2689 = vunpack.c.0.s8 %v2688
          %v2690 = vlaneseq
          %v2691 = vshrl.u32 %v2690, 7
          %v2692 = vsub.s32 %v2689, %v2691
          %v2693 = vrot.slane %v2679, %v2692
          %v2694 = vcombine.low %v2629, %v2645
          %v2695 = vcombine.high %v2629, %v2645
          %v2697 = vunpack.c.l.s4 1934713408
          %v2698 = vunpack.c.0.s8 %v2697
          %v2699 = vlaneseq
          %v2700 = vshrl.u32 %v2699, 7
          %v2701 = vsub.s32 %v2698, %v2700
          %v2702 = vrot.slane %v2694, %v2701
          %v2704 = vunpack.c.l.s4 1934713408
          %v2705 = vunpack.c.0.s8 %v2704
          %v2706 = vlaneseq
          %v2707 = vshrl.u32 %v2706, 7
          %v2708 = vsub.s32 %v2705, %v2707
          %v2709 = vrot.slane %v2695, %v2708
          %v2710 = vcombine.low %v2654, %v2686
          %v2711 = vcombine.high %v2654, %v2686
          %v2712 = vcombine.low %v2661, %v2693
          %v2713 = vcombine.high %v2661, %v2693
          %v2714 = vcombine.low %v2670, %v2702
          %v2715 = vcombine.high %v2670, %v2702
          %v2716 = vcombine.low %v2677, %v2709
          %v2717 = vcombine.high %v2677, %v2709
          %2719 = vrot.lane.b32.xlu0 %v2315, 112
          %v2720 = vpop.permute.xlu0 %2719
          %2722 = vrot.lane.b32.xlu0 %v2315, 96
          %v2723 = vpop.permute.xlu0 %2722
          %2725 = vrot.lane.b32.xlu0 %v2315, 80
          %v2726 = vpop.permute.xlu0 %2725
          %2728 = vrot.lane.b32.xlu0 %v2315, 64
          %v2729 = vpop.permute.xlu0 %2728
          %2731 = vrot.lane.b32.xlu0 %v2315, 48
          %v2732 = vpop.permute.xlu0 %2731
          %2734 = vrot.lane.b32.xlu0 %v2315, 32
          %v2735 = vpop.permute.xlu0 %2734
          %2737 = vrot.lane.b32.xlu0 %v2315, 16
          %v2738 = vpop.permute.xlu0 %2737
          %v2740 = vcombine.low %v2315, %v2723
          %v2741 = vcombine.high %v2315, %v2723
          %v2743 = vunpack.c.l.s4 1983009808
          %v2744 = vunpack.c.0.s8 %v2743
          %v2745 = vlaneseq
          %v2746 = vshrl.u32 %v2745, 7
          %v2747 = vsub.s32 %v2744, %v2746
          %v2748 = vrot.slane %v2740, %v2747
          %v2750 = vunpack.c.l.s4 1983009808
          %v2751 = vunpack.c.0.s8 %v2750
          %v2752 = vlaneseq
          %v2753 = vshrl.u32 %v2752, 7
          %v2754 = vsub.s32 %v2751, %v2753
          %v2755 = vrot.slane %v2741, %v2754
          %v2756 = vcombine.low %v2720, %v2726
          %v2757 = vcombine.high %v2720, %v2726
          %v2759 = vunpack.c.l.s4 1983009808
          %v2760 = vunpack.c.0.s8 %v2759
          %v2761 = vlaneseq
          %v2762 = vshrl.u32 %v2761, 7
          %v2763 = vsub.s32 %v2760, %v2762
          %v2764 = vrot.slane %v2756, %v2763
          %v2766 = vunpack.c.l.s4 1983009808
          %v2767 = vunpack.c.0.s8 %v2766
          %v2768 = vlaneseq
          %v2769 = vshrl.u32 %v2768, 7
          %v2770 = vsub.s32 %v2767, %v2769
          %v2771 = vrot.slane %v2757, %v2770
          %v2772 = vcombine.low %v2729, %v2735
          %v2773 = vcombine.high %v2729, %v2735
          %v2775 = vunpack.c.l.s4 1983009808
          %v2776 = vunpack.c.0.s8 %v2775
          %v2777 = vlaneseq
          %v2778 = vshrl.u32 %v2777, 7
          %v2779 = vsub.s32 %v2776, %v2778
          %v2780 = vrot.slane %v2772, %v2779
          %v2782 = vunpack.c.l.s4 1983009808
          %v2783 = vunpack.c.0.s8 %v2782
          %v2784 = vlaneseq
          %v2785 = vshrl.u32 %v2784, 7
          %v2786 = vsub.s32 %v2783, %v2785
          %v2787 = vrot.slane %v2773, %v2786
          %v2788 = vcombine.low %v2732, %v2738
          %v2789 = vcombine.high %v2732, %v2738
          %v2791 = vunpack.c.l.s4 1983009808
          %v2792 = vunpack.c.0.s8 %v2791
          %v2793 = vlaneseq
          %v2794 = vshrl.u32 %v2793, 7
          %v2795 = vsub.s32 %v2792, %v2794
          %v2796 = vrot.slane %v2788, %v2795
          %v2798 = vunpack.c.l.s4 1983009808
          %v2799 = vunpack.c.0.s8 %v2798
          %v2800 = vlaneseq
          %v2801 = vshrl.u32 %v2800, 7
          %v2802 = vsub.s32 %v2799, %v2801
          %v2803 = vrot.slane %v2789, %v2802
          %v2804 = vcombine.low %v2748, %v2764
          %v2805 = vcombine.high %v2748, %v2764
          %v2807 = vunpack.c.l.s4 1934713408
          %v2808 = vunpack.c.0.s8 %v2807
          %v2809 = vlaneseq
          %v2810 = vshrl.u32 %v2809, 7
          %v2811 = vsub.s32 %v2808, %v2810
          %v2812 = vrot.slane %v2804, %v2811
          %v2814 = vunpack.c.l.s4 1934713408
          %v2815 = vunpack.c.0.s8 %v2814
          %v2816 = vlaneseq
          %v2817 = vshrl.u32 %v2816, 7
          %v2818 = vsub.s32 %v2815, %v2817
          %v2819 = vrot.slane %v2805, %v2818
          %v2820 = vcombine.low %v2755, %v2771
          %v2821 = vcombine.high %v2755, %v2771
          %v2823 = vunpack.c.l.s4 1934713408
          %v2824 = vunpack.c.0.s8 %v2823
          %v2825 = vlaneseq
          %v2826 = vshrl.u32 %v2825, 7
          %v2827 = vsub.s32 %v2824, %v2826
          %v2828 = vrot.slane %v2820, %v2827
          %v2830 = vunpack.c.l.s4 1934713408
          %v2831 = vunpack.c.0.s8 %v2830
          %v2832 = vlaneseq
          %v2833 = vshrl.u32 %v2832, 7
          %v2834 = vsub.s32 %v2831, %v2833
          %v2835 = vrot.slane %v2821, %v2834
          %v2836 = vcombine.low %v2780, %v2796
          %v2837 = vcombine.high %v2780, %v2796
          %v2839 = vunpack.c.l.s4 1934713408
          %v2840 = vunpack.c.0.s8 %v2839
          %v2841 = vlaneseq
          %v2842 = vshrl.u32 %v2841, 7
          %v2843 = vsub.s32 %v2840, %v2842
          %v2844 = vrot.slane %v2836, %v2843
          %v2846 = vunpack.c.l.s4 1934713408
          %v2847 = vunpack.c.0.s8 %v2846
          %v2848 = vlaneseq
          %v2849 = vshrl.u32 %v2848, 7
          %v2850 = vsub.s32 %v2847, %v2849
          %v2851 = vrot.slane %v2837, %v2850
          %v2852 = vcombine.low %v2787, %v2803
          %v2853 = vcombine.high %v2787, %v2803
          %v2855 = vunpack.c.l.s4 1934713408
          %v2856 = vunpack.c.0.s8 %v2855
          %v2857 = vlaneseq
          %v2858 = vshrl.u32 %v2857, 7
          %v2859 = vsub.s32 %v2856, %v2858
          %v2860 = vrot.slane %v2852, %v2859
          %v2862 = vunpack.c.l.s4 1934713408
          %v2863 = vunpack.c.0.s8 %v2862
          %v2864 = vlaneseq
          %v2865 = vshrl.u32 %v2864, 7
          %v2866 = vsub.s32 %v2863, %v2865
          %v2867 = vrot.slane %v2853, %v2866
          %v2868 = vcombine.low %v2812, %v2844
          %v2869 = vcombine.high %v2812, %v2844
          %v2870 = vcombine.low %v2819, %v2851
          %v2871 = vcombine.high %v2819, %v2851
          %v2872 = vcombine.low %v2828, %v2860
          %v2873 = vcombine.high %v2828, %v2860
          %v2874 = vcombine.low %v2835, %v2867
          %v2875 = vcombine.high %v2835, %v2867
          %v2876 = vcombine.low %v2868, %v2870
          %v2877 = vcombine.high %v2868, %v2870
          %v2879 = vunpack.c.l.s4 1983009808
          %v2880 = vunpack.c.0.s8 %v2879
          %v2881 = vlaneseq
          %v2882 = vshrl.u32 %v2881, 7
          %v2883 = vsub.s32 %v2880, %v2882
          %v2884 = vrot.slane %v2876, %v2883
          %v2886 = vunpack.c.l.s4 1983009808
          %v2887 = vunpack.c.0.s8 %v2886
          %v2888 = vlaneseq
          %v2889 = vshrl.u32 %v2888, 7
          %v2890 = vsub.s32 %v2887, %v2889
          %v2891 = vrot.slane %v2877, %v2890
          %v2892 = vcombine.low %v2869, %v2871
          %v2893 = vcombine.high %v2869, %v2871
          %v2895 = vunpack.c.l.s4 1983009808
          %v2896 = vunpack.c.0.s8 %v2895
          %v2897 = vlaneseq
          %v2898 = vshrl.u32 %v2897, 7
          %v2899 = vsub.s32 %v2896, %v2898
          %v2900 = vrot.slane %v2892, %v2899
          %v2902 = vunpack.c.l.s4 1983009808
          %v2903 = vunpack.c.0.s8 %v2902
          %v2904 = vlaneseq
          %v2905 = vshrl.u32 %v2904, 7
          %v2906 = vsub.s32 %v2903, %v2905
          %v2907 = vrot.slane %v2893, %v2906
          %v2908 = vcombine.low %v2872, %v2874
          %v2909 = vcombine.high %v2872, %v2874
          %v2911 = vunpack.c.l.s4 1983009808
          %v2912 = vunpack.c.0.s8 %v2911
          %v2913 = vlaneseq
          %v2914 = vshrl.u32 %v2913, 7
          %v2915 = vsub.s32 %v2912, %v2914
          %v2916 = vrot.slane %v2908, %v2915
          %v2918 = vunpack.c.l.s4 1983009808
          %v2919 = vunpack.c.0.s8 %v2918
          %v2920 = vlaneseq
          %v2921 = vshrl.u32 %v2920, 7
          %v2922 = vsub.s32 %v2919, %v2921
          %v2923 = vrot.slane %v2909, %v2922
          %v2924 = vcombine.low %v2873, %v2875
          %v2925 = vcombine.high %v2873, %v2875
          %v2927 = vunpack.c.l.s4 1983009808
          %v2928 = vunpack.c.0.s8 %v2927
          %v2929 = vlaneseq
          %v2930 = vshrl.u32 %v2929, 7
          %v2931 = vsub.s32 %v2928, %v2930
          %v2932 = vrot.slane %v2924, %v2931
          %v2934 = vunpack.c.l.s4 1983009808
          %v2935 = vunpack.c.0.s8 %v2934
          %v2936 = vlaneseq
          %v2937 = vshrl.u32 %v2936, 7
          %v2938 = vsub.s32 %v2935, %v2937
          %v2939 = vrot.slane %v2925, %v2938
          %v2940 = vcombine.low %v2884, %v2900
          %v2941 = vcombine.high %v2884, %v2900
          %v2943 = vunpack.c.l.s4 1934713408
          %v2944 = vunpack.c.0.s8 %v2943
          %v2945 = vlaneseq
          %v2946 = vshrl.u32 %v2945, 7
          %v2947 = vsub.s32 %v2944, %v2946
          %v2948 = vrot.slane %v2940, %v2947
          %v2950 = vunpack.c.l.s4 1934713408
          %v2951 = vunpack.c.0.s8 %v2950
          %v2952 = vlaneseq
          %v2953 = vshrl.u32 %v2952, 7
          %v2954 = vsub.s32 %v2951, %v2953
          %v2955 = vrot.slane %v2941, %v2954
          %v2956 = vcombine.low %v2891, %v2907
          %v2957 = vcombine.high %v2891, %v2907
          %v2959 = vunpack.c.l.s4 1934713408
          %v2960 = vunpack.c.0.s8 %v2959
          %v2961 = vlaneseq
          %v2962 = vshrl.u32 %v2961, 7
          %v2963 = vsub.s32 %v2960, %v2962
          %v2964 = vrot.slane %v2956, %v2963
          %v2966 = vunpack.c.l.s4 1934713408
          %v2967 = vunpack.c.0.s8 %v2966
          %v2968 = vlaneseq
          %v2969 = vshrl.u32 %v2968, 7
          %v2970 = vsub.s32 %v2967, %v2969
          %v2971 = vrot.slane %v2957, %v2970
          %v2972 = vcombine.low %v2916, %v2932
          %v2973 = vcombine.high %v2916, %v2932
          %v2975 = vunpack.c.l.s4 1934713408
          %v2976 = vunpack.c.0.s8 %v2975
          %v2977 = vlaneseq
          %v2978 = vshrl.u32 %v2977, 7
          %v2979 = vsub.s32 %v2976, %v2978
          %v2980 = vrot.slane %v2972, %v2979
          %v2982 = vunpack.c.l.s4 1934713408
          %v2983 = vunpack.c.0.s8 %v2982
          %v2984 = vlaneseq
          %v2985 = vshrl.u32 %v2984, 7
          %v2986 = vsub.s32 %v2983, %v2985
          %v2987 = vrot.slane %v2973, %v2986
          %v2988 = vcombine.low %v2923, %v2939
          %v2989 = vcombine.high %v2923, %v2939
          %v2991 = vunpack.c.l.s4 1934713408
          %v2992 = vunpack.c.0.s8 %v2991
          %v2993 = vlaneseq
          %v2994 = vshrl.u32 %v2993, 7
          %v2995 = vsub.s32 %v2992, %v2994
          %v2996 = vrot.slane %v2988, %v2995
          %v2998 = vunpack.c.l.s4 1934713408
          %v2999 = vunpack.c.0.s8 %v2998
          %v3000 = vlaneseq
          %v3001 = vshrl.u32 %v3000, 7
          %v3002 = vsub.s32 %v2999, %v3001
          %v3003 = vrot.slane %v2989, %v3002
          %v3004 = vcombine.low %v2948, %v2980
          %v3005 = vcombine.high %v2948, %v2980
          %v3006 = vcombine.low %v2955, %v2987
          %v3007 = vcombine.high %v2955, %v2987
          %v3008 = vcombine.low %v2964, %v2996
          %v3009 = vcombine.high %v2964, %v2996
          %v3010 = vcombine.low %v2971, %v3003
          %v3011 = vcombine.high %v2971, %v3003
          %3013 = vrot.lane.b32.xlu0 %v2419, 112
          %v3014 = vpop.permute.xlu0 %3013
          %3016 = vrot.lane.b32.xlu0 %v2419, 96
          %v3017 = vpop.permute.xlu0 %3016
          %3019 = vrot.lane.b32.xlu0 %v2419, 80
          %v3020 = vpop.permute.xlu0 %3019
          %3022 = vrot.lane.b32.xlu0 %v2419, 64
          %v3023 = vpop.permute.xlu0 %3022
          %3025 = vrot.lane.b32.xlu0 %v2419, 48
          %v3026 = vpop.permute.xlu0 %3025
          %3028 = vrot.lane.b32.xlu0 %v2419, 32
          %v3029 = vpop.permute.xlu0 %3028
          %3031 = vrot.lane.b32.xlu0 %v2419, 16
          %v3032 = vpop.permute.xlu0 %3031
          %v3034 = vcombine.low %v2419, %v3017
          %v3035 = vcombine.high %v2419, %v3017
          %v3037 = vunpack.c.l.s4 1983009808
          %v3038 = vunpack.c.0.s8 %v3037
          %v3039 = vlaneseq
          %v3040 = vshrl.u32 %v3039, 7
          %v3041 = vsub.s32 %v3038, %v3040
          %v3042 = vrot.slane %v3034, %v3041
          %v3044 = vunpack.c.l.s4 1983009808
          %v3045 = vunpack.c.0.s8 %v3044
          %v3046 = vlaneseq
          %v3047 = vshrl.u32 %v3046, 7
          %v3048 = vsub.s32 %v3045, %v3047
          %v3049 = vrot.slane %v3035, %v3048
          %v3050 = vcombine.low %v3014, %v3020
          %v3051 = vcombine.high %v3014, %v3020
          %v3053 = vunpack.c.l.s4 1983009808
          %v3054 = vunpack.c.0.s8 %v3053
          %v3055 = vlaneseq
          %v3056 = vshrl.u32 %v3055, 7
          %v3057 = vsub.s32 %v3054, %v3056
          %v3058 = vrot.slane %v3050, %v3057
          %v3060 = vunpack.c.l.s4 1983009808
          %v3061 = vunpack.c.0.s8 %v3060
          %v3062 = vlaneseq
          %v3063 = vshrl.u32 %v3062, 7
          %v3064 = vsub.s32 %v3061, %v3063
          %v3065 = vrot.slane %v3051, %v3064
          %v3066 = vcombine.low %v3023, %v3029
          %v3067 = vcombine.high %v3023, %v3029
          %v3069 = vunpack.c.l.s4 1983009808
          %v3070 = vunpack.c.0.s8 %v3069
          %v3071 = vlaneseq
          %v3072 = vshrl.u32 %v3071, 7
          %v3073 = vsub.s32 %v3070, %v3072
          %v3074 = vrot.slane %v3066, %v3073
          %v3076 = vunpack.c.l.s4 1983009808
          %v3077 = vunpack.c.0.s8 %v3076
          %v3078 = vlaneseq
          %v3079 = vshrl.u32 %v3078, 7
          %v3080 = vsub.s32 %v3077, %v3079
          %v3081 = vrot.slane %v3067, %v3080
          %v3082 = vcombine.low %v3026, %v3032
          %v3083 = vcombine.high %v3026, %v3032
          %v3085 = vunpack.c.l.s4 1983009808
          %v3086 = vunpack.c.0.s8 %v3085
          %v3087 = vlaneseq
          %v3088 = vshrl.u32 %v3087, 7
          %v3089 = vsub.s32 %v3086, %v3088
          %v3090 = vrot.slane %v3082, %v3089
          %v3092 = vunpack.c.l.s4 1983009808
          %v3093 = vunpack.c.0.s8 %v3092
          %v3094 = vlaneseq
          %v3095 = vshrl.u32 %v3094, 7
          %v3096 = vsub.s32 %v3093, %v3095
          %v3097 = vrot.slane %v3083, %v3096
          %v3098 = vcombine.low %v3042, %v3058
          %v3099 = vcombine.high %v3042, %v3058
          %v3101 = vunpack.c.l.s4 1934713408
          %v3102 = vunpack.c.0.s8 %v3101
          %v3103 = vlaneseq
          %v3104 = vshrl.u32 %v3103, 7
          %v3105 = vsub.s32 %v3102, %v3104
          %v3106 = vrot.slane %v3098, %v3105
          %v3108 = vunpack.c.l.s4 1934713408
          %v3109 = vunpack.c.0.s8 %v3108
          %v3110 = vlaneseq
          %v3111 = vshrl.u32 %v3110, 7
          %v3112 = vsub.s32 %v3109, %v3111
          %v3113 = vrot.slane %v3099, %v3112
          %v3114 = vcombine.low %v3049, %v3065
          %v3115 = vcombine.high %v3049, %v3065
          %v3117 = vunpack.c.l.s4 1934713408
          %v3118 = vunpack.c.0.s8 %v3117
          %v3119 = vlaneseq
          %v3120 = vshrl.u32 %v3119, 7
          %v3121 = vsub.s32 %v3118, %v3120
          %v3122 = vrot.slane %v3114, %v3121
          %v3124 = vunpack.c.l.s4 1934713408
          %v3125 = vunpack.c.0.s8 %v3124
          %v3126 = vlaneseq
          %v3127 = vshrl.u32 %v3126, 7
          %v3128 = vsub.s32 %v3125, %v3127
          %v3129 = vrot.slane %v3115, %v3128
          %v3130 = vcombine.low %v3074, %v3090
          %v3131 = vcombine.high %v3074, %v3090
          %v3133 = vunpack.c.l.s4 1934713408
          %v3134 = vunpack.c.0.s8 %v3133
          %v3135 = vlaneseq
          %v3136 = vshrl.u32 %v3135, 7
          %v3137 = vsub.s32 %v3134, %v3136
          %v3138 = vrot.slane %v3130, %v3137
          %v3140 = vunpack.c.l.s4 1934713408
          %v3141 = vunpack.c.0.s8 %v3140
          %v3142 = vlaneseq
          %v3143 = vshrl.u32 %v3142, 7
          %v3144 = vsub.s32 %v3141, %v3143
          %v3145 = vrot.slane %v3131, %v3144
          %v3146 = vcombine.low %v3081, %v3097
          %v3147 = vcombine.high %v3081, %v3097
          %v3149 = vunpack.c.l.s4 1934713408
          %v3150 = vunpack.c.0.s8 %v3149
          %v3151 = vlaneseq
          %v3152 = vshrl.u32 %v3151, 7
          %v3153 = vsub.s32 %v3150, %v3152
          %v3154 = vrot.slane %v3146, %v3153
          %v3156 = vunpack.c.l.s4 1934713408
          %v3157 = vunpack.c.0.s8 %v3156
          %v3158 = vlaneseq
          %v3159 = vshrl.u32 %v3158, 7
          %v3160 = vsub.s32 %v3157, %v3159
          %v3161 = vrot.slane %v3147, %v3160
          %v3162 = vcombine.low %v3106, %v3138
          %v3163 = vcombine.high %v3106, %v3138
          %v3164 = vcombine.low %v3113, %v3145
          %v3165 = vcombine.high %v3113, %v3145
          %v3166 = vcombine.low %v3122, %v3154
          %v3167 = vcombine.high %v3122, %v3154
          %v3168 = vcombine.low %v3129, %v3161
          %v3169 = vcombine.high %v3129, %v3161
          %v3170 = vcombine.low %v3162, %v3164
          %v3171 = vcombine.high %v3162, %v3164
          %v3173 = vunpack.c.l.s4 1983009808
          %v3174 = vunpack.c.0.s8 %v3173
          %v3175 = vlaneseq
          %v3176 = vshrl.u32 %v3175, 7
          %v3177 = vsub.s32 %v3174, %v3176
          %v3178 = vrot.slane %v3170, %v3177
          %v3180 = vunpack.c.l.s4 1983009808
          %v3181 = vunpack.c.0.s8 %v3180
          %v3182 = vlaneseq
          %v3183 = vshrl.u32 %v3182, 7
          %v3184 = vsub.s32 %v3181, %v3183
          %v3185 = vrot.slane %v3171, %v3184
          %v3186 = vcombine.low %v3163, %v3165
          %v3187 = vcombine.high %v3163, %v3165
          %v3189 = vunpack.c.l.s4 1983009808
          %v3190 = vunpack.c.0.s8 %v3189
          %v3191 = vlaneseq
          %v3192 = vshrl.u32 %v3191, 7
          %v3193 = vsub.s32 %v3190, %v3192
          %v3194 = vrot.slane %v3186, %v3193
          %v3196 = vunpack.c.l.s4 1983009808
          %v3197 = vunpack.c.0.s8 %v3196
          %v3198 = vlaneseq
          %v3199 = vshrl.u32 %v3198, 7
          %v3200 = vsub.s32 %v3197, %v3199
          %v3201 = vrot.slane %v3187, %v3200
          %v3202 = vcombine.low %v3166, %v3168
          %v3203 = vcombine.high %v3166, %v3168
          %v3205 = vunpack.c.l.s4 1983009808
          %v3206 = vunpack.c.0.s8 %v3205
          %v3207 = vlaneseq
          %v3208 = vshrl.u32 %v3207, 7
          %v3209 = vsub.s32 %v3206, %v3208
          %v3210 = vrot.slane %v3202, %v3209
          %v3212 = vunpack.c.l.s4 1983009808
          %v3213 = vunpack.c.0.s8 %v3212
          %v3214 = vlaneseq
          %v3215 = vshrl.u32 %v3214, 7
          %v3216 = vsub.s32 %v3213, %v3215
          %v3217 = vrot.slane %v3203, %v3216
          %v3218 = vcombine.low %v3167, %v3169
          %v3219 = vcombine.high %v3167, %v3169
          %v3221 = vunpack.c.l.s4 1983009808
          %v3222 = vunpack.c.0.s8 %v3221
          %v3223 = vlaneseq
          %v3224 = vshrl.u32 %v3223, 7
          %v3225 = vsub.s32 %v3222, %v3224
          %v3226 = vrot.slane %v3218, %v3225
          %v3228 = vunpack.c.l.s4 1983009808
          %v3229 = vunpack.c.0.s8 %v3228
          %v3230 = vlaneseq
          %v3231 = vshrl.u32 %v3230, 7
          %v3232 = vsub.s32 %v3229, %v3231
          %v3233 = vrot.slane %v3219, %v3232
          %v3234 = vcombine.low %v3178, %v3194
          %v3235 = vcombine.high %v3178, %v3194
          %v3237 = vunpack.c.l.s4 1934713408
          %v3238 = vunpack.c.0.s8 %v3237
          %v3239 = vlaneseq
          %v3240 = vshrl.u32 %v3239, 7
          %v3241 = vsub.s32 %v3238, %v3240
          %v3242 = vrot.slane %v3234, %v3241
          %v3244 = vunpack.c.l.s4 1934713408
          %v3245 = vunpack.c.0.s8 %v3244
          %v3246 = vlaneseq
          %v3247 = vshrl.u32 %v3246, 7
          %v3248 = vsub.s32 %v3245, %v3247
          %v3249 = vrot.slane %v3235, %v3248
          %v3250 = vcombine.low %v3185, %v3201
          %v3251 = vcombine.high %v3185, %v3201
          %v3253 = vunpack.c.l.s4 1934713408
          %v3254 = vunpack.c.0.s8 %v3253
          %v3255 = vlaneseq
          %v3256 = vshrl.u32 %v3255, 7
          %v3257 = vsub.s32 %v3254, %v3256
          %v3258 = vrot.slane %v3250, %v3257
          %v3260 = vunpack.c.l.s4 1934713408
          %v3261 = vunpack.c.0.s8 %v3260
          %v3262 = vlaneseq
          %v3263 = vshrl.u32 %v3262, 7
          %v3264 = vsub.s32 %v3261, %v3263
          %v3265 = vrot.slane %v3251, %v3264
          %v3266 = vcombine.low %v3210, %v3226
          %v3267 = vcombine.high %v3210, %v3226
          %v3269 = vunpack.c.l.s4 1934713408
          %v3270 = vunpack.c.0.s8 %v3269
          %v3271 = vlaneseq
          %v3272 = vshrl.u32 %v3271, 7
          %v3273 = vsub.s32 %v3270, %v3272
          %v3274 = vrot.slane %v3266, %v3273
          %v3276 = vunpack.c.l.s4 1934713408
          %v3277 = vunpack.c.0.s8 %v3276
          %v3278 = vlaneseq
          %v3279 = vshrl.u32 %v3278, 7
          %v3280 = vsub.s32 %v3277, %v3279
          %v3281 = vrot.slane %v3267, %v3280
          %v3282 = vcombine.low %v3217, %v3233
          %v3283 = vcombine.high %v3217, %v3233
          %v3285 = vunpack.c.l.s4 1934713408
          %v3286 = vunpack.c.0.s8 %v3285
          %v3287 = vlaneseq
          %v3288 = vshrl.u32 %v3287, 7
          %v3289 = vsub.s32 %v3286, %v3288
          %v3290 = vrot.slane %v3282, %v3289
          %v3292 = vunpack.c.l.s4 1934713408
          %v3293 = vunpack.c.0.s8 %v3292
          %v3294 = vlaneseq
          %v3295 = vshrl.u32 %v3294, 7
          %v3296 = vsub.s32 %v3293, %v3295
          %v3297 = vrot.slane %v3283, %v3296
          %v3298 = vcombine.low %v3242, %v3274
          %v3299 = vcombine.high %v3242, %v3274
          %v3300 = vcombine.low %v3249, %v3281
          %v3301 = vcombine.high %v3249, %v3281
          %v3302 = vcombine.low %v3258, %v3290
          %v3303 = vcombine.high %v3258, %v3290
          %v3304 = vcombine.low %v3265, %v3297
          %v3305 = vcombine.high %v3265, %v3297
          %vm3306 = vcmask 130048
          %v3308 = vsel %vm3306, %v2710, 0
          %v3311 = vsel %vm3306, %v3004, 0
          %3313 = vmatprep.subr.mxu0 0.0
          %3314 = vmatpush1.xpose.msra.mxu0 %v3311
          %3315 = vmatprep.subr.mxu0 0.0
          %3316 = vmatpush1.xpose.msra.mxu0 0.0
          %3317 = vmatprep.subr.mxu0 0.0
          %3318 = vmatpush1.xpose.msra.mxu0 0.0
          %3319 = vmatprep.subr.mxu0 0.0
          %3320 = vmatpush1.xpose.msra.mxu0 0.0
          %3321 = vmatprep.subr.mxu0 0.0
          %3322 = vmatpush1.xpose.msra.mxu0 0.0
          %3323 = vmatprep.subr.mxu0 0.0
          %3324 = vmatpush1.xpose.msra.mxu0 0.0
          %3325 = vmatprep.subr.mxu0 0.0
          %3326 = vmatpush1.xpose.msra.mxu0 0.0
          %3327 = vmatprep.subr.mxu0 0.0
          %3328 = vmatpush1.xpose.msra.mxu0 0.0
          %3329 = vmatprep.subr.mxu0 0.0
          %3330 = vmatpush1.xpose.msra.mxu0 0.0
          %3331 = vmatprep.subr.mxu0 0.0
          %3332 = vmatpush1.xpose.msra.mxu0 0.0
          %3333 = vmatprep.subr.mxu0 0.0
          %3334 = vmatpush1.xpose.msra.mxu0 0.0
          %3335 = vmatprep.subr.mxu0 0.0
          %3336 = vmatpush1.xpose.msra.mxu0 0.0
          %3337 = vmatprep.subr.mxu0 0.0
          %3338 = vmatpush1.xpose.msra.mxu0 0.0
          %3339 = vmatprep.subr.mxu0 0.0
          %3340 = vmatpush1.xpose.msra.mxu0 0.0
          %3341 = vmatprep.subr.mxu0 0.0
          %3342 = vmatpush1.xpose.msra.mxu0 0.0
          %3343 = vmatprep.subr.mxu0 0.0
          %3344 = vmatpush1.xpose.msra.mxu0 0.0
          %3345 = vmatprep.subr.mxu0 0.0
          %3346 = vmatpush1.xpose.msra.mxu0 0.0
          %3347 = vmatprep.subr.mxu0 0.0
          %3348 = vmatpush1.xpose.msra.mxu0 0.0
          %3349 = vmatprep.subr.mxu0 0.0
          %3350 = vmatpush1.xpose.msra.mxu0 0.0
          %3351 = vmatprep.subr.mxu0 0.0
          %3352 = vmatpush1.xpose.msra.mxu0 0.0
          %3353 = vmatprep.subr.mxu0 0.0
          %3354 = vmatpush1.xpose.msra.mxu0 0.0
          %3355 = vmatprep.subr.mxu0 0.0
          %3356 = vmatpush1.xpose.msra.mxu0 0.0
          %3357 = vmatprep.subr.mxu0 0.0
          %3358 = vmatpush1.xpose.msra.mxu0 0.0
          %3359 = vmatprep.subr.mxu0 0.0
          %3360 = vmatpush1.xpose.msra.mxu0 0.0
          %3361 = vmatprep.subr.mxu0 0.0
          %3362 = vmatpush1.xpose.msra.mxu0 0.0
          %3363 = vmatprep.subr.mxu0 0.0
          %3364 = vmatpush1.xpose.msra.mxu0 0.0
          %3365 = vmatprep.subr.mxu0 0.0
          %3366 = vmatpush1.xpose.msra.mxu0 0.0
          %3367 = vmatprep.subr.mxu0 0.0
          %3368 = vmatpush1.xpose.msra.mxu0 0.0
          %3369 = vmatprep.subr.mxu0 0.0
          %3370 = vmatpush1.xpose.msra.mxu0 0.0
          %3371 = vmatprep.subr.mxu0 0.0
          %3372 = vmatpush1.xpose.msra.mxu0 0.0
          %3373 = vmatprep.subr.mxu0 0.0
          %3374 = vmatpush1.xpose.msra.mxu0 0.0
          %3375 = vmatprep.subr.mxu0 0.0
          %3376 = vmatpush1.xpose.msra.mxu0 0.0
          %3377 = vmatprep.mubr.f32.mxu0 0.0
          %3378 = vmatmul.mubr.f32.gmra.mrb[0].mxu0 %v3308
          %v3379 = vpop.f32.mrb[0].mxu0
          %v3380 = vadd.f32 0.0, %v3379
          %v3381 = vpop.f32.mrb[0].mxu0
          %3382 = vdwg.mxu0
          %v3384 = vsel %vm3306, %v2711, 0
          %v3387 = vsel %vm3306, %v3005, 0
          %3389 = vmatprep.subr.mxu0 0.0
          %3390 = vmatpush1.xpose.msra.mxu0 %v3387
          %3391 = vmatprep.subr.mxu0 0.0
          %3392 = vmatpush1.xpose.msra.mxu0 0.0
          %3393 = vmatprep.subr.mxu0 0.0
          %3394 = vmatpush1.xpose.msra.mxu0 0.0
          %3395 = vmatprep.subr.mxu0 0.0
          %3396 = vmatpush1.xpose.msra.mxu0 0.0
          %3397 = vmatprep.subr.mxu0 0.0
          %3398 = vmatpush1.xpose.msra.mxu0 0.0
          %3399 = vmatprep.subr.mxu0 0.0
          %3400 = vmatpush1.xpose.msra.mxu0 0.0
          %3401 = vmatprep.subr.mxu0 0.0
          %3402 = vmatpush1.xpose.msra.mxu0 0.0
          %3403 = vmatprep.subr.mxu0 0.0
          %3404 = vmatpush1.xpose.msra.mxu0 0.0
          %3405 = vmatprep.subr.mxu0 0.0
          %3406 = vmatpush1.xpose.msra.mxu0 0.0
          %3407 = vmatprep.subr.mxu0 0.0
          %3408 = vmatpush1.xpose.msra.mxu0 0.0
          %3409 = vmatprep.subr.mxu0 0.0
          %3410 = vmatpush1.xpose.msra.mxu0 0.0
          %3411 = vmatprep.subr.mxu0 0.0
          %3412 = vmatpush1.xpose.msra.mxu0 0.0
          %3413 = vmatprep.subr.mxu0 0.0
          %3414 = vmatpush1.xpose.msra.mxu0 0.0
          %3415 = vmatprep.subr.mxu0 0.0
          %3416 = vmatpush1.xpose.msra.mxu0 0.0
          %3417 = vmatprep.subr.mxu0 0.0
          %3418 = vmatpush1.xpose.msra.mxu0 0.0
          %3419 = vmatprep.subr.mxu0 0.0
          %3420 = vmatpush1.xpose.msra.mxu0 0.0
          %3421 = vmatprep.subr.mxu0 0.0
          %3422 = vmatpush1.xpose.msra.mxu0 0.0
          %3423 = vmatprep.subr.mxu0 0.0
          %3424 = vmatpush1.xpose.msra.mxu0 0.0
          %3425 = vmatprep.subr.mxu0 0.0
          %3426 = vmatpush1.xpose.msra.mxu0 0.0
          %3427 = vmatprep.subr.mxu0 0.0
          %3428 = vmatpush1.xpose.msra.mxu0 0.0
          %3429 = vmatprep.subr.mxu0 0.0
          %3430 = vmatpush1.xpose.msra.mxu0 0.0
          %3431 = vmatprep.subr.mxu0 0.0
          %3432 = vmatpush1.xpose.msra.mxu0 0.0
          %3433 = vmatprep.subr.mxu0 0.0
          %3434 = vmatpush1.xpose.msra.mxu0 0.0
          %3435 = vmatprep.subr.mxu0 0.0
          %3436 = vmatpush1.xpose.msra.mxu0 0.0
          %3437 = vmatprep.subr.mxu0 0.0
          %3438 = vmatpush1.xpose.msra.mxu0 0.0
          %3439 = vmatprep.subr.mxu0 0.0
          %3440 = vmatpush1.xpose.msra.mxu0 0.0
          %3441 = vmatprep.subr.mxu0 0.0
          %3442 = vmatpush1.xpose.msra.mxu0 0.0
          %3443 = vmatprep.subr.mxu0 0.0
          %3444 = vmatpush1.xpose.msra.mxu0 0.0
          %3445 = vmatprep.subr.mxu0 0.0
          %3446 = vmatpush1.xpose.msra.mxu0 0.0
          %3447 = vmatprep.subr.mxu0 0.0
          %3448 = vmatpush1.xpose.msra.mxu0 0.0
          %3449 = vmatprep.subr.mxu0 0.0
          %3450 = vmatpush1.xpose.msra.mxu0 0.0
          %3451 = vmatprep.subr.mxu0 0.0
          %3452 = vmatpush1.xpose.msra.mxu0 0.0
          %3453 = vmatprep.mubr.f32.mxu0 0.0
          %3454 = vmatmul.mubr.f32.gmra.mrb[0].mxu0 %v3384
          %v3455 = vpop.f32.mrb[0].mxu0
          %v3456 = vadd.f32 0.0, %v3455
          %v3457 = vpop.f32.mrb[0].mxu0
          %3458 = vdwg.mxu0
          %v3460 = vsel %vm3306, %v2712, 0
          %v3463 = vsel %vm3306, %v3006, 0
          %3465 = vmatprep.subr.mxu0 0.0
          %3466 = vmatpush1.xpose.msra.mxu0 %v3463
          %3467 = vmatprep.subr.mxu0 0.0
          %3468 = vmatpush1.xpose.msra.mxu0 0.0
          %3469 = vmatprep.subr.mxu0 0.0
          %3470 = vmatpush1.xpose.msra.mxu0 0.0
          %3471 = vmatprep.subr.mxu0 0.0
          %3472 = vmatpush1.xpose.msra.mxu0 0.0
          %3473 = vmatprep.subr.mxu0 0.0
          %3474 = vmatpush1.xpose.msra.mxu0 0.0
          %3475 = vmatprep.subr.mxu0 0.0
          %3476 = vmatpush1.xpose.msra.mxu0 0.0
          %3477 = vmatprep.subr.mxu0 0.0
          %3478 = vmatpush1.xpose.msra.mxu0 0.0
          %3479 = vmatprep.subr.mxu0 0.0
          %3480 = vmatpush1.xpose.msra.mxu0 0.0
          %3481 = vmatprep.subr.mxu0 0.0
          %3482 = vmatpush1.xpose.msra.mxu0 0.0
          %3483 = vmatprep.subr.mxu0 0.0
          %3484 = vmatpush1.xpose.msra.mxu0 0.0
          %3485 = vmatprep.subr.mxu0 0.0
          %3486 = vmatpush1.xpose.msra.mxu0 0.0
          %3487 = vmatprep.subr.mxu0 0.0
          %3488 = vmatpush1.xpose.msra.mxu0 0.0
          %3489 = vmatprep.subr.mxu0 0.0
          %3490 = vmatpush1.xpose.msra.mxu0 0.0
          %3491 = vmatprep.subr.mxu0 0.0
          %3492 = vmatpush1.xpose.msra.mxu0 0.0
          %3493 = vmatprep.subr.mxu0 0.0
          %3494 = vmatpush1.xpose.msra.mxu0 0.0
          %3495 = vmatprep.subr.mxu0 0.0
          %3496 = vmatpush1.xpose.msra.mxu0 0.0
          %3497 = vmatprep.subr.mxu0 0.0
          %3498 = vmatpush1.xpose.msra.mxu0 0.0
          %3499 = vmatprep.subr.mxu0 0.0
          %3500 = vmatpush1.xpose.msra.mxu0 0.0
          %3501 = vmatprep.subr.mxu0 0.0
          %3502 = vmatpush1.xpose.msra.mxu0 0.0
          %3503 = vmatprep.subr.mxu0 0.0
          %3504 = vmatpush1.xpose.msra.mxu0 0.0
          %3505 = vmatprep.subr.mxu0 0.0
          %3506 = vmatpush1.xpose.msra.mxu0 0.0
          %3507 = vmatprep.subr.mxu0 0.0
          %3508 = vmatpush1.xpose.msra.mxu0 0.0
          %3509 = vmatprep.subr.mxu0 0.0
          %3510 = vmatpush1.xpose.msra.mxu0 0.0
          %3511 = vmatprep.subr.mxu0 0.0
          %3512 = vmatpush1.xpose.msra.mxu0 0.0
          %3513 = vmatprep.subr.mxu0 0.0
          %3514 = vmatpush1.xpose.msra.mxu0 0.0
          %3515 = vmatprep.subr.mxu0 0.0
          %3516 = vmatpush1.xpose.msra.mxu0 0.0
          %3517 = vmatprep.subr.mxu0 0.0
          %3518 = vmatpush1.xpose.msra.mxu0 0.0
          %3519 = vmatprep.subr.mxu0 0.0
          %3520 = vmatpush1.xpose.msra.mxu0 0.0
          %3521 = vmatprep.subr.mxu0 0.0
          %3522 = vmatpush1.xpose.msra.mxu0 0.0
          %3523 = vmatprep.subr.mxu0 0.0
          %3524 = vmatpush1.xpose.msra.mxu0 0.0
          %3525 = vmatprep.subr.mxu0 0.0
          %3526 = vmatpush1.xpose.msra.mxu0 0.0
          %3527 = vmatprep.subr.mxu0 0.0
          %3528 = vmatpush1.xpose.msra.mxu0 0.0
          %3529 = vmatprep.mubr.f32.mxu0 0.0
          %3530 = vmatmul.mubr.f32.gmra.mrb[0].mxu0 %v3460
          %v3531 = vpop.f32.mrb[0].mxu0
          %v3532 = vadd.f32 0.0, %v3531
          %v3533 = vpop.f32.mrb[0].mxu0
          %3534 = vdwg.mxu0
          %v3536 = vsel %vm3306, %v2713, 0
          %v3539 = vsel %vm3306, %v3007, 0
          %3541 = vmatprep.subr.mxu0 0.0
          %3542 = vmatpush1.xpose.msra.mxu0 %v3539
          %3543 = vmatprep.subr.mxu0 0.0
          %3544 = vmatpush1.xpose.msra.mxu0 0.0
          %3545 = vmatprep.subr.mxu0 0.0
          %3546 = vmatpush1.xpose.msra.mxu0 0.0
          %3547 = vmatprep.subr.mxu0 0.0
          %3548 = vmatpush1.xpose.msra.mxu0 0.0
          %3549 = vmatprep.subr.mxu0 0.0
          %3550 = vmatpush1.xpose.msra.mxu0 0.0
          %3551 = vmatprep.subr.mxu0 0.0
          %3552 = vmatpush1.xpose.msra.mxu0 0.0
          %3553 = vmatprep.subr.mxu0 0.0
          %3554 = vmatpush1.xpose.msra.mxu0 0.0
          %3555 = vmatprep.subr.mxu0 0.0
          %3556 = vmatpush1.xpose.msra.mxu0 0.0
          %3557 = vmatprep.subr.mxu0 0.0
          %3558 = vmatpush1.xpose.msra.mxu0 0.0
          %3559 = vmatprep.subr.mxu0 0.0
          %3560 = vmatpush1.xpose.msra.mxu0 0.0
          %3561 = vmatprep.subr.mxu0 0.0
          %3562 = vmatpush1.xpose.msra.mxu0 0.0
          %3563 = vmatprep.subr.mxu0 0.0
          %3564 = vmatpush1.xpose.msra.mxu0 0.0
          %3565 = vmatprep.subr.mxu0 0.0
          %3566 = vmatpush1.xpose.msra.mxu0 0.0
          %3567 = vmatprep.subr.mxu0 0.0
          %3568 = vmatpush1.xpose.msra.mxu0 0.0
          %3569 = vmatprep.subr.mxu0 0.0
          %3570 = vmatpush1.xpose.msra.mxu0 0.0
          %3571 = vmatprep.subr.mxu0 0.0
          %3572 = vmatpush1.xpose.msra.mxu0 0.0
          %3573 = vmatprep.subr.mxu0 0.0
          %3574 = vmatpush1.xpose.msra.mxu0 0.0
          %3575 = vmatprep.subr.mxu0 0.0
          %3576 = vmatpush1.xpose.msra.mxu0 0.0
          %3577 = vmatprep.subr.mxu0 0.0
          %3578 = vmatpush1.xpose.msra.mxu0 0.0
          %3579 = vmatprep.subr.mxu0 0.0
          %3580 = vmatpush1.xpose.msra.mxu0 0.0
          %3581 = vmatprep.subr.mxu0 0.0
          %3582 = vmatpush1.xpose.msra.mxu0 0.0
          %3583 = vmatprep.subr.mxu0 0.0
          %3584 = vmatpush1.xpose.msra.mxu0 0.0
          %3585 = vmatprep.subr.mxu0 0.0
          %3586 = vmatpush1.xpose.msra.mxu0 0.0
          %3587 = vmatprep.subr.mxu0 0.0
          %3588 = vmatpush1.xpose.msra.mxu0 0.0
          %3589 = vmatprep.subr.mxu0 0.0
          %3590 = vmatpush1.xpose.msra.mxu0 0.0
          %3591 = vmatprep.subr.mxu0 0.0
          %3592 = vmatpush1.xpose.msra.mxu0 0.0
          %3593 = vmatprep.subr.mxu0 0.0
          %3594 = vmatpush1.xpose.msra.mxu0 0.0
          %3595 = vmatprep.subr.mxu0 0.0
          %3596 = vmatpush1.xpose.msra.mxu0 0.0
          %3597 = vmatprep.subr.mxu0 0.0
          %3598 = vmatpush1.xpose.msra.mxu0 0.0
          %3599 = vmatprep.subr.mxu0 0.0
          %3600 = vmatpush1.xpose.msra.mxu0 0.0
          %3601 = vmatprep.subr.mxu0 0.0
          %3602 = vmatpush1.xpose.msra.mxu0 0.0
          %3603 = vmatprep.subr.mxu0 0.0
          %3604 = vmatpush1.xpose.msra.mxu0 0.0
          %3605 = vmatprep.mubr.f32.mxu0 0.0
          %3606 = vmatmul.mubr.f32.gmra.mrb[0].mxu0 %v3536
          %v3607 = vpop.f32.mrb[0].mxu0
          %v3608 = vadd.f32 0.0, %v3607
          %v3609 = vpop.f32.mrb[0].mxu0
          %3610 = vdwg.mxu0
          %v3612 = vsel %vm3306, %v2714, 0
          %v3615 = vsel %vm3306, %v3008, 0
          %3617 = vmatprep.subr.mxu0 0.0
          %3618 = vmatpush1.xpose.msra.mxu0 %v3615
          %3619 = vmatprep.subr.mxu0 0.0
          %3620 = vmatpush1.xpose.msra.mxu0 0.0
          %3621 = vmatprep.subr.mxu0 0.0
          %3622 = vmatpush1.xpose.msra.mxu0 0.0
          %3623 = vmatprep.subr.mxu0 0.0
          %3624 = vmatpush1.xpose.msra.mxu0 0.0
          %3625 = vmatprep.subr.mxu0 0.0
          %3626 = vmatpush1.xpose.msra.mxu0 0.0
          %3627 = vmatprep.subr.mxu0 0.0
          %3628 = vmatpush1.xpose.msra.mxu0 0.0
          %3629 = vmatprep.subr.mxu0 0.0
          %3630 = vmatpush1.xpose.msra.mxu0 0.0
          %3631 = vmatprep.subr.mxu0 0.0
          %3632 = vmatpush1.xpose.msra.mxu0 0.0
          %3633 = vmatprep.subr.mxu0 0.0
          %3634 = vmatpush1.xpose.msra.mxu0 0.0
          %3635 = vmatprep.subr.mxu0 0.0
          %3636 = vmatpush1.xpose.msra.mxu0 0.0
          %3637 = vmatprep.subr.mxu0 0.0
          %3638 = vmatpush1.xpose.msra.mxu0 0.0
          %3639 = vmatprep.subr.mxu0 0.0
          %3640 = vmatpush1.xpose.msra.mxu0 0.0
          %3641 = vmatprep.subr.mxu0 0.0
          %3642 = vmatpush1.xpose.msra.mxu0 0.0
          %3643 = vmatprep.subr.mxu0 0.0
          %3644 = vmatpush1.xpose.msra.mxu0 0.0
          %3645 = vmatprep.subr.mxu0 0.0
          %3646 = vmatpush1.xpose.msra.mxu0 0.0
          %3647 = vmatprep.subr.mxu0 0.0
          %3648 = vmatpush1.xpose.msra.mxu0 0.0
          %3649 = vmatprep.subr.mxu0 0.0
          %3650 = vmatpush1.xpose.msra.mxu0 0.0
          %3651 = vmatprep.subr.mxu0 0.0
          %3652 = vmatpush1.xpose.msra.mxu0 0.0
          %3653 = vmatprep.subr.mxu0 0.0
          %3654 = vmatpush1.xpose.msra.mxu0 0.0
          %3655 = vmatprep.subr.mxu0 0.0
          %3656 = vmatpush1.xpose.msra.mxu0 0.0
          %3657 = vmatprep.subr.mxu0 0.0
          %3658 = vmatpush1.xpose.msra.mxu0 0.0
          %3659 = vmatprep.subr.mxu0 0.0
          %3660 = vmatpush1.xpose.msra.mxu0 0.0
          %3661 = vmatprep.subr.mxu0 0.0
          %3662 = vmatpush1.xpose.msra.mxu0 0.0
          %3663 = vmatprep.subr.mxu0 0.0
          %3664 = vmatpush1.xpose.msra.mxu0 0.0
          %3665 = vmatprep.subr.mxu0 0.0
          %3666 = vmatpush1.xpose.msra.mxu0 0.0
          %3667 = vmatprep.subr.mxu0 0.0
          %3668 = vmatpush1.xpose.msra.mxu0 0.0
          %3669 = vmatprep.subr.mxu0 0.0
          %3670 = vmatpush1.xpose.msra.mxu0 0.0
          %3671 = vmatprep.subr.mxu0 0.0
          %3672 = vmatpush1.xpose.msra.mxu0 0.0
          %3673 = vmatprep.subr.mxu0 0.0
          %3674 = vmatpush1.xpose.msra.mxu0 0.0
          %3675 = vmatprep.subr.mxu0 0.0
          %3676 = vmatpush1.xpose.msra.mxu0 0.0
          %3677 = vmatprep.subr.mxu0 0.0
          %3678 = vmatpush1.xpose.msra.mxu0 0.0
          %3679 = vmatprep.subr.mxu0 0.0
          %3680 = vmatpush1.xpose.msra.mxu0 0.0
          %3681 = vmatprep.mubr.f32.mxu0 0.0
          %3682 = vmatmul.mubr.f32.gmra.mrb[0].mxu0 %v3612
          %v3683 = vpop.f32.mrb[0].mxu0
          %v3684 = vadd.f32 0.0, %v3683
          %v3685 = vpop.f32.mrb[0].mxu0
          %3686 = vdwg.mxu0
          %v3688 = vsel %vm3306, %v2715, 0
          %v3691 = vsel %vm3306, %v3009, 0
          %3693 = vmatprep.subr.mxu0 0.0
          %3694 = vmatpush1.xpose.msra.mxu0 %v3691
          %3695 = vmatprep.subr.mxu0 0.0
          %3696 = vmatpush1.xpose.msra.mxu0 0.0
          %3697 = vmatprep.subr.mxu0 0.0
          %3698 = vmatpush1.xpose.msra.mxu0 0.0
          %3699 = vmatprep.subr.mxu0 0.0
          %3700 = vmatpush1.xpose.msra.mxu0 0.0
          %3701 = vmatprep.subr.mxu0 0.0
          %3702 = vmatpush1.xpose.msra.mxu0 0.0
          %3703 = vmatprep.subr.mxu0 0.0
          %3704 = vmatpush1.xpose.msra.mxu0 0.0
          %3705 = vmatprep.subr.mxu0 0.0
          %3706 = vmatpush1.xpose.msra.mxu0 0.0
          %3707 = vmatprep.subr.mxu0 0.0
          %3708 = vmatpush1.xpose.msra.mxu0 0.0
          %3709 = vmatprep.subr.mxu0 0.0
          %3710 = vmatpush1.xpose.msra.mxu0 0.0
          %3711 = vmatprep.subr.mxu0 0.0
          %3712 = vmatpush1.xpose.msra.mxu0 0.0
          %3713 = vmatprep.subr.mxu0 0.0
          %3714 = vmatpush1.xpose.msra.mxu0 0.0
          %3715 = vmatprep.subr.mxu0 0.0
          %3716 = vmatpush1.xpose.msra.mxu0 0.0
          %3717 = vmatprep.subr.mxu0 0.0
          %3718 = vmatpush1.xpose.msra.mxu0 0.0
          %3719 = vmatprep.subr.mxu0 0.0
          %3720 = vmatpush1.xpose.msra.mxu0 0.0
          %3721 = vmatprep.subr.mxu0 0.0
          %3722 = vmatpush1.xpose.msra.mxu0 0.0
          %3723 = vmatprep.subr.mxu0 0.0
          %3724 = vmatpush1.xpose.msra.mxu0 0.0
          %3725 = vmatprep.subr.mxu0 0.0
          %3726 = vmatpush1.xpose.msra.mxu0 0.0
          %3727 = vmatprep.subr.mxu0 0.0
          %3728 = vmatpush1.xpose.msra.mxu0 0.0
          %3729 = vmatprep.subr.mxu0 0.0
          %3730 = vmatpush1.xpose.msra.mxu0 0.0
          %3731 = vmatprep.subr.mxu0 0.0
          %3732 = vmatpush1.xpose.msra.mxu0 0.0
          %3733 = vmatprep.subr.mxu0 0.0
          %3734 = vmatpush1.xpose.msra.mxu0 0.0
          %3735 = vmatprep.subr.mxu0 0.0
          %3736 = vmatpush1.xpose.msra.mxu0 0.0
          %3737 = vmatprep.subr.mxu0 0.0
          %3738 = vmatpush1.xpose.msra.mxu0 0.0
          %3739 = vmatprep.subr.mxu0 0.0
          %3740 = vmatpush1.xpose.msra.mxu0 0.0
          %3741 = vmatprep.subr.mxu0 0.0
          %3742 = vmatpush1.xpose.msra.mxu0 0.0
          %3743 = vmatprep.subr.mxu0 0.0
          %3744 = vmatpush1.xpose.msra.mxu0 0.0
          %3745 = vmatprep.subr.mxu0 0.0
          %3746 = vmatpush1.xpose.msra.mxu0 0.0
          %3747 = vmatprep.subr.mxu0 0.0
          %3748 = vmatpush1.xpose.msra.mxu0 0.0
          %3749 = vmatprep.subr.mxu0 0.0
          %3750 = vmatpush1.xpose.msra.mxu0 0.0
          %3751 = vmatprep.subr.mxu0 0.0
          %3752 = vmatpush1.xpose.msra.mxu0 0.0
          %3753 = vmatprep.subr.mxu0 0.0
          %3754 = vmatpush1.xpose.msra.mxu0 0.0
          %3755 = vmatprep.subr.mxu0 0.0
          %3756 = vmatpush1.xpose.msra.mxu0 0.0
          %3757 = vmatprep.mubr.f32.mxu0 0.0
          %3758 = vmatmul.mubr.f32.gmra.mrb[0].mxu0 %v3688
          %v3759 = vpop.f32.mrb[0].mxu0
          %v3760 = vadd.f32 0.0, %v3759
          %v3761 = vpop.f32.mrb[0].mxu0
          %3762 = vdwg.mxu0
          %v3764 = vsel %vm3306, %v2716, 0
          %v3767 = vsel %vm3306, %v3010, 0
          %3769 = vmatprep.subr.mxu0 0.0
          %3770 = vmatpush1.xpose.msra.mxu0 %v3767
          %3771 = vmatprep.subr.mxu0 0.0
          %3772 = vmatpush1.xpose.msra.mxu0 0.0
          %3773 = vmatprep.subr.mxu0 0.0
          %3774 = vmatpush1.xpose.msra.mxu0 0.0
          %3775 = vmatprep.subr.mxu0 0.0
          %3776 = vmatpush1.xpose.msra.mxu0 0.0
          %3777 = vmatprep.subr.mxu0 0.0
          %3778 = vmatpush1.xpose.msra.mxu0 0.0
          %3779 = vmatprep.subr.mxu0 0.0
          %3780 = vmatpush1.xpose.msra.mxu0 0.0
          %3781 = vmatprep.subr.mxu0 0.0
          %3782 = vmatpush1.xpose.msra.mxu0 0.0
          %3783 = vmatprep.subr.mxu0 0.0
          %3784 = vmatpush1.xpose.msra.mxu0 0.0
          %3785 = vmatprep.subr.mxu0 0.0
          %3786 = vmatpush1.xpose.msra.mxu0 0.0
          %3787 = vmatprep.subr.mxu0 0.0
          %3788 = vmatpush1.xpose.msra.mxu0 0.0
          %3789 = vmatprep.subr.mxu0 0.0
          %3790 = vmatpush1.xpose.msra.mxu0 0.0
          %3791 = vmatprep.subr.mxu0 0.0
          %3792 = vmatpush1.xpose.msra.mxu0 0.0
          %3793 = vmatprep.subr.mxu0 0.0
          %3794 = vmatpush1.xpose.msra.mxu0 0.0
          %3795 = vmatprep.subr.mxu0 0.0
          %3796 = vmatpush1.xpose.msra.mxu0 0.0
          %3797 = vmatprep.subr.mxu0 0.0
          %3798 = vmatpush1.xpose.msra.mxu0 0.0
          %3799 = vmatprep.subr.mxu0 0.0
          %3800 = vmatpush1.xpose.msra.mxu0 0.0
          %3801 = vmatprep.subr.mxu0 0.0
          %3802 = vmatpush1.xpose.msra.mxu0 0.0
          %3803 = vmatprep.subr.mxu0 0.0
          %3804 = vmatpush1.xpose.msra.mxu0 0.0
          %3805 = vmatprep.subr.mxu0 0.0
          %3806 = vmatpush1.xpose.msra.mxu0 0.0
          %3807 = vmatprep.subr.mxu0 0.0
          %3808 = vmatpush1.xpose.msra.mxu0 0.0
          %3809 = vmatprep.subr.mxu0 0.0
          %3810 = vmatpush1.xpose.msra.mxu0 0.0
          %3811 = vmatprep.subr.mxu0 0.0
          %3812 = vmatpush1.xpose.msra.mxu0 0.0
          %3813 = vmatprep.subr.mxu0 0.0
          %3814 = vmatpush1.xpose.msra.mxu0 0.0
          %3815 = vmatprep.subr.mxu0 0.0
          %3816 = vmatpush1.xpose.msra.mxu0 0.0
          %3817 = vmatprep.subr.mxu0 0.0
          %3818 = vmatpush1.xpose.msra.mxu0 0.0
          %3819 = vmatprep.subr.mxu0 0.0
          %3820 = vmatpush1.xpose.msra.mxu0 0.0
          %3821 = vmatprep.subr.mxu0 0.0
          %3822 = vmatpush1.xpose.msra.mxu0 0.0
          %3823 = vmatprep.subr.mxu0 0.0
          %3824 = vmatpush1.xpose.msra.mxu0 0.0
          %3825 = vmatprep.subr.mxu0 0.0
          %3826 = vmatpush1.xpose.msra.mxu0 0.0
          %3827 = vmatprep.subr.mxu0 0.0
          %3828 = vmatpush1.xpose.msra.mxu0 0.0
          %3829 = vmatprep.subr.mxu0 0.0
          %3830 = vmatpush1.xpose.msra.mxu0 0.0
          %3831 = vmatprep.subr.mxu0 0.0
          %3832 = vmatpush1.xpose.msra.mxu0 0.0
          %3833 = vmatprep.mubr.f32.mxu0 0.0
          %3834 = vmatmul.mubr.f32.gmra.mrb[0].mxu0 %v3764
          %v3835 = vpop.f32.mrb[0].mxu0
          %v3836 = vadd.f32 0.0, %v3835
          %v3837 = vpop.f32.mrb[0].mxu0
          %3838 = vdwg.mxu0
          %v3840 = vsel %vm3306, %v2717, 0
          %v3843 = vsel %vm3306, %v3011, 0
          %3845 = vmatprep.subr.mxu0 0.0
          %3846 = vmatpush1.xpose.msra.mxu0 %v3843
          %3847 = vmatprep.subr.mxu0 0.0
          %3848 = vmatpush1.xpose.msra.mxu0 0.0
          %3849 = vmatprep.subr.mxu0 0.0
          %3850 = vmatpush1.xpose.msra.mxu0 0.0
          %3851 = vmatprep.subr.mxu0 0.0
          %3852 = vmatpush1.xpose.msra.mxu0 0.0
          %3853 = vmatprep.subr.mxu0 0.0
          %3854 = vmatpush1.xpose.msra.mxu0 0.0
          %3855 = vmatprep.subr.mxu0 0.0
          %3856 = vmatpush1.xpose.msra.mxu0 0.0
          %3857 = vmatprep.subr.mxu0 0.0
          %3858 = vmatpush1.xpose.msra.mxu0 0.0
          %3859 = vmatprep.subr.mxu0 0.0
          %3860 = vmatpush1.xpose.msra.mxu0 0.0
          %3861 = vmatprep.subr.mxu0 0.0
          %3862 = vmatpush1.xpose.msra.mxu0 0.0
          %3863 = vmatprep.subr.mxu0 0.0
          %3864 = vmatpush1.xpose.msra.mxu0 0.0
          %3865 = vmatprep.subr.mxu0 0.0
          %3866 = vmatpush1.xpose.msra.mxu0 0.0
          %3867 = vmatprep.subr.mxu0 0.0
          %3868 = vmatpush1.xpose.msra.mxu0 0.0
          %3869 = vmatprep.subr.mxu0 0.0
          %3870 = vmatpush1.xpose.msra.mxu0 0.0
          %3871 = vmatprep.subr.mxu0 0.0
          %3872 = vmatpush1.xpose.msra.mxu0 0.0
          %3873 = vmatprep.subr.mxu0 0.0
          %3874 = vmatpush1.xpose.msra.mxu0 0.0
          %3875 = vmatprep.subr.mxu0 0.0
          %3876 = vmatpush1.xpose.msra.mxu0 0.0
          %3877 = vmatprep.subr.mxu0 0.0
          %3878 = vmatpush1.xpose.msra.mxu0 0.0
          %3879 = vmatprep.subr.mxu0 0.0
          %3880 = vmatpush1.xpose.msra.mxu0 0.0
          %3881 = vmatprep.subr.mxu0 0.0
          %3882 = vmatpush1.xpose.msra.mxu0 0.0
          %3883 = vmatprep.subr.mxu0 0.0
          %3884 = vmatpush1.xpose.msra.mxu0 0.0
          %3885 = vmatprep.subr.mxu0 0.0
          %3886 = vmatpush1.xpose.msra.mxu0 0.0
          %3887 = vmatprep.subr.mxu0 0.0
          %3888 = vmatpush1.xpose.msra.mxu0 0.0
          %3889 = vmatprep.subr.mxu0 0.0
          %3890 = vmatpush1.xpose.msra.mxu0 0.0
          %3891 = vmatprep.subr.mxu0 0.0
          %3892 = vmatpush1.xpose.msra.mxu0 0.0
          %3893 = vmatprep.subr.mxu0 0.0
          %3894 = vmatpush1.xpose.msra.mxu0 0.0
          %3895 = vmatprep.subr.mxu0 0.0
          %3896 = vmatpush1.xpose.msra.mxu0 0.0
          %3897 = vmatprep.subr.mxu0 0.0
          %3898 = vmatpush1.xpose.msra.mxu0 0.0
          %3899 = vmatprep.subr.mxu0 0.0
          %3900 = vmatpush1.xpose.msra.mxu0 0.0
          %3901 = vmatprep.subr.mxu0 0.0
          %3902 = vmatpush1.xpose.msra.mxu0 0.0
          %3903 = vmatprep.subr.mxu0 0.0
          %3904 = vmatpush1.xpose.msra.mxu0 0.0
          %3905 = vmatprep.subr.mxu0 0.0
          %3906 = vmatpush1.xpose.msra.mxu0 0.0
          %3907 = vmatprep.subr.mxu0 0.0
          %3908 = vmatpush1.xpose.msra.mxu0 0.0
          %3909 = vmatprep.mubr.f32.mxu0 0.0
          %3910 = vmatmul.mubr.f32.gmra.mrb[0].mxu0 %v3840
          %v3911 = vpop.f32.mrb[0].mxu0
          %v3912 = vadd.f32 0.0, %v3911
          %v3913 = vpop.f32.mrb[0].mxu0
          %3914 = vdwg.mxu0
          %vm3915 = vcmask 64512
          %v3916 = vsel %vm3915, %v3380, -inf
          %3917 = vmax.xlane.f32.xlu0 %v3916
          %v3918 = vpop.xlane.xlu0 %3917
          %v3919 = vsel %vm3915, %v3456, -inf
          %3920 = vmax.xlane.f32.xlu0 %v3919
          %v3921 = vpop.xlane.xlu0 %3920
          %v3922 = vsel %vm3915, %v3532, -inf
          %3923 = vmax.xlane.f32.xlu0 %v3922
          %v3924 = vpop.xlane.xlu0 %3923
          %v3925 = vsel %vm3915, %v3608, -inf
          %3926 = vmax.xlane.f32.xlu0 %v3925
          %v3927 = vpop.xlane.xlu0 %3926
          %v3928 = vsel %vm3915, %v3684, -inf
          %3929 = vmax.xlane.f32.xlu0 %v3928
          %v3930 = vpop.xlane.xlu0 %3929
          %v3931 = vsel %vm3915, %v3760, -inf
          %3932 = vmax.xlane.f32.xlu0 %v3931
          %v3933 = vpop.xlane.xlu0 %3932
          %v3934 = vsel %vm3915, %v3836, -inf
          %3935 = vmax.xlane.f32.xlu0 %v3934
          %v3936 = vpop.xlane.xlu0 %3935
          %v3937 = vsel %vm3915, %v3912, -inf
          %3938 = vmax.xlane.f32.xlu0 %v3937
          %v3939 = vpop.xlane.xlu0 %3938
          %v3940 = vsub.f32 %v3380, %v3918
          %v3941 = vsub.f32 %v3456, %v3921
          %v3942 = vsub.f32 %v3532, %v3924
          %v3943 = vsub.f32 %v3608, %v3927
          %v3944 = vsub.f32 %v3684, %v3930
          %v3945 = vsub.f32 %v3760, %v3933
          %v3946 = vsub.f32 %v3836, %v3936
          %v3947 = vsub.f32 %v3912, %v3939
          %v3948 = vmul.f32 %v3940, 1.442695
          %v3949 = vpow.pop %v3948
          %v3950 = vmul.f32 %v3941, 1.442695
          %v3951 = vpow.pop %v3950
          %v3952 = vmul.f32 %v3942, 1.442695
          %v3953 = vpow.pop %v3952
          %v3954 = vmul.f32 %v3943, 1.442695
          %v3955 = vpow.pop %v3954
          %v3956 = vmul.f32 %v3944, 1.442695
          %v3957 = vpow.pop %v3956
          %v3958 = vmul.f32 %v3945, 1.442695
          %v3959 = vpow.pop %v3958
          %v3960 = vmul.f32 %v3946, 1.442695
          %v3961 = vpow.pop %v3960
          %v3962 = vmul.f32 %v3947, 1.442695
          %v3963 = vpow.pop %v3962
          %v3964 = vsel %vm3915, %v3949, 0.0
          %3965 = vadd.xlane.f32.xlu0 %v3964
          %v3966 = vpop.xlane.xlu0 %3965
          %v3967 = vsel %vm3915, %v3951, 0.0
          %3968 = vadd.xlane.f32.xlu0 %v3967
          %v3969 = vpop.xlane.xlu0 %3968
          %v3970 = vsel %vm3915, %v3953, 0.0
          %3971 = vadd.xlane.f32.xlu0 %v3970
          %v3972 = vpop.xlane.xlu0 %3971
          %v3973 = vsel %vm3915, %v3955, 0.0
          %3974 = vadd.xlane.f32.xlu0 %v3973
          %v3975 = vpop.xlane.xlu0 %3974
          %v3976 = vsel %vm3915, %v3957, 0.0
          %3977 = vadd.xlane.f32.xlu0 %v3976
          %v3978 = vpop.xlane.xlu0 %3977
          %v3979 = vsel %vm3915, %v3959, 0.0
          %3980 = vadd.xlane.f32.xlu0 %v3979
          %v3981 = vpop.xlane.xlu0 %3980
          %v3982 = vsel %vm3915, %v3961, 0.0
          %3983 = vadd.xlane.f32.xlu0 %v3982
          %v3984 = vpop.xlane.xlu0 %3983
          %v3985 = vsel %vm3915, %v3963, 0.0
          %3986 = vadd.xlane.f32.xlu0 %v3985
          %v3987 = vpop.xlane.xlu0 %3986
          %v3988 = vrcp.pop %v3966
          %v3989 = vrcp.pop %v3969
          %v3990 = vrcp.pop %v3972
          %v3991 = vrcp.pop %v3975
          %v3992 = vrcp.pop %v3978
          %v3993 = vrcp.pop %v3981
          %v3994 = vrcp.pop %v3984
          %v3995 = vrcp.pop %v3987
          %v3996 = vmul.f32 %v3949, %v3988
          %v3997 = vmul.f32 %v3951, %v3989
          %v3998 = vmul.f32 %v3953, %v3990
          %v3999 = vmul.f32 %v3955, %v3991
          %v4000 = vmul.f32 %v3957, %v3992
          %v4001 = vmul.f32 %v3959, %v3993
          %v4002 = vmul.f32 %v3961, %v3994
          %v4003 = vmul.f32 %v3963, %v3995
          %v4005 = vsel %vm3915, %v3996, 0
          %4007 = vmatprep.subr.mxu0 0.0
          %4008 = vmatpush1.msra.mxu0 %v3298
          %4009 = vmatprep.subr.mxu0 0.0
          %4010 = vmatpush1.msra.mxu0 0.0
          %4011 = vmatprep.subr.mxu0 0.0
          %4012 = vmatpush1.msra.mxu0 0.0
          %4013 = vmatprep.subr.mxu0 0.0
          %4014 = vmatpush1.msra.mxu0 0.0
          %4015 = vmatprep.subr.mxu0 0.0
          %4016 = vmatpush1.msra.mxu0 0.0
          %4017 = vmatprep.subr.mxu0 0.0
          %4018 = vmatpush1.msra.mxu0 0.0
          %4019 = vmatprep.subr.mxu0 0.0
          %4020 = vmatpush1.msra.mxu0 0.0
          %4021 = vmatprep.subr.mxu0 0.0
          %4022 = vmatpush1.msra.mxu0 0.0
          %4023 = vmatprep.subr.mxu0 0.0
          %4024 = vmatpush1.msra.mxu0 0.0
          %4025 = vmatprep.subr.mxu0 0.0
          %4026 = vmatpush1.msra.mxu0 0.0
          %4027 = vmatprep.subr.mxu0 0.0
          %4028 = vmatpush1.msra.mxu0 0.0
          %4029 = vmatprep.subr.mxu0 0.0
          %4030 = vmatpush1.msra.mxu0 0.0
          %4031 = vmatprep.subr.mxu0 0.0
          %4032 = vmatpush1.msra.mxu0 0.0
          %4033 = vmatprep.subr.mxu0 0.0
          %4034 = vmatpush1.msra.mxu0 0.0
          %4035 = vmatprep.subr.mxu0 0.0
          %4036 = vmatpush1.msra.mxu0 0.0
          %4037 = vmatprep.subr.mxu0 0.0
          %4038 = vmatpush1.msra.mxu0 0.0
          %4039 = vmatprep.subr.mxu0 0.0
          %4040 = vmatpush1.msra.mxu0 0.0
          %4041 = vmatprep.subr.mxu0 0.0
          %4042 = vmatpush1.msra.mxu0 0.0
          %4043 = vmatprep.subr.mxu0 0.0
          %4044 = vmatpush1.msra.mxu0 0.0
          %4045 = vmatprep.subr.mxu0 0.0
          %4046 = vmatpush1.msra.mxu0 0.0
          %4047 = vmatprep.subr.mxu0 0.0
          %4048 = vmatpush1.msra.mxu0 0.0
          %4049 = vmatprep.subr.mxu0 0.0
          %4050 = vmatpush1.msra.mxu0 0.0
          %4051 = vmatprep.subr.mxu0 0.0
          %4052 = vmatpush1.msra.mxu0 0.0
          %4053 = vmatprep.subr.mxu0 0.0
          %4054 = vmatpush1.msra.mxu0 0.0
          %4055 = vmatprep.subr.mxu0 0.0
          %4056 = vmatpush1.msra.mxu0 0.0
          %4057 = vmatprep.subr.mxu0 0.0
          %4058 = vmatpush1.msra.mxu0 0.0
          %4059 = vmatprep.subr.mxu0 0.0
          %4060 = vmatpush1.msra.mxu0 0.0
          %4061 = vmatprep.subr.mxu0 0.0
          %4062 = vmatpush1.msra.mxu0 0.0
          %4063 = vmatprep.subr.mxu0 0.0
          %4064 = vmatpush1.msra.mxu0 0.0
          %4065 = vmatprep.subr.mxu0 0.0
          %4066 = vmatpush1.msra.mxu0 0.0
          %4067 = vmatprep.subr.mxu0 0.0
          %4068 = vmatpush1.msra.mxu0 0.0
          %4069 = vmatprep.subr.mxu0 0.0
          %4070 = vmatpush1.msra.mxu0 0.0
          %4071 = vmatprep.mubr.f32.mxu0 0.0
          %4072 = vmatmul.mubr.f32.gmra.mrb[0].mxu0 %v4005
          %v4073 = vpop.f32.mrb[0].mxu0
          %v4074 = vadd.f32 0.0, %v4073
          %v4075 = vpop.f32.mrb[0].mxu0
          %4076 = vdwg.mxu0
          %v4078 = vsel %vm3915, %v3997, 0
          %4080 = vmatprep.subr.mxu0 0.0
          %4081 = vmatpush1.msra.mxu0 %v3299
          %4082 = vmatprep.subr.mxu0 0.0
          %4083 = vmatpush1.msra.mxu0 0.0
          %4084 = vmatprep.subr.mxu0 0.0
          %4085 = vmatpush1.msra.mxu0 0.0
          %4086 = vmatprep.subr.mxu0 0.0
          %4087 = vmatpush1.msra.mxu0 0.0
          %4088 = vmatprep.subr.mxu0 0.0
          %4089 = vmatpush1.msra.mxu0 0.0
          %4090 = vmatprep.subr.mxu0 0.0
          %4091 = vmatpush1.msra.mxu0 0.0
          %4092 = vmatprep.subr.mxu0 0.0
          %4093 = vmatpush1.msra.mxu0 0.0
          %4094 = vmatprep.subr.mxu0 0.0
          %4095 = vmatpush1.msra.mxu0 0.0
          %4096 = vmatprep.subr.mxu0 0.0
          %4097 = vmatpush1.msra.mxu0 0.0
          %4098 = vmatprep.subr.mxu0 0.0
          %4099 = vmatpush1.msra.mxu0 0.0
          %4100 = vmatprep.subr.mxu0 0.0
          %4101 = vmatpush1.msra.mxu0 0.0
          %4102 = vmatprep.subr.mxu0 0.0
          %4103 = vmatpush1.msra.mxu0 0.0
          %4104 = vmatprep.subr.mxu0 0.0
          %4105 = vmatpush1.msra.mxu0 0.0
          %4106 = vmatprep.subr.mxu0 0.0
          %4107 = vmatpush1.msra.mxu0 0.0
          %4108 = vmatprep.subr.mxu0 0.0
          %4109 = vmatpush1.msra.mxu0 0.0
          %4110 = vmatprep.subr.mxu0 0.0
          %4111 = vmatpush1.msra.mxu0 0.0
          %4112 = vmatprep.subr.mxu0 0.0
          %4113 = vmatpush1.msra.mxu0 0.0
          %4114 = vmatprep.subr.mxu0 0.0
          %4115 = vmatpush1.msra.mxu0 0.0
          %4116 = vmatprep.subr.mxu0 0.0
          %4117 = vmatpush1.msra.mxu0 0.0
          %4118 = vmatprep.subr.mxu0 0.0
          %4119 = vmatpush1.msra.mxu0 0.0
          %4120 = vmatprep.subr.mxu0 0.0
          %4121 = vmatpush1.msra.mxu0 0.0
          %4122 = vmatprep.subr.mxu0 0.0
          %4123 = vmatpush1.msra.mxu0 0.0
          %4124 = vmatprep.subr.mxu0 0.0
          %4125 = vmatpush1.msra.mxu0 0.0
          %4126 = vmatprep.subr.mxu0 0.0
          %4127 = vmatpush1.msra.mxu0 0.0
          %4128 = vmatprep.subr.mxu0 0.0
          %4129 = vmatpush1.msra.mxu0 0.0
          %4130 = vmatprep.subr.mxu0 0.0
          %4131 = vmatpush1.msra.mxu0 0.0
          %4132 = vmatprep.subr.mxu0 0.0
          %4133 = vmatpush1.msra.mxu0 0.0
          %4134 = vmatprep.subr.mxu0 0.0
          %4135 = vmatpush1.msra.mxu0 0.0
          %4136 = vmatprep.subr.mxu0 0.0
          %4137 = vmatpush1.msra.mxu0 0.0
          %4138 = vmatprep.subr.mxu0 0.0
          %4139 = vmatpush1.msra.mxu0 0.0
          %4140 = vmatprep.subr.mxu0 0.0
          %4141 = vmatpush1.msra.mxu0 0.0
          %4142 = vmatprep.subr.mxu0 0.0
          %4143 = vmatpush1.msra.mxu0 0.0
          %4144 = vmatprep.mubr.f32.mxu0 0.0
          %4145 = vmatmul.mubr.f32.gmra.mrb[0].mxu0 %v4078
          %v4146 = vpop.f32.mrb[0].mxu0
          %v4147 = vadd.f32 0.0, %v4146
          %v4148 = vpop.f32.mrb[0].mxu0
          %4149 = vdwg.mxu0
          %v4151 = vsel %vm3915, %v3998, 0
          %4153 = vmatprep.subr.mxu0 0.0
          %4154 = vmatpush1.msra.mxu0 %v3300
          %4155 = vmatprep.subr.mxu0 0.0
          %4156 = vmatpush1.msra.mxu0 0.0
          %4157 = vmatprep.subr.mxu0 0.0
          %4158 = vmatpush1.msra.mxu0 0.0
          %4159 = vmatprep.subr.mxu0 0.0
          %4160 = vmatpush1.msra.mxu0 0.0
          %4161 = vmatprep.subr.mxu0 0.0
          %4162 = vmatpush1.msra.mxu0 0.0
          %4163 = vmatprep.subr.mxu0 0.0
          %4164 = vmatpush1.msra.mxu0 0.0
          %4165 = vmatprep.subr.mxu0 0.0
          %4166 = vmatpush1.msra.mxu0 0.0
          %4167 = vmatprep.subr.mxu0 0.0
          %4168 = vmatpush1.msra.mxu0 0.0
          %4169 = vmatprep.subr.mxu0 0.0
          %4170 = vmatpush1.msra.mxu0 0.0
          %4171 = vmatprep.subr.mxu0 0.0
          %4172 = vmatpush1.msra.mxu0 0.0
          %4173 = vmatprep.subr.mxu0 0.0
          %4174 = vmatpush1.msra.mxu0 0.0
          %4175 = vmatprep.subr.mxu0 0.0
          %4176 = vmatpush1.msra.mxu0 0.0
          %4177 = vmatprep.subr.mxu0 0.0
          %4178 = vmatpush1.msra.mxu0 0.0
          %4179 = vmatprep.subr.mxu0 0.0
          %4180 = vmatpush1.msra.mxu0 0.0
          %4181 = vmatprep.subr.mxu0 0.0
          %4182 = vmatpush1.msra.mxu0 0.0
          %4183 = vmatprep.subr.mxu0 0.0
          %4184 = vmatpush1.msra.mxu0 0.0
          %4185 = vmatprep.subr.mxu0 0.0
          %4186 = vmatpush1.msra.mxu0 0.0
          %4187 = vmatprep.subr.mxu0 0.0
          %4188 = vmatpush1.msra.mxu0 0.0
          %4189 = vmatprep.subr.mxu0 0.0
          %4190 = vmatpush1.msra.mxu0 0.0
          %4191 = vmatprep.subr.mxu0 0.0
          %4192 = vmatpush1.msra.mxu0 0.0
          %4193 = vmatprep.subr.mxu0 0.0
          %4194 = vmatpush1.msra.mxu0 0.0
          %4195 = vmatprep.subr.mxu0 0.0
          %4196 = vmatpush1.msra.mxu0 0.0
          %4197 = vmatprep.subr.mxu0 0.0
          %4198 = vmatpush1.msra.mxu0 0.0
          %4199 = vmatprep.subr.mxu0 0.0
          %4200 = vmatpush1.msra.mxu0 0.0
          %4201 = vmatprep.subr.mxu0 0.0
          %4202 = vmatpush1.msra.mxu0 0.0
          %4203 = vmatprep.subr.mxu0 0.0
          %4204 = vmatpush1.msra.mxu0 0.0
          %4205 = vmatprep.subr.mxu0 0.0
          %4206 = vmatpush1.msra.mxu0 0.0
          %4207 = vmatprep.subr.mxu0 0.0
          %4208 = vmatpush1.msra.mxu0 0.0
          %4209 = vmatprep.subr.mxu0 0.0
          %4210 = vmatpush1.msra.mxu0 0.0
          %4211 = vmatprep.subr.mxu0 0.0
          %4212 = vmatpush1.msra.mxu0 0.0
          %4213 = vmatprep.subr.mxu0 0.0
          %4214 = vmatpush1.msra.mxu0 0.0
          %4215 = vmatprep.subr.mxu0 0.0
          %4216 = vmatpush1.msra.mxu0 0.0
          %4217 = vmatprep.mubr.f32.mxu0 0.0
          %4218 = vmatmul.mubr.f32.gmra.mrb[0].mxu0 %v4151
          %v4219 = vpop.f32.mrb[0].mxu0
          %v4220 = vadd.f32 0.0, %v4219
          %v4221 = vpop.f32.mrb[0].mxu0
          %4222 = vdwg.mxu0
          %v4224 = vsel %vm3915, %v3999, 0
          %4226 = vmatprep.subr.mxu0 0.0
          %4227 = vmatpush1.msra.mxu0 %v3301
          %4228 = vmatprep.subr.mxu0 0.0
          %4229 = vmatpush1.msra.mxu0 0.0
          %4230 = vmatprep.subr.mxu0 0.0
          %4231 = vmatpush1.msra.mxu0 0.0
          %4232 = vmatprep.subr.mxu0 0.0
          %4233 = vmatpush1.msra.mxu0 0.0
          %4234 = vmatprep.subr.mxu0 0.0
          %4235 = vmatpush1.msra.mxu0 0.0
          %4236 = vmatprep.subr.mxu0 0.0
          %4237 = vmatpush1.msra.mxu0 0.0
          %4238 = vmatprep.subr.mxu0 0.0
          %4239 = vmatpush1.msra.mxu0 0.0
          %4240 = vmatprep.subr.mxu0 0.0
          %4241 = vmatpush1.msra.mxu0 0.0
          %4242 = vmatprep.subr.mxu0 0.0
          %4243 = vmatpush1.msra.mxu0 0.0
          %4244 = vmatprep.subr.mxu0 0.0
          %4245 = vmatpush1.msra.mxu0 0.0
          %4246 = vmatprep.subr.mxu0 0.0
          %4247 = vmatpush1.msra.mxu0 0.0
          %4248 = vmatprep.subr.mxu0 0.0
          %4249 = vmatpush1.msra.mxu0 0.0
          %4250 = vmatprep.subr.mxu0 0.0
          %4251 = vmatpush1.msra.mxu0 0.0
          %4252 = vmatprep.subr.mxu0 0.0
          %4253 = vmatpush1.msra.mxu0 0.0
          %4254 = vmatprep.subr.mxu0 0.0
          %4255 = vmatpush1.msra.mxu0 0.0
          %4256 = vmatprep.subr.mxu0 0.0
          %4257 = vmatpush1.msra.mxu0 0.0
          %4258 = vmatprep.subr.mxu0 0.0
          %4259 = vmatpush1.msra.mxu0 0.0
          %4260 = vmatprep.subr.mxu0 0.0
          %4261 = vmatpush1.msra.mxu0 0.0
          %4262 = vmatprep.subr.mxu0 0.0
          %4263 = vmatpush1.msra.mxu0 0.0
          %4264 = vmatprep.subr.mxu0 0.0
          %4265 = vmatpush1.msra.mxu0 0.0
          %4266 = vmatprep.subr.mxu0 0.0
          %4267 = vmatpush1.msra.mxu0 0.0
          %4268 = vmatprep.subr.mxu0 0.0
          %4269 = vmatpush1.msra.mxu0 0.0
          %4270 = vmatprep.subr.mxu0 0.0
          %4271 = vmatpush1.msra.mxu0 0.0
          %4272 = vmatprep.subr.mxu0 0.0
          %4273 = vmatpush1.msra.mxu0 0.0
          %4274 = vmatprep.subr.mxu0 0.0
          %4275 = vmatpush1.msra.mxu0 0.0
          %4276 = vmatprep.subr.mxu0 0.0
          %4277 = vmatpush1.msra.mxu0 0.0
          %4278 = vmatprep.subr.mxu0 0.0
          %4279 = vmatpush1.msra.mxu0 0.0
          %4280 = vmatprep.subr.mxu0 0.0
          %4281 = vmatpush1.msra.mxu0 0.0
          %4282 = vmatprep.subr.mxu0 0.0
          %4283 = vmatpush1.msra.mxu0 0.0
          %4284 = vmatprep.subr.mxu0 0.0
          %4285 = vmatpush1.msra.mxu0 0.0
          %4286 = vmatprep.subr.mxu0 0.0
          %4287 = vmatpush1.msra.mxu0 0.0
          %4288 = vmatprep.subr.mxu0 0.0
          %4289 = vmatpush1.msra.mxu0 0.0
          %4290 = vmatprep.mubr.f32.mxu0 0.0
          %4291 = vmatmul.mubr.f32.gmra.mrb[0].mxu0 %v4224
          %v4292 = vpop.f32.mrb[0].mxu0
          %v4293 = vadd.f32 0.0, %v4292
          %v4294 = vpop.f32.mrb[0].mxu0
          %4295 = vdwg.mxu0
          %v4297 = vsel %vm3915, %v4000, 0
          %4299 = vmatprep.subr.mxu0 0.0
          %4300 = vmatpush1.msra.mxu0 %v3302
          %4301 = vmatprep.subr.mxu0 0.0
          %4302 = vmatpush1.msra.mxu0 0.0
          %4303 = vmatprep.subr.mxu0 0.0
          %4304 = vmatpush1.msra.mxu0 0.0
          %4305 = vmatprep.subr.mxu0 0.0
          %4306 = vmatpush1.msra.mxu0 0.0
          %4307 = vmatprep.subr.mxu0 0.0
          %4308 = vmatpush1.msra.mxu0 0.0
          %4309 = vmatprep.subr.mxu0 0.0
          %4310 = vmatpush1.msra.mxu0 0.0
          %4311 = vmatprep.subr.mxu0 0.0
          %4312 = vmatpush1.msra.mxu0 0.0
          %4313 = vmatprep.subr.mxu0 0.0
          %4314 = vmatpush1.msra.mxu0 0.0
          %4315 = vmatprep.subr.mxu0 0.0
          %4316 = vmatpush1.msra.mxu0 0.0
          %4317 = vmatprep.subr.mxu0 0.0
          %4318 = vmatpush1.msra.mxu0 0.0
          %4319 = vmatprep.subr.mxu0 0.0
          %4320 = vmatpush1.msra.mxu0 0.0
          %4321 = vmatprep.subr.mxu0 0.0
          %4322 = vmatpush1.msra.mxu0 0.0
          %4323 = vmatprep.subr.mxu0 0.0
          %4324 = vmatpush1.msra.mxu0 0.0
          %4325 = vmatprep.subr.mxu0 0.0
          %4326 = vmatpush1.msra.mxu0 0.0
          %4327 = vmatprep.subr.mxu0 0.0
          %4328 = vmatpush1.msra.mxu0 0.0
          %4329 = vmatprep.subr.mxu0 0.0
          %4330 = vmatpush1.msra.mxu0 0.0
          %4331 = vmatprep.subr.mxu0 0.0
          %4332 = vmatpush1.msra.mxu0 0.0
          %4333 = vmatprep.subr.mxu0 0.0
          %4334 = vmatpush1.msra.mxu0 0.0
          %4335 = vmatprep.subr.mxu0 0.0
          %4336 = vmatpush1.msra.mxu0 0.0
          %4337 = vmatprep.subr.mxu0 0.0
          %4338 = vmatpush1.msra.mxu0 0.0
          %4339 = vmatprep.subr.mxu0 0.0
          %4340 = vmatpush1.msra.mxu0 0.0
          %4341 = vmatprep.subr.mxu0 0.0
          %4342 = vmatpush1.msra.mxu0 0.0
          %4343 = vmatprep.subr.mxu0 0.0
          %4344 = vmatpush1.msra.mxu0 0.0
          %4345 = vmatprep.subr.mxu0 0.0
          %4346 = vmatpush1.msra.mxu0 0.0
          %4347 = vmatprep.subr.mxu0 0.0
          %4348 = vmatpush1.msra.mxu0 0.0
          %4349 = vmatprep.subr.mxu0 0.0
          %4350 = vmatpush1.msra.mxu0 0.0
          %4351 = vmatprep.subr.mxu0 0.0
          %4352 = vmatpush1.msra.mxu0 0.0
          %4353 = vmatprep.subr.mxu0 0.0
          %4354 = vmatpush1.msra.mxu0 0.0
          %4355 = vmatprep.subr.mxu0 0.0
          %4356 = vmatpush1.msra.mxu0 0.0
          %4357 = vmatprep.subr.mxu0 0.0
          %4358 = vmatpush1.msra.mxu0 0.0
          %4359 = vmatprep.subr.mxu0 0.0
          %4360 = vmatpush1.msra.mxu0 0.0
          %4361 = vmatprep.subr.mxu0 0.0
          %4362 = vmatpush1.msra.mxu0 0.0
          %4363 = vmatprep.mubr.f32.mxu0 0.0
          %4364 = vmatmul.mubr.f32.gmra.mrb[0].mxu0 %v4297
          %v4365 = vpop.f32.mrb[0].mxu0
          %v4366 = vadd.f32 0.0, %v4365
          %v4367 = vpop.f32.mrb[0].mxu0
          %4368 = vdwg.mxu0
          %v4370 = vsel %vm3915, %v4001, 0
          %4372 = vmatprep.subr.mxu0 0.0
          %4373 = vmatpush1.msra.mxu0 %v3303
          %4374 = vmatprep.subr.mxu0 0.0
          %4375 = vmatpush1.msra.mxu0 0.0
          %4376 = vmatprep.subr.mxu0 0.0
          %4377 = vmatpush1.msra.mxu0 0.0
          %4378 = vmatprep.subr.mxu0 0.0
          %4379 = vmatpush1.msra.mxu0 0.0
          %4380 = vmatprep.subr.mxu0 0.0
          %4381 = vmatpush1.msra.mxu0 0.0
          %4382 = vmatprep.subr.mxu0 0.0
          %4383 = vmatpush1.msra.mxu0 0.0
          %4384 = vmatprep.subr.mxu0 0.0
          %4385 = vmatpush1.msra.mxu0 0.0
          %4386 = vmatprep.subr.mxu0 0.0
          %4387 = vmatpush1.msra.mxu0 0.0
          %4388 = vmatprep.subr.mxu0 0.0
          %4389 = vmatpush1.msra.mxu0 0.0
          %4390 = vmatprep.subr.mxu0 0.0
          %4391 = vmatpush1.msra.mxu0 0.0
          %4392 = vmatprep.subr.mxu0 0.0
          %4393 = vmatpush1.msra.mxu0 0.0
          %4394 = vmatprep.subr.mxu0 0.0
          %4395 = vmatpush1.msra.mxu0 0.0
          %4396 = vmatprep.subr.mxu0 0.0
          %4397 = vmatpush1.msra.mxu0 0.0
          %4398 = vmatprep.subr.mxu0 0.0
          %4399 = vmatpush1.msra.mxu0 0.0
          %4400 = vmatprep.subr.mxu0 0.0
          %4401 = vmatpush1.msra.mxu0 0.0
          %4402 = vmatprep.subr.mxu0 0.0
          %4403 = vmatpush1.msra.mxu0 0.0
          %4404 = vmatprep.subr.mxu0 0.0
          %4405 = vmatpush1.msra.mxu0 0.0
          %4406 = vmatprep.subr.mxu0 0.0
          %4407 = vmatpush1.msra.mxu0 0.0
          %4408 = vmatprep.subr.mxu0 0.0
          %4409 = vmatpush1.msra.mxu0 0.0
          %4410 = vmatprep.subr.mxu0 0.0
          %4411 = vmatpush1.msra.mxu0 0.0
          %4412 = vmatprep.subr.mxu0 0.0
          %4413 = vmatpush1.msra.mxu0 0.0
          %4414 = vmatprep.subr.mxu0 0.0
          %4415 = vmatpush1.msra.mxu0 0.0
          %4416 = vmatprep.subr.mxu0 0.0
          %4417 = vmatpush1.msra.mxu0 0.0
          %4418 = vmatprep.subr.mxu0 0.0
          %4419 = vmatpush1.msra.mxu0 0.0
          %4420 = vmatprep.subr.mxu0 0.0
          %4421 = vmatpush1.msra.mxu0 0.0
          %4422 = vmatprep.subr.mxu0 0.0
          %4423 = vmatpush1.msra.mxu0 0.0
          %4424 = vmatprep.subr.mxu0 0.0
          %4425 = vmatpush1.msra.mxu0 0.0
          %4426 = vmatprep.subr.mxu0 0.0
          %4427 = vmatpush1.msra.mxu0 0.0
          %4428 = vmatprep.subr.mxu0 0.0
          %4429 = vmatpush1.msra.mxu0 0.0
          %4430 = vmatprep.subr.mxu0 0.0
          %4431 = vmatpush1.msra.mxu0 0.0
          %4432 = vmatprep.subr.mxu0 0.0
          %4433 = vmatpush1.msra.mxu0 0.0
          %4434 = vmatprep.subr.mxu0 0.0
          %4435 = vmatpush1.msra.mxu0 0.0
          %4436 = vmatprep.mubr.f32.mxu0 0.0
          %4437 = vmatmul.mubr.f32.gmra.mrb[0].mxu0 %v4370
          %v4438 = vpop.f32.mrb[0].mxu0
          %v4439 = vadd.f32 0.0, %v4438
          %v4440 = vpop.f32.mrb[0].mxu0
          %4441 = vdwg.mxu0
          %v4443 = vsel %vm3915, %v4002, 0
          %4445 = vmatprep.subr.mxu0 0.0
          %4446 = vmatpush1.msra.mxu0 %v3304
          %4447 = vmatprep.subr.mxu0 0.0
          %4448 = vmatpush1.msra.mxu0 0.0
          %4449 = vmatprep.subr.mxu0 0.0
          %4450 = vmatpush1.msra.mxu0 0.0
          %4451 = vmatprep.subr.mxu0 0.0
          %4452 = vmatpush1.msra.mxu0 0.0
          %4453 = vmatprep.subr.mxu0 0.0
          %4454 = vmatpush1.msra.mxu0 0.0
          %4455 = vmatprep.subr.mxu0 0.0
          %4456 = vmatpush1.msra.mxu0 0.0
          %4457 = vmatprep.subr.mxu0 0.0
          %4458 = vmatpush1.msra.mxu0 0.0
          %4459 = vmatprep.subr.mxu0 0.0
          %4460 = vmatpush1.msra.mxu0 0.0
          %4461 = vmatprep.subr.mxu0 0.0
          %4462 = vmatpush1.msra.mxu0 0.0
          %4463 = vmatprep.subr.mxu0 0.0
          %4464 = vmatpush1.msra.mxu0 0.0
          %4465 = vmatprep.subr.mxu0 0.0
          %4466 = vmatpush1.msra.mxu0 0.0
          %4467 = vmatprep.subr.mxu0 0.0
          %4468 = vmatpush1.msra.mxu0 0.0
          %4469 = vmatprep.subr.mxu0 0.0
          %4470 = vmatpush1.msra.mxu0 0.0
          %4471 = vmatprep.subr.mxu0 0.0
          %4472 = vmatpush1.msra.mxu0 0.0
          %4473 = vmatprep.subr.mxu0 0.0
          %4474 = vmatpush1.msra.mxu0 0.0
          %4475 = vmatprep.subr.mxu0 0.0
          %4476 = vmatpush1.msra.mxu0 0.0
          %4477 = vmatprep.subr.mxu0 0.0
          %4478 = vmatpush1.msra.mxu0 0.0
          %4479 = vmatprep.subr.mxu0 0.0
          %4480 = vmatpush1.msra.mxu0 0.0
          %4481 = vmatprep.subr.mxu0 0.0
          %4482 = vmatpush1.msra.mxu0 0.0
          %4483 = vmatprep.subr.mxu0 0.0
          %4484 = vmatpush1.msra.mxu0 0.0
          %4485 = vmatprep.subr.mxu0 0.0
          %4486 = vmatpush1.msra.mxu0 0.0
          %4487 = vmatprep.subr.mxu0 0.0
          %4488 = vmatpush1.msra.mxu0 0.0
          %4489 = vmatprep.subr.mxu0 0.0
          %4490 = vmatpush1.msra.mxu0 0.0
          %4491 = vmatprep.subr.mxu0 0.0
          %4492 = vmatpush1.msra.mxu0 0.0
          %4493 = vmatprep.subr.mxu0 0.0
          %4494 = vmatpush1.msra.mxu0 0.0
          %4495 = vmatprep.subr.mxu0 0.0
          %4496 = vmatpush1.msra.mxu0 0.0
          %4497 = vmatprep.subr.mxu0 0.0
          %4498 = vmatpush1.msra.mxu0 0.0
          %4499 = vmatprep.subr.mxu0 0.0
          %4500 = vmatpush1.msra.mxu0 0.0
          %4501 = vmatprep.subr.mxu0 0.0
          %4502 = vmatpush1.msra.mxu0 0.0
          %4503 = vmatprep.subr.mxu0 0.0
          %4504 = vmatpush1.msra.mxu0 0.0
          %4505 = vmatprep.subr.mxu0 0.0
          %4506 = vmatpush1.msra.mxu0 0.0
          %4507 = vmatprep.subr.mxu0 0.0
          %4508 = vmatpush1.msra.mxu0 0.0
          %4509 = vmatprep.mubr.f32.mxu0 0.0
          %4510 = vmatmul.mubr.f32.gmra.mrb[0].mxu0 %v4443
          %v4511 = vpop.f32.mrb[0].mxu0
          %v4512 = vadd.f32 0.0, %v4511
          %v4513 = vpop.f32.mrb[0].mxu0
          %4514 = vdwg.mxu0
          %v4516 = vsel %vm3915, %v4003, 0
          %4518 = vmatprep.subr.mxu0 0.0
          %4519 = vmatpush1.msra.mxu0 %v3305
          %4520 = vmatprep.subr.mxu0 0.0
          %4521 = vmatpush1.msra.mxu0 0.0
          %4522 = vmatprep.subr.mxu0 0.0
          %4523 = vmatpush1.msra.mxu0 0.0
          %4524 = vmatprep.subr.mxu0 0.0
          %4525 = vmatpush1.msra.mxu0 0.0
          %4526 = vmatprep.subr.mxu0 0.0
          %4527 = vmatpush1.msra.mxu0 0.0
          %4528 = vmatprep.subr.mxu0 0.0
          %4529 = vmatpush1.msra.mxu0 0.0
          %4530 = vmatprep.subr.mxu0 0.0
          %4531 = vmatpush1.msra.mxu0 0.0
          %4532 = vmatprep.subr.mxu0 0.0
          %4533 = vmatpush1.msra.mxu0 0.0
          %4534 = vmatprep.subr.mxu0 0.0
          %4535 = vmatpush1.msra.mxu0 0.0
          %4536 = vmatprep.subr.mxu0 0.0
          %4537 = vmatpush1.msra.mxu0 0.0
          %4538 = vmatprep.subr.mxu0 0.0
          %4539 = vmatpush1.msra.mxu0 0.0
          %4540 = vmatprep.subr.mxu0 0.0
          %4541 = vmatpush1.msra.mxu0 0.0
          %4542 = vmatprep.subr.mxu0 0.0
          %4543 = vmatpush1.msra.mxu0 0.0
          %4544 = vmatprep.subr.mxu0 0.0
          %4545 = vmatpush1.msra.mxu0 0.0
          %4546 = vmatprep.subr.mxu0 0.0
          %4547 = vmatpush1.msra.mxu0 0.0
          %4548 = vmatprep.subr.mxu0 0.0
          %4549 = vmatpush1.msra.mxu0 0.0
          %4550 = vmatprep.subr.mxu0 0.0
          %4551 = vmatpush1.msra.mxu0 0.0
          %4552 = vmatprep.subr.mxu0 0.0
          %4553 = vmatpush1.msra.mxu0 0.0
          %4554 = vmatprep.subr.mxu0 0.0
          %4555 = vmatpush1.msra.mxu0 0.0
          %4556 = vmatprep.subr.mxu0 0.0
          %4557 = vmatpush1.msra.mxu0 0.0
          %4558 = vmatprep.subr.mxu0 0.0
          %4559 = vmatpush1.msra.mxu0 0.0
          %4560 = vmatprep.subr.mxu0 0.0
          %4561 = vmatpush1.msra.mxu0 0.0
          %4562 = vmatprep.subr.mxu0 0.0
          %4563 = vmatpush1.msra.mxu0 0.0
          %4564 = vmatprep.subr.mxu0 0.0
          %4565 = vmatpush1.msra.mxu0 0.0
          %4566 = vmatprep.subr.mxu0 0.0
          %4567 = vmatpush1.msra.mxu0 0.0
          %4568 = vmatprep.subr.mxu0 0.0
          %4569 = vmatpush1.msra.mxu0 0.0
          %4570 = vmatprep.subr.mxu0 0.0
          %4571 = vmatpush1.msra.mxu0 0.0
          %4572 = vmatprep.subr.mxu0 0.0
          %4573 = vmatpush1.msra.mxu0 0.0
          %4574 = vmatprep.subr.mxu0 0.0
          %4575 = vmatpush1.msra.mxu0 0.0
          %4576 = vmatprep.subr.mxu0 0.0
          %4577 = vmatpush1.msra.mxu0 0.0
          %4578 = vmatprep.subr.mxu0 0.0
          %4579 = vmatpush1.msra.mxu0 0.0
          %4580 = vmatprep.subr.mxu0 0.0
          %4581 = vmatpush1.msra.mxu0 0.0
          %4582 = vmatprep.mubr.f32.mxu0 0.0
          %4583 = vmatmul.mubr.f32.gmra.mrb[0].mxu0 %v4516
          %v4584 = vpop.f32.mrb[0].mxu0
          %v4585 = vadd.f32 0.0, %v4584
          %v4586 = vpop.f32.mrb[0].mxu0
          %4587 = vdwg.mxu0
          %v4588 = vcombine.low %v4074, %v4220
          %v4589 = vcombine.high %v4074, %v4220
          %v4591 = vunpack.c.l.s4 1983009808
          %v4592 = vunpack.c.0.s8 %v4591
          %v4593 = vlaneseq
          %v4594 = vshrl.u32 %v4593, 7
          %v4595 = vsub.s32 %v4592, %v4594
          %v4596 = vrot.slane %v4588, %v4595
          %v4598 = vunpack.c.l.s4 1983009808
          %v4599 = vunpack.c.0.s8 %v4598
          %v4600 = vlaneseq
          %v4601 = vshrl.u32 %v4600, 7
          %v4602 = vsub.s32 %v4599, %v4601
          %v4603 = vrot.slane %v4589, %v4602
          %v4604 = vcombine.low %v4147, %v4293
          %v4605 = vcombine.high %v4147, %v4293
          %v4607 = vunpack.c.l.s4 1983009808
          %v4608 = vunpack.c.0.s8 %v4607
          %v4609 = vlaneseq
          %v4610 = vshrl.u32 %v4609, 7
          %v4611 = vsub.s32 %v4608, %v4610
          %v4612 = vrot.slane %v4604, %v4611
          %v4614 = vunpack.c.l.s4 1983009808
          %v4615 = vunpack.c.0.s8 %v4614
          %v4616 = vlaneseq
          %v4617 = vshrl.u32 %v4616, 7
          %v4618 = vsub.s32 %v4615, %v4617
          %v4619 = vrot.slane %v4605, %v4618
          %v4620 = vcombine.low %v4366, %v4512
          %v4621 = vcombine.high %v4366, %v4512
          %v4623 = vunpack.c.l.s4 1983009808
          %v4624 = vunpack.c.0.s8 %v4623
          %v4625 = vlaneseq
          %v4626 = vshrl.u32 %v4625, 7
          %v4627 = vsub.s32 %v4624, %v4626
          %v4628 = vrot.slane %v4620, %v4627
          %v4630 = vunpack.c.l.s4 1983009808
          %v4631 = vunpack.c.0.s8 %v4630
          %v4632 = vlaneseq
          %v4633 = vshrl.u32 %v4632, 7
          %v4634 = vsub.s32 %v4631, %v4633
          %v4635 = vrot.slane %v4621, %v4634
          %v4636 = vcombine.low %v4439, %v4585
          %v4637 = vcombine.high %v4439, %v4585
          %v4639 = vunpack.c.l.s4 1983009808
          %v4640 = vunpack.c.0.s8 %v4639
          %v4641 = vlaneseq
          %v4642 = vshrl.u32 %v4641, 7
          %v4643 = vsub.s32 %v4640, %v4642
          %v4644 = vrot.slane %v4636, %v4643
          %v4646 = vunpack.c.l.s4 1983009808
          %v4647 = vunpack.c.0.s8 %v4646
          %v4648 = vlaneseq
          %v4649 = vshrl.u32 %v4648, 7
          %v4650 = vsub.s32 %v4647, %v4649
          %v4651 = vrot.slane %v4637, %v4650
          %v4652 = vcombine.low %v4596, %v4612
          %v4653 = vcombine.high %v4596, %v4612
          %v4655 = vunpack.c.l.s4 1934713408
          %v4656 = vunpack.c.0.s8 %v4655
          %v4657 = vlaneseq
          %v4658 = vshrl.u32 %v4657, 7
          %v4659 = vsub.s32 %v4656, %v4658
          %v4660 = vrot.slane %v4652, %v4659
          %v4662 = vunpack.c.l.s4 1934713408
          %v4663 = vunpack.c.0.s8 %v4662
          %v4664 = vlaneseq
          %v4665 = vshrl.u32 %v4664, 7
          %v4666 = vsub.s32 %v4663, %v4665
          %v4667 = vrot.slane %v4653, %v4666
          %v4668 = vcombine.low %v4603, %v4619
          %v4669 = vcombine.high %v4603, %v4619
          %v4671 = vunpack.c.l.s4 1934713408
          %v4672 = vunpack.c.0.s8 %v4671
          %v4673 = vlaneseq
          %v4674 = vshrl.u32 %v4673, 7
          %v4675 = vsub.s32 %v4672, %v4674
          %v4676 = vrot.slane %v4668, %v4675
          %v4678 = vunpack.c.l.s4 1934713408
          %v4679 = vunpack.c.0.s8 %v4678
          %v4680 = vlaneseq
          %v4681 = vshrl.u32 %v4680, 7
          %v4682 = vsub.s32 %v4679, %v4681
          %v4683 = vrot.slane %v4669, %v4682
          %v4684 = vcombine.low %v4628, %v4644
          %v4685 = vcombine.high %v4628, %v4644
          %v4687 = vunpack.c.l.s4 1934713408
          %v4688 = vunpack.c.0.s8 %v4687
          %v4689 = vlaneseq
          %v4690 = vshrl.u32 %v4689, 7
          %v4691 = vsub.s32 %v4688, %v4690
          %v4692 = vrot.slane %v4684, %v4691
          %v4694 = vunpack.c.l.s4 1934713408
          %v4695 = vunpack.c.0.s8 %v4694
          %v4696 = vlaneseq
          %v4697 = vshrl.u32 %v4696, 7
          %v4698 = vsub.s32 %v4695, %v4697
          %v4699 = vrot.slane %v4685, %v4698
          %v4700 = vcombine.low %v4635, %v4651
          %v4701 = vcombine.high %v4635, %v4651
          %v4703 = vunpack.c.l.s4 1934713408
          %v4704 = vunpack.c.0.s8 %v4703
          %v4705 = vlaneseq
          %v4706 = vshrl.u32 %v4705, 7
          %v4707 = vsub.s32 %v4704, %v4706
          %v4708 = vrot.slane %v4700, %v4707
          %v4710 = vunpack.c.l.s4 1934713408
          %v4711 = vunpack.c.0.s8 %v4710
          %v4712 = vlaneseq
          %v4713 = vshrl.u32 %v4712, 7
          %v4714 = vsub.s32 %v4711, %v4713
          %v4715 = vrot.slane %v4701, %v4714
          %v4716 = vcombine.low %v4660, %v4692
          %v4717 = vcombine.high %v4660, %v4692
          %v4718 = vcombine.low %v4667, %v4699
          %v4719 = vcombine.high %v4667, %v4699
          %v4720 = vcombine.low %v4676, %v4708
          %v4721 = vcombine.high %v4676, %v4708
          %v4722 = vcombine.low %v4683, %v4715
          %v4723 = vcombine.high %v4683, %v4715
          %v4724 = vcombine.low %v4716, %v4718
          %v4725 = vcombine.high %v4716, %v4718
          %v4727 = vunpack.c.l.s4 1983009808
          %v4728 = vunpack.c.0.s8 %v4727
          %v4729 = vlaneseq
          %v4730 = vshrl.u32 %v4729, 7
          %v4731 = vsub.s32 %v4728, %v4730
          %v4732 = vrot.slane %v4724, %v4731
          %v4734 = vunpack.c.l.s4 1983009808
          %v4735 = vunpack.c.0.s8 %v4734
          %v4736 = vlaneseq
          %v4737 = vshrl.u32 %v4736, 7
          %v4738 = vsub.s32 %v4735, %v4737
          %v4739 = vrot.slane %v4725, %v4738
          %v4740 = vcombine.low %v4717, %v4719
          %v4741 = vcombine.high %v4717, %v4719
          %v4743 = vunpack.c.l.s4 1983009808
          %v4744 = vunpack.c.0.s8 %v4743
          %v4745 = vlaneseq
          %v4746 = vshrl.u32 %v4745, 7
          %v4747 = vsub.s32 %v4744, %v4746
          %v4748 = vrot.slane %v4740, %v4747
          %v4750 = vunpack.c.l.s4 1983009808
          %v4751 = vunpack.c.0.s8 %v4750
          %v4752 = vlaneseq
          %v4753 = vshrl.u32 %v4752, 7
          %v4754 = vsub.s32 %v4751, %v4753
          %v4755 = vrot.slane %v4741, %v4754
          %v4756 = vcombine.low %v4720, %v4722
          %v4757 = vcombine.high %v4720, %v4722
          %v4759 = vunpack.c.l.s4 1983009808
          %v4760 = vunpack.c.0.s8 %v4759
          %v4761 = vlaneseq
          %v4762 = vshrl.u32 %v4761, 7
          %v4763 = vsub.s32 %v4760, %v4762
          %v4764 = vrot.slane %v4756, %v4763
          %v4766 = vunpack.c.l.s4 1983009808
          %v4767 = vunpack.c.0.s8 %v4766
          %v4768 = vlaneseq
          %v4769 = vshrl.u32 %v4768, 7
          %v4770 = vsub.s32 %v4767, %v4769
          %v4771 = vrot.slane %v4757, %v4770
          %v4772 = vcombine.low %v4721, %v4723
          %v4773 = vcombine.high %v4721, %v4723
          %v4775 = vunpack.c.l.s4 1983009808
          %v4776 = vunpack.c.0.s8 %v4775
          %v4777 = vlaneseq
          %v4778 = vshrl.u32 %v4777, 7
          %v4779 = vsub.s32 %v4776, %v4778
          %v4780 = vrot.slane %v4772, %v4779
          %v4782 = vunpack.c.l.s4 1983009808
          %v4783 = vunpack.c.0.s8 %v4782
          %v4784 = vlaneseq
          %v4785 = vshrl.u32 %v4784, 7
          %v4786 = vsub.s32 %v4783, %v4785
          %v4787 = vrot.slane %v4773, %v4786
          %v4788 = vcombine.low %v4732, %v4748
          %v4789 = vcombine.high %v4732, %v4748
          %v4791 = vunpack.c.l.s4 1934713408
          %v4792 = vunpack.c.0.s8 %v4791
          %v4793 = vlaneseq
          %v4794 = vshrl.u32 %v4793, 7
          %v4795 = vsub.s32 %v4792, %v4794
          %v4796 = vrot.slane %v4788, %v4795
          %v4798 = vunpack.c.l.s4 1934713408
          %v4799 = vunpack.c.0.s8 %v4798
          %v4800 = vlaneseq
          %v4801 = vshrl.u32 %v4800, 7
          %v4802 = vsub.s32 %v4799, %v4801
          %v4803 = vrot.slane %v4789, %v4802
          %v4804 = vcombine.low %v4739, %v4755
          %v4805 = vcombine.high %v4739, %v4755
          %v4807 = vunpack.c.l.s4 1934713408
          %v4808 = vunpack.c.0.s8 %v4807
          %v4809 = vlaneseq
          %v4810 = vshrl.u32 %v4809, 7
          %v4811 = vsub.s32 %v4808, %v4810
          %v4812 = vrot.slane %v4804, %v4811
          %v4814 = vunpack.c.l.s4 1934713408
          %v4815 = vunpack.c.0.s8 %v4814
          %v4816 = vlaneseq
          %v4817 = vshrl.u32 %v4816, 7
          %v4818 = vsub.s32 %v4815, %v4817
          %v4819 = vrot.slane %v4805, %v4818
          %v4820 = vcombine.low %v4764, %v4780
          %v4821 = vcombine.high %v4764, %v4780
          %v4823 = vunpack.c.l.s4 1934713408
          %v4824 = vunpack.c.0.s8 %v4823
          %v4825 = vlaneseq
          %v4826 = vshrl.u32 %v4825, 7
          %v4827 = vsub.s32 %v4824, %v4826
          %v4828 = vrot.slane %v4820, %v4827
          %v4830 = vunpack.c.l.s4 1934713408
          %v4831 = vunpack.c.0.s8 %v4830
          %v4832 = vlaneseq
          %v4833 = vshrl.u32 %v4832, 7
          %v4834 = vsub.s32 %v4831, %v4833
          %v4835 = vrot.slane %v4821, %v4834
          %v4836 = vcombine.low %v4771, %v4787
          %v4837 = vcombine.high %v4771, %v4787
          %v4839 = vunpack.c.l.s4 1934713408
          %v4840 = vunpack.c.0.s8 %v4839
          %v4841 = vlaneseq
          %v4842 = vshrl.u32 %v4841, 7
          %v4843 = vsub.s32 %v4840, %v4842
          %v4844 = vrot.slane %v4836, %v4843
          %v4846 = vunpack.c.l.s4 1934713408
          %v4847 = vunpack.c.0.s8 %v4846
          %v4848 = vlaneseq
          %v4849 = vshrl.u32 %v4848, 7
          %v4850 = vsub.s32 %v4847, %v4849
          %v4851 = vrot.slane %v4837, %v4850
          %v4852 = vcombine.low %v4796, %v4828
          %v4853 = vcombine.high %v4796, %v4828
          %v4854 = vcombine.low %v4803, %v4835
          %v4855 = vcombine.high %v4803, %v4835
          %v4856 = vcombine.low %v4812, %v4844
          %v4857 = vcombine.high %v4812, %v4844
          %v4858 = vcombine.low %v4819, %v4851
          %v4859 = vcombine.high %v4819, %v4851
          %4861 = vrot.lane.b32.xlu0 %v4853, 16
          %v4862 = vpop.permute.xlu0 %4861
          %4865 = vrot.lane.b32.xlu0 %v4854, 32
          %v4866 = vpop.permute.xlu0 %4865
          %4869 = vrot.lane.b32.xlu0 %v4855, 48
          %v4870 = vpop.permute.xlu0 %4869
          %4873 = vrot.lane.b32.xlu0 %v4856, 64
          %v4874 = vpop.permute.xlu0 %4873
          %4877 = vrot.lane.b32.xlu0 %v4857, 80
          %v4878 = vpop.permute.xlu0 %4877
          %4881 = vrot.lane.b32.xlu0 %v4858, 96
          %v4882 = vpop.permute.xlu0 %4881
          %4885 = vrot.lane.b32.xlu0 %v4859, 112
          %v4886 = vpop.permute.xlu0 %4885
          %v4888 = vsel %vm3306, %v4852, %v4862
          %vm4889 = vcmask 261120
          %v4890 = vsel %vm4889, %v4888, %v4866
          %vm4891 = vcmask 392192
          %v4892 = vsel %vm4891, %v4890, %v4870
          %vm4893 = vcmask 523264
          %v4894 = vsel %vm4893, %v4892, %v4874
          %vm4895 = vcmask 654336
          %v4896 = vsel %vm4895, %v4894, %v4878
          %vm4897 = vcmask 785408
          %v4898 = vsel %vm4897, %v4896, %v4882
          %vm4899 = vcmask 916480
          %v4900 = vsel %vm4899, %v4898, %v4886
          %v4901 = vmul.f32 %v4900, %v4900
          %4902 = vadd.xlane.f32.xlu0 %v4901
          %v4903 = vpop.xlane.xlu0 %4902
          %v4904 = vadd.f32 %v4903, 1e-12
          %v4905 = vrsqrt.pop %v4904
          %v4906 = vmul.f32 %v4900, %v4905
          %4907 = vst [vmem:[#allocation26] sm:$0xff] %v4906
          %v4908 = vpack.c.bf16 %v4906, %v4906
          %v4909 = vld [vmem:[#allocation17] sm:$0xf]
          %v4910 = vld [vmem:[#allocation17 + $0x4] sm:$0xf]
          %v4911 = vld [vmem:[#allocation17 + $0x8] sm:$0xf]
          %v4912 = vld [vmem:[#allocation17 + $0xc] sm:$0xf]
          %v4913 = vld [vmem:[#allocation17 + $0x10] sm:$0xf]
          %v4914 = vld [vmem:[#allocation17 + $0x14] sm:$0xf]
          %v4915 = vld [vmem:[#allocation17 + $0x18] sm:$0xf]
          %v4916 = vld [vmem:[#allocation17 + $0x1c] sm:$0xf]
          %v4917 = vld [vmem:[#allocation17 + $0x20] sm:$0xf]
          %v4918 = vld [vmem:[#allocation17 + $0x24] sm:$0xf]
          %v4919 = vld [vmem:[#allocation17 + $0x28] sm:$0xf]
          %v4920 = vld [vmem:[#allocation17 + $0x2c] sm:$0xf]
          %v4921 = vld [vmem:[#allocation17 + $0x30] sm:$0xf]
          %v4922 = vld [vmem:[#allocation17 + $0x34] sm:$0xf]
          %v4923 = vld [vmem:[#allocation17 + $0x38] sm:$0xf]
          %v4924 = vld [vmem:[#allocation17 + $0x3c] sm:$0xf]
          %v4925 = vld [vmem:[#allocation18] sm:$0x1]
          %v4927 = vlaneseq
          %v4928 = vshrl.u32 %v4927, 7
          %v4929 = vsub.s32 0, %v4928
          %v4930 = vrot.slane %v4925, %v4929
          %v4948 = vunpack.c.l.b16 %v4909
          %v4949 = vunpack.c.l.b16 %v4910
          %v4950 = vunpack.c.l.b16 %v4911
          %v4951 = vunpack.c.l.b16 %v4912
          %v4952 = vunpack.c.l.b16 %v4913
          %v4953 = vunpack.c.l.b16 %v4914
          %v4954 = vunpack.c.l.b16 %v4915
          %v4955 = vunpack.c.l.b16 %v4916
          %v4956 = vunpack.c.l.b16 %v4917
          %v4957 = vunpack.c.l.b16 %v4918
          %v4958 = vunpack.c.l.b16 %v4919
          %v4959 = vunpack.c.l.b16 %v4920
          %v4960 = vunpack.c.l.b16 %v4921
          %v4961 = vunpack.c.l.b16 %v4922
          %v4962 = vunpack.c.l.b16 %v4923
          %v4963 = vunpack.c.l.b16 %v4924
          %v4964 = vpack.c.b16 %v4949, %v4948
          %v4965 = vpack.c.b16 %v4951, %v4950
          %v4966 = vpack.c.b16 %v4953, %v4952
          %v4967 = vpack.c.b16 %v4955, %v4954
          %v4968 = vpack.c.b16 %v4957, %v4956
          %v4969 = vpack.c.b16 %v4959, %v4958
          %v4970 = vpack.c.b16 %v4961, %v4960
          %v4971 = vpack.c.b16 %v4963, %v4962
          %4980 = vmatprep.subr.bf16.mxu0 0
          %4981 = vmatpush1.bf16.msra.mxu0 %v4964
          %4982 = vmatprep.subr.bf16.mxu0 0
          %4983 = vmatpush1.bf16.msra.mxu0 %v4965
          %4984 = vmatprep.subr.bf16.mxu0 0
          %4985 = vmatpush1.bf16.msra.mxu0 %v4966
          %4986 = vmatprep.subr.bf16.mxu0 0
          %4987 = vmatpush1.bf16.msra.mxu0 %v4967
          %4988 = vmatprep.subr.bf16.mxu0 0
          %4989 = vmatpush1.bf16.msra.mxu0 %v4968
          %4990 = vmatprep.subr.bf16.mxu0 0
          %4991 = vmatpush1.bf16.msra.mxu0 %v4969
          %4992 = vmatprep.subr.bf16.mxu0 0
          %4993 = vmatpush1.bf16.msra.mxu0 %v4970
          %4994 = vmatprep.subr.bf16.mxu0 0
          %4995 = vmatpush1.bf16.msra.mxu0 %v4971
          %4996 = vmatprep.subr.bf16.mxu0 0
          %4997 = vmatpush1.bf16.msra.mxu0 0
          %4998 = vmatprep.subr.bf16.mxu0 0
          %4999 = vmatpush1.bf16.msra.mxu0 0
          %5000 = vmatprep.subr.bf16.mxu0 0
          %5001 = vmatpush1.bf16.msra.mxu0 0
          %5002 = vmatprep.subr.bf16.mxu0 0
          %5003 = vmatpush1.bf16.msra.mxu0 0
          %5004 = vmatprep.subr.bf16.mxu0 0
          %5005 = vmatpush1.bf16.msra.mxu0 0
          %5006 = vmatprep.subr.bf16.mxu0 0
          %5007 = vmatpush1.bf16.msra.mxu0 0
          %5008 = vmatprep.subr.bf16.mxu0 0
          %5009 = vmatpush1.bf16.msra.mxu0 0
          %5010 = vmatprep.subr.bf16.mxu0 0
          %5011 = vmatpush1.bf16.msra.mxu0 0
          %5012 = vmatprep.mubr.bf16.mxu0 0
          %5013 = vmatmul.mubr.bf16.gmra.mrb[0].mxu0 %v4908
          %v5014 = vpop.f32.mrb[0].mxu0
          %v5015 = vadd.f32 %v4930, %v5014
          %v5016 = vpop.f32.mrb[0].mxu0
          %v5017 = vpop.f32.mrb[0].mxu0
          %v5018 = vpop.f32.mrb[0].mxu0
          %5019 = vdwg.mxu0
          %v5020 = vpack.c.bf16 %v5015, %v5015
          %v5021 = vld [vmem:[%s10] sm:$0xf]
          %v5022 = vld [vmem:[%s10 + $0x4] sm:$0xf]
          %v5023 = vld [vmem:[%s10 + $0x8] sm:$0xf]
          %v5024 = vld [vmem:[%s10 + $0xc] sm:$0xf]
          %v5025 = vld [vmem:[%s10 + $0x10] sm:$0xf]
          %v5026 = vld [vmem:[%s10 + $0x14] sm:$0xf]
          %v5027 = vld [vmem:[%s10 + $0x18] sm:$0xf]
          %v5028 = vld [vmem:[%s10 + $0x1c] sm:$0xf]
          %v5029 = vld [vmem:[%s10 + $0x20] sm:$0xf]
          %v5030 = vld [vmem:[%s10 + $0x24] sm:$0xf]
          %v5031 = vld [vmem:[%s10 + $0x28] sm:$0xf]
          %v5032 = vld [vmem:[%s10 + $0x2c] sm:$0xf]
          %v5033 = vld [vmem:[%s10 + $0x30] sm:$0xf]
          %v5034 = vld [vmem:[%s10 + $0x34] sm:$0xf]
          %v5035 = vld [vmem:[%s10 + $0x38] sm:$0xf]
          %v5036 = vld [vmem:[%s10 + $0x3c] sm:$0xf]
          %v5037 = vld [vmem:[#allocation20] sm:$0x1]
          %v5039 = vlaneseq
          %v5040 = vshrl.u32 %v5039, 7
          %v5041 = vsub.s32 0, %v5040
          %v5042 = vrot.slane %v5037, %v5041
          %v5060 = vunpack.c.l.b16 %v5021
          %v5061 = vunpack.c.l.b16 %v5022
          %v5062 = vunpack.c.l.b16 %v5023
          %v5063 = vunpack.c.l.b16 %v5024
          %v5064 = vunpack.c.l.b16 %v5025
          %v5065 = vunpack.c.l.b16 %v5026
          %v5066 = vunpack.c.l.b16 %v5027
          %v5067 = vunpack.c.l.b16 %v5028
          %v5068 = vunpack.c.l.b16 %v5029
          %v5069 = vunpack.c.l.b16 %v5030
          %v5070 = vunpack.c.l.b16 %v5031
          %v5071 = vunpack.c.l.b16 %v5032
          %v5072 = vunpack.c.l.b16 %v5033
          %v5073 = vunpack.c.l.b16 %v5034
          %v5074 = vunpack.c.l.b16 %v5035
          %v5075 = vunpack.c.l.b16 %v5036
          %v5076 = vpack.c.b16 %v5061, %v5060
          %v5077 = vpack.c.b16 %v5063, %v5062
          %v5078 = vpack.c.b16 %v5065, %v5064
          %v5079 = vpack.c.b16 %v5067, %v5066
          %v5080 = vpack.c.b16 %v5069, %v5068
          %v5081 = vpack.c.b16 %v5071, %v5070
          %v5082 = vpack.c.b16 %v5073, %v5072
          %v5083 = vpack.c.b16 %v5075, %v5074
          %5092 = vmatprep.subr.bf16.mxu0 0
          %5093 = vmatpush1.bf16.msra.mxu0 %v5076
          %5094 = vmatprep.subr.bf16.mxu0 0
          %5095 = vmatpush1.bf16.msra.mxu0 %v5077
          %5096 = vmatprep.subr.bf16.mxu0 0
          %5097 = vmatpush1.bf16.msra.mxu0 %v5078
          %5098 = vmatprep.subr.bf16.mxu0 0
          %5099 = vmatpush1.bf16.msra.mxu0 %v5079
          %5100 = vmatprep.subr.bf16.mxu0 0
          %5101 = vmatpush1.bf16.msra.mxu0 %v5080
          %5102 = vmatprep.subr.bf16.mxu0 0
          %5103 = vmatpush1.bf16.msra.mxu0 %v5081
          %5104 = vmatprep.subr.bf16.mxu0 0
          %5105 = vmatpush1.bf16.msra.mxu0 %v5082
          %5106 = vmatprep.subr.bf16.mxu0 0
          %5107 = vmatpush1.bf16.msra.mxu0 %v5083
          %5108 = vmatprep.subr.bf16.mxu0 0
          %5109 = vmatpush1.bf16.msra.mxu0 0
          %5110 = vmatprep.subr.bf16.mxu0 0
          %5111 = vmatpush1.bf16.msra.mxu0 0
          %5112 = vmatprep.subr.bf16.mxu0 0
          %5113 = vmatpush1.bf16.msra.mxu0 0
          %5114 = vmatprep.subr.bf16.mxu0 0
          %5115 = vmatpush1.bf16.msra.mxu0 0
          %5116 = vmatprep.subr.bf16.mxu0 0
          %5117 = vmatpush1.bf16.msra.mxu0 0
          %5118 = vmatprep.subr.bf16.mxu0 0
          %5119 = vmatpush1.bf16.msra.mxu0 0
          %5120 = vmatprep.subr.bf16.mxu0 0
          %5121 = vmatpush1.bf16.msra.mxu0 0
          %5122 = vmatprep.subr.bf16.mxu0 0
          %5123 = vmatpush1.bf16.msra.mxu0 0
          %5124 = vmatprep.mubr.bf16.mxu0 0
          %5125 = vmatmul.mubr.bf16.gmra.mrb[0].mxu0 %v5020
          %v5126 = vpop.f32.mrb[0].mxu0
          %v5127 = vadd.f32 %v5042, %v5126
          %v5128 = vpop.f32.mrb[0].mxu0
          %v5129 = vpop.f32.mrb[0].mxu0
          %v5130 = vpop.f32.mrb[0].mxu0
          %5131 = vdwg.mxu0
          %v5132 = vpack.c.bf16 %v5127, %v5127
          %v5133 = vld [vmem:[%s12] sm:$0xf]
          %v5134 = vld [vmem:[%s12 + $0x4] sm:$0xf]
          %v5135 = vld [vmem:[%s12 + $0x8] sm:$0xf]
          %v5136 = vld [vmem:[%s12 + $0xc] sm:$0xf]
          %v5137 = vld [vmem:[%s12 + $0x10] sm:$0xf]
          %v5138 = vld [vmem:[%s12 + $0x14] sm:$0xf]
          %v5139 = vld [vmem:[%s12 + $0x18] sm:$0xf]
          %v5140 = vld [vmem:[%s12 + $0x1c] sm:$0xf]
          %v5141 = vld [vmem:[#allocation21] sm:$0x1]
          %v5143 = vlaneseq
          %v5144 = vshrl.u32 %v5143, 7
          %v5145 = vsub.s32 0, %v5144
          %v5146 = vrot.slane %v5141, %v5145
          %v5156 = vunpack.c.l.b16 %v5133
          %v5157 = vunpack.c.l.b16 %v5134
          %v5158 = vunpack.c.l.b16 %v5135
          %v5159 = vunpack.c.l.b16 %v5136
          %v5160 = vunpack.c.l.b16 %v5137
          %v5161 = vunpack.c.l.b16 %v5138
          %v5162 = vunpack.c.l.b16 %v5139
          %v5163 = vunpack.c.l.b16 %v5140
          %v5164 = vpack.c.b16 %v5157, %v5156
          %v5165 = vpack.c.b16 %v5159, %v5158
          %v5166 = vpack.c.b16 %v5161, %v5160
          %v5167 = vpack.c.b16 %v5163, %v5162
          %v5173 = vsel %vm4893, %v5132, 0
          %5175 = vmatprep.subr.bf16.mxu0 0
          %5176 = vmatpush1.bf16.msra.mxu0 %v5164
          %5177 = vmatprep.subr.bf16.mxu0 0
          %5178 = vmatpush1.bf16.msra.mxu0 %v5165
          %5179 = vmatprep.subr.bf16.mxu0 0
          %5180 = vmatpush1.bf16.msra.mxu0 %v5166
          %5181 = vmatprep.subr.bf16.mxu0 0
          %5182 = vmatpush1.bf16.msra.mxu0 %v5167
          %5183 = vmatprep.subr.bf16.mxu0 0
          %5184 = vmatpush1.bf16.msra.mxu0 0
          %5185 = vmatprep.subr.bf16.mxu0 0
          %5186 = vmatpush1.bf16.msra.mxu0 0
          %5187 = vmatprep.subr.bf16.mxu0 0
          %5188 = vmatpush1.bf16.msra.mxu0 0
          %5189 = vmatprep.subr.bf16.mxu0 0
          %5190 = vmatpush1.bf16.msra.mxu0 0
          %5191 = vmatprep.subr.bf16.mxu0 0
          %5192 = vmatpush1.bf16.msra.mxu0 0
          %5193 = vmatprep.subr.bf16.mxu0 0
          %5194 = vmatpush1.bf16.msra.mxu0 0
          %5195 = vmatprep.subr.bf16.mxu0 0
          %5196 = vmatpush1.bf16.msra.mxu0 0
          %5197 = vmatprep.subr.bf16.mxu0 0
          %5198 = vmatpush1.bf16.msra.mxu0 0
          %5199 = vmatprep.subr.bf16.mxu0 0
          %5200 = vmatpush1.bf16.msra.mxu0 0
          %5201 = vmatprep.subr.bf16.mxu0 0
          %5202 = vmatpush1.bf16.msra.mxu0 0
          %5203 = vmatprep.subr.bf16.mxu0 0
          %5204 = vmatpush1.bf16.msra.mxu0 0
          %5205 = vmatprep.subr.bf16.mxu0 0
          %5206 = vmatpush1.bf16.msra.mxu0 0
          %5207 = vmatprep.mubr.bf16.mxu0 0
          %5208 = vmatmul.mubr.bf16.gmra.mrb[0].mxu0 %v5173
          %v5209 = vpop.f32.mrb[0].mxu0
          %v5210 = vadd.f32 %v5146, %v5209
          %v5211 = vpop.f32.mrb[0].mxu0
          %v5212 = vpop.f32.mrb[0].mxu0
          %v5213 = vpop.f32.mrb[0].mxu0
          %5214 = vdwg.mxu0
          %v5215 = vpack.c.bf16 %v5210, %v5210
          %v5216 = vld [vmem:[#allocation23] sm:$0xf]
          %v5217 = vld [vmem:[#allocation23 + $0x4] sm:$0xf]
          %v5218 = vld [vmem:[#allocation23 + $0x8] sm:$0xf]
          %v5219 = vld [vmem:[#allocation23 + $0xc] sm:$0xf]
          %v5220 = vld [vmem:[#allocation24] sm:$0x1]
          %v5222 = vlaneseq
          %v5223 = vshrl.u32 %v5222, 7
          %v5224 = vsub.s32 0, %v5223
          %v5225 = vrot.slane %v5220, %v5224
          %v5231 = vunpack.c.l.b16 %v5216
          %v5232 = vunpack.c.l.b16 %v5217
          %v5233 = vunpack.c.l.b16 %v5218
          %v5234 = vunpack.c.l.b16 %v5219
          %v5235 = vpack.c.b16 %v5232, %v5231
          %v5236 = vpack.c.b16 %v5234, %v5233
          %v5240 = vsel %vm4889, %v5215, 0
          %5242 = vmatprep.subr.bf16.mxu0 0
          %5243 = vmatpush1.bf16.msra.mxu0 %v5235
          %5244 = vmatprep.subr.bf16.mxu0 0
          %5245 = vmatpush1.bf16.msra.mxu0 %v5236
          %5246 = vmatprep.subr.bf16.mxu0 0
          %5247 = vmatpush1.bf16.msra.mxu0 0
          %5248 = vmatprep.subr.bf16.mxu0 0
          %5249 = vmatpush1.bf16.msra.mxu0 0
          %5250 = vmatprep.subr.bf16.mxu0 0
          %5251 = vmatpush1.bf16.msra.mxu0 0
          %5252 = vmatprep.subr.bf16.mxu0 0
          %5253 = vmatpush1.bf16.msra.mxu0 0
          %5254 = vmatprep.subr.bf16.mxu0 0
          %5255 = vmatpush1.bf16.msra.mxu0 0
          %5256 = vmatprep.subr.bf16.mxu0 0
          %5257 = vmatpush1.bf16.msra.mxu0 0
          %5258 = vmatprep.subr.bf16.mxu0 0
          %5259 = vmatpush1.bf16.msra.mxu0 0
          %5260 = vmatprep.subr.bf16.mxu0 0
          %5261 = vmatpush1.bf16.msra.mxu0 0
          %5262 = vmatprep.subr.bf16.mxu0 0
          %5263 = vmatpush1.bf16.msra.mxu0 0
          %5264 = vmatprep.subr.bf16.mxu0 0
          %5265 = vmatpush1.bf16.msra.mxu0 0
          %5266 = vmatprep.subr.bf16.mxu0 0
          %5267 = vmatpush1.bf16.msra.mxu0 0
          %5268 = vmatprep.subr.bf16.mxu0 0
          %5269 = vmatpush1.bf16.msra.mxu0 0
          %5270 = vmatprep.subr.bf16.mxu0 0
          %5271 = vmatpush1.bf16.msra.mxu0 0
          %5272 = vmatprep.subr.bf16.mxu0 0
          %5273 = vmatpush1.bf16.msra.mxu0 0
          %5274 = vmatprep.mubr.bf16.mxu0 0
          %5275 = vmatmul.mubr.bf16.gmra.mrb[0].mxu0 %v5240
          %v5276 = vpop.f32.mrb[0].mxu0
          %v5277 = vadd.f32 %v5225, %v5276
          %v5278 = vpop.f32.mrb[0].mxu0
          %v5279 = vpop.f32.mrb[0].mxu0
          %v5280 = vpop.f32.mrb[0].mxu0
          %5281 = vdwg.mxu0
          %5282 = vst [vmem:[#allocation27] sm:$0xff] %v5277
        $region148: #{tpu_custom_call.1} parent=83 // pred_fallthru
          _
        // Predicated region
        $region149: #{tpu_custom_call.1} parent=83 // pred_check
          %p5283 = pneg %p402
        $region150: #{tpu_custom_call.1} parent=83 // pred_check_branch
          %5285 = sbr.rel (%p5283) target = $region152
        $region151: #{tpu_custom_call.1} parent=83 // pred_region
          %s5287 = ssub.s32 128, 128
          %5288 = vsyncadd [#allocation5], %s5287
          %s5290 = sshll.u32 [#allocation26], 4
          %s5291 = int_to_ptr.vmem [resolvable:$true] %s5290
          %5293 = dma.vmem_to_hbm [thread:$0]  %s5291, 128, %s16, [#allocation5]
        $region152: #{tpu_custom_call.1} parent=83 // pred_fallthru
          _
        // Predicated region
        $region153: #{tpu_custom_call.1} parent=83 // pred_check
          %p5294 = pneg %p423
        $region154: #{tpu_custom_call.1} parent=83 // pred_check_branch
          %5296 = sbr.rel (%p5294) target = $region156
        $region155: #{tpu_custom_call.1} parent=83 // pred_region
          %s5298 = ssub.s32 128, 128
          %5299 = vsyncadd [#allocation28], %s5298
          %s5301 = sshll.u32 [#allocation27], 4
          %s5302 = int_to_ptr.vmem [resolvable:$true] %s5301
          %5304 = dma.vmem_to_hbm [thread:$0]  %s5302, 128, %s17, [#allocation28]
        $region156: #{tpu_custom_call.1} parent=83 // pred_fallthru
          _
        // Predicated region
        $region157: #{tpu_custom_call.1} parent=83 // pred_check
          %p5305 = pneg %p402
        $region158: #{tpu_custom_call.1} parent=83 // pred_check_branch
          %5307 = sbr.rel (%p5305) target = $region160
        $region159: #{tpu_custom_call.1} parent=83 // pred_region
          %5308 = dma.done [#allocation5], 128
        $region160: #{tpu_custom_call.1} parent=83 // pred_fallthru
          _
        // Predicated region
        $region161: #{tpu_custom_call.1} parent=83 // pred_check
          %p5309 = pneg %p423
        $region162: #{tpu_custom_call.1} parent=83 // pred_check_branch
          %5311 = sbr.rel (%p5309) target = $region164
        $region163: #{tpu_custom_call.1} parent=83 // pred_region
          %5312 = dma.done [#allocation28], 128
        $region164: #{tpu_custom_call.1} parent=83 // pred_fallthru
          _
      $region84: #{tpu_custom_call.1} parent=5 // pred_fallthru
        _
      %p5313 = scmp.le.s32.totalorder 2, %s38
      // Predicated region
      $region165: #{tpu_custom_call.1} parent=5 // pred_check
        %p5314 = pneg %p5313
      $region166: #{tpu_custom_call.1} parent=5 // pred_check_branch
        %5316 = sbr.rel (%p5314) target = $region168
      $region167: #{tpu_custom_call.1} parent=5 // pred_region
        %s5317 = ssub.s32 %s38, 2
      $region168: #{tpu_custom_call.1} parent=5 // pred_fallthru
        _
    $region6: #{tpu_custom_call.1} parent=1 // loop_footer
      %s42 = sadd.s32 1, %s38
    $region7: #{tpu_custom_call.1} parent=1 // loop_footer_branch
      %37 = sbr.rel target = $region3
    $region8: #{tpu_custom_call.1} parent=1 // loop_exit
      _
    %5318 = vsyncpa [#allocation4], 1
    %s5319 = scalar_lea.sflag [#allocation4], 1
    %5320 = vsyncpa %s5319, 1
    %5321 = vsyncpa [#allocation7], 1
    %s5322 = scalar_lea.sflag [#allocation7], 1
    %5323 = vsyncpa %s5322, 1
    %5324 = vsyncpa [#allocation10], 1
    %5325 = vsyncpa [#allocation13], 1
    %5326 = vsyncpa [#allocation16], 1
    %5327 = vsyncpa [#allocation19], 1
    %5328 = vsyncpa [#allocation22], 1
    %5329 = vsyncpa [#allocation25], 1
    %5330 = vsyncpa [#allocation5], 1
    %s5331 = scalar_lea.sflag [#allocation5], 1
    %5332 = vsyncpa %s5331, 1
    %5333 = vsyncpa [#allocation28], 1

</llo_original>
